<compile_context>
chip_gen: v5e
topology: v5e:2x2
jax: 0.10.0
libtpu: 0.0.40
codegen_flags: <defaults>
</compile_context>

<pallas_src>
import functools
import math

import jax
import jax.numpy as jnp
from jax.experimental import pallas as pl
from jax.experimental.pallas import tpu as pltpu


# ---------------------------------------------------------------------------
# Fused kernel: one grid step == one batch sample.
# ---------------------------------------------------------------------------
def _attention_block_kernel(x_ref, gmask_ref, gamma_ref, beta_ref,
                            wq_ref, wk_ref, wv_ref, wo_ref,
                            bq_ref, bk_ref, bv_ref, bo_ref,
                            out_ref, *, groups, eps):
    x = x_ref[0]                                    # (C, HW) f32 (also residual)
    c, hw = x.shape
    inv_n = 1.0 / ((c // groups) * hw)

    # ---- GroupNorm (two-pass) on the lane-dense (C, HW) block -------------
    # gmask[i, j] = 1 if channel i and j are in the same group, so
    # gmask @ per_channel_sum == per-group sum broadcast back to channels.
    s1 = jnp.sum(x, axis=1, keepdims=True)                              # (C, 1)
    mean = jnp.dot(gmask_ref[...], s1,
                   preferred_element_type=jnp.float32) * inv_n          # (C, 1)
    d = x - mean
    s2 = jnp.sum(d * d, axis=1, keepdims=True)                          # (C, 1)
    var = jnp.dot(gmask_ref[...], s2,
                  preferred_element_type=jnp.float32) * inv_n           # (C, 1)
    xn = d * jax.lax.rsqrt(var + eps) * gamma_ref[...] + beta_ref[...]  # (C, HW)

    # ---- tokens (S, C) in bf16 for the MXU (in-kernel XLU transpose) ------
    a = jnp.transpose(xn).astype(jnp.bfloat16)                          # (S, C)

    # ---- Q/K/V projections; 1/sqrt(d) already folded into wq/bq -----------
    q = jnp.dot(a, wq_ref[...], preferred_element_type=jnp.float32) + bq_ref[...]
    k = jnp.dot(a, wk_ref[...], preferred_element_type=jnp.float32) + bk_ref[...]
    v = jnp.dot(a, wv_ref[...], preferred_element_type=jnp.float32) + bv_ref[...]

    # ---- single-head attention, full softmax (no kv loop: S fits VMEM) ----
    s = jax.lax.dot_general(q.astype(jnp.bfloat16), k.astype(jnp.bfloat16),
                            (((1,), (1,)), ((), ())),
                            preferred_element_type=jnp.float32)         # (S, S)
    m = jnp.max(s, axis=-1, keepdims=True)
    p = jnp.exp(s - m)
    l = jnp.sum(p, axis=-1, keepdims=True)
    o = jnp.dot(p.astype(jnp.bfloat16), v.astype(jnp.bfloat16),
                preferred_element_type=jnp.float32)                     # (S, C)
    o = o * pl.reciprocal(l, approx=True)

    # ---- output projection, back to (C, HW), fused residual add -----------
    y = jnp.dot(o.astype(jnp.bfloat16), wo_ref[...],
                preferred_element_type=jnp.float32) + bo_ref[...]       # (S, C)
    out_ref[0] = jnp.transpose(y) + x                                   # (C, HW)


# ---------------------------------------------------------------------------
# Wrapper
# ---------------------------------------------------------------------------
def attention_block(x, params, *, groups=32, eps=1e-5):
    n, c, h, w = x.shape
    hw = h * w
    assert c % groups == 0, "GroupNorm(32, C) needs C % 32 == 0"
    assert c % 128 == 0 and hw % 128 == 0, "lane-aligned shapes expected"
    # Per-sample working set (x, scores, qkv, ...) must fit comfortably in VMEM.
    # TODO(synk): add a flash-tiled (q_tile, kv_tile) fallback over HW for large
    #             images so the (HW, HW) score block stays under v7x's 64 MiB VMEM.
    assert (hw * hw + 8 * c * hw) * 4 < 16 * 1024 * 1024, "shape too large for fused path"

    x3 = x.reshape(n, c, hw)
    kernel = functools.partial(_attention_block_kernel, groups=groups, eps=eps)

    out = pl.pallas_call(
        kernel,
        out_shape=jax.ShapeDtypeStruct((n, c, hw), jnp.float32),
        grid=(n,),
        in_specs=[
            pl.BlockSpec((1, c, hw), lambda i: (i, 0, 0)),   # x (and residual)
            pl.BlockSpec((c, c), lambda i: (0, 0)),          # group-membership mask
            pl.BlockSpec((c, 1), lambda i: (0, 0)),          # gamma
            pl.BlockSpec((c, 1), lambda i: (0, 0)),          # beta
            pl.BlockSpec((c, c), lambda i: (0, 0)),          # Wq (scale folded)
            pl.BlockSpec((c, c), lambda i: (0, 0)),          # Wk
            pl.BlockSpec((c, c), lambda i: (0, 0)),          # Wv
            pl.BlockSpec((c, c), lambda i: (0, 0)),          # Wout
            pl.BlockSpec((1, c), lambda i: (0, 0)),          # bq (scale folded)
            pl.BlockSpec((1, c), lambda i: (0, 0)),          # bk
            pl.BlockSpec((1, c), lambda i: (0, 0)),          # bv
            pl.BlockSpec((1, c), lambda i: (0, 0)),          # bout
        ],
        out_specs=pl.BlockSpec((1, c, hw), lambda i: (i, 0, 0)),
        compiler_params=pltpu.CompilerParams(
            dimension_semantics=("parallel",)),              # batch -> 2 TCs on v7x
    )(x3, params["gmask"], params["gn_w"], params["gn_b"],
      params["wq"], params["wk"], params["wv"], params["wo"],
      params["bq"], params["bk"], params["bv"], params["bo"])
    return out.reshape(n, c, h, w)


attention_block_forward = jax.jit(attention_block)


# ---------------------------------------------------------------------------
# Parameter init (matches nn.Linear / nn.GroupNorm defaults)
# ---------------------------------------------------------------------------
def init_attention_block_params(key, channels, groups=32):
    c = channels
    k1, k2, k3, k4 = jax.random.split(key, 4)
    bound = 1.0 / math.sqrt(c)
    in_w = jax.random.uniform(k1, (3 * c, c), jnp.float32, -bound, bound)
    in_b = jax.random.uniform(k2, (3 * c,), jnp.float32, -bound, bound)
    out_w = jax.random.uniform(k3, (c, c), jnp.float32, -bound, bound)
    out_b = jax.random.uniform(k4, (c,), jnp.float32, -bound, bound)
    scale = 1.0 / math.sqrt(c)   # d_heads == C (single head)

    gid = jnp.arange(c) // (c // groups)
    gmask = (gid[:, None] == gid[None, :]).astype(jnp.float32)

    return {
        "gn_w": jnp.ones((c, 1), jnp.float32),
        "gn_b": jnp.zeros((c, 1), jnp.float32),
        "gmask": gmask,
        # Pre-transposed (in, out) bf16 weights; 1/sqrt(d) folded into q path.
        "wq": (in_w[:c].T * scale).astype(jnp.bfloat16),
        "wk": in_w[c:2 * c].T.astype(jnp.bfloat16),
        "wv": in_w[2 * c:].T.astype(jnp.bfloat16),
        "wo": out_w.T.astype(jnp.bfloat16),
        "bq": (in_b[:c] * scale).reshape(1, c),
        "bk": in_b[c:2 * c].reshape(1, c),
        "bv": in_b[2 * c:].reshape(1, c),
        "bo": out_b.reshape(1, c),
    }


# ---------------------------------------------------------------------------
# Pure-JAX reference (same bf16-stored weights) for a loose sanity check
# ---------------------------------------------------------------------------
def attention_block_reference(x, params, *, groups=32, eps=1e-5):
    n, c, h, w = x.shape
    hw = h * w
    xg = x.reshape(n, groups, (c // groups) * hw)
    mean = jnp.mean(xg, axis=2, keepdims=True)
    var = jnp.mean((xg - mean) ** 2, axis=2, keepdims=True)
    xn = ((xg - mean) / jnp.sqrt(var + eps)).reshape(n, c, hw)
    xn = xn * params["gn_w"].reshape(1, c, 1) + params["gn_b"].reshape(1, c, 1)
    a = jnp.transpose(xn, (0, 2, 1))                                   # (N, S, C)
    q = a @ params["wq"].astype(jnp.float32) + params["bq"]
    k = a @ params["wk"].astype(jnp.float32) + params["bk"]
    v = a @ params["wv"].astype(jnp.float32) + params["bv"]
    s = jnp.einsum("nsc,ntc->nst", q, k)
    p = jax.nn.softmax(s, axis=-1)
    o = jnp.einsum("nst,ntc->nsc", p, v)
    y = o @ params["wo"].astype(jnp.float32) + params["bo"]
    return jnp.transpose(y, (0, 2, 1)).reshape(n, c, h, w) + x


# ---------------------------------------------------------------------------
if __name__ == "__main__":
    root = jax.random.PRNGKey(0)
    pkey, xkey = jax.random.split(root)

    channels, hgt, wid, batch = 128, 16, 16, 2   # GroupNorm(32, C) needs C % 32 == 0
    params = init_attention_block_params(pkey, channels)
    x = jax.random.normal(xkey, (batch, channels, hgt, wid), jnp.float32)

    out = attention_block_forward(x, params)
    jax.block_until_ready(out)

    assert out.shape == (batch, channels, hgt, wid), out.shape
    assert bool(jnp.all(jnp.isfinite(out)))

    ref = attention_block_reference(x, params)
    err = float(jnp.max(jnp.abs(out - ref)))
    assert err < 5e-2, f"max abs error vs reference: {err}"
    print("KERNEL_OK")
</pallas_src>

<mosaic_0001>
module attributes {stable_mosaic.version = 11 : i64} {
  func.func @_attention_block_kernel(%arg0: i32, %arg1: memref<1x128x256xf32, #tpu.memory_space<vmem>>, %arg2: memref<128x128xf32, #tpu.memory_space<vmem>>, %arg3: memref<128x1xf32, #tpu.memory_space<vmem>>, %arg4: memref<128x1xf32, #tpu.memory_space<vmem>>, %arg5: memref<128x128xbf16, #tpu.memory_space<vmem>>, %arg6: memref<128x128xbf16, #tpu.memory_space<vmem>>, %arg7: memref<128x128xbf16, #tpu.memory_space<vmem>>, %arg8: memref<128x128xbf16, #tpu.memory_space<vmem>>, %arg9: memref<1x128xf32, #tpu.memory_space<vmem>>, %arg10: memref<1x128xf32, #tpu.memory_space<vmem>>, %arg11: memref<1x128xf32, #tpu.memory_space<vmem>>, %arg12: memref<1x128xf32, #tpu.memory_space<vmem>>, %arg13: memref<1x128x256xf32, #tpu.memory_space<vmem>>) attributes {dimension_semantics = [#tpu.dimension_semantics<parallel>], iteration_bounds = array<i64: 2>, scalar_prefetch = 0 : i64, scratch_operands = 0 : i64, tpu.core_type = #tpu.core_type<tc>, window_params = [{transform_indices = @transform_0, window_bounds = array<i64: 1, 128, 256>}, {pipeline_mode = #tpu.pipeline_mode<synchronous>, transform_indices = @transform_1, window_bounds = array<i64: 128, 128>}, {pipeline_mode = #tpu.pipeline_mode<synchronous>, transform_indices = @transform_2, window_bounds = array<i64: 128, 1>}, {pipeline_mode = #tpu.pipeline_mode<synchronous>, transform_indices = @transform_3, window_bounds = array<i64: 128, 1>}, {pipeline_mode = #tpu.pipeline_mode<synchronous>, transform_indices = @transform_4, window_bounds = array<i64: 128, 128>}, {pipeline_mode = #tpu.pipeline_mode<synchronous>, transform_indices = @transform_5, window_bounds = array<i64: 128, 128>}, {pipeline_mode = #tpu.pipeline_mode<synchronous>, transform_indices = @transform_6, window_bounds = array<i64: 128, 128>}, {pipeline_mode = #tpu.pipeline_mode<synchronous>, transform_indices = @transform_7, window_bounds = array<i64: 128, 128>}, {pipeline_mode = #tpu.pipeline_mode<synchronous>, transform_indices = @transform_8, window_bounds = array<i64: 1, 128>}, {pipeline_mode = #tpu.pipeline_mode<synchronous>, transform_indices = @transform_9, window_bounds = array<i64: 1, 128>}, {pipeline_mode = #tpu.pipeline_mode<synchronous>, transform_indices = @transform_10, window_bounds = array<i64: 1, 128>}, {pipeline_mode = #tpu.pipeline_mode<synchronous>, transform_indices = @transform_11, window_bounds = array<i64: 1, 128>}, {transform_indices = @transform_12, window_bounds = array<i64: 1, 128, 256>}]} {
    %c0 = arith.constant 0 : index
    %c0_0 = arith.constant 0 : index
    %c0_1 = arith.constant 0 : index
    %0 = vector.load %arg1[%c0, %c0_0, %c0_1] : memref<1x128x256xf32, #tpu.memory_space<vmem>>, vector<1x128x256xf32>
    %1 = vector.shape_cast %0 : vector<1x128x256xf32> to vector<128x256xf32>
    %cst = arith.constant dense<0.000000e+00> : vector<128xf32>
    %2 = vector.multi_reduction <add>, %1, %cst [1] : vector<128x256xf32> to vector<128xf32>
    %3 = vector.shape_cast %2 : vector<128xf32> to vector<128x1xf32>
    %c0_2 = arith.constant 0 : index
    %c0_3 = arith.constant 0 : index
    %4 = vector.load %arg2[%c0_2, %c0_3] : memref<128x128xf32, #tpu.memory_space<vmem>>, vector<128x128xf32>
    %cst_4 = arith.constant dense<0.000000e+00> : vector<128x1xf32>
    %5 = tpu.matmul %4, %3, %cst_4 {dimension_numbers = #tpu.dot_dimension_numbers<[1], [0], [0], [1], [0, 0, 1, 1], [], []>} : vector<128x128xf32>, vector<128x1xf32>, vector<128x1xf32> -> vector<128x1xf32>
    %cst_5 = arith.constant 9.765625E-4 : f32
    %6 = vector.broadcast %cst_5 : f32 to vector<128x1xf32>
    %7 = arith.mulf %5, %6 : vector<128x1xf32>
    %8 = vector.broadcast %7 : vector<128x1xf32> to vector<128x256xf32>
    %9 = arith.subf %1, %8 : vector<128x256xf32>
    %10 = arith.mulf %9, %9 : vector<128x256xf32>
    %cst_6 = arith.constant dense<0.000000e+00> : vector<128xf32>
    %11 = vector.multi_reduction <add>, %10, %cst_6 [1] : vector<128x256xf32> to vector<128xf32>
    %12 = vector.shape_cast %11 : vector<128xf32> to vector<128x1xf32>
    %c0_7 = arith.constant 0 : index
    %c0_8 = arith.constant 0 : index
    %13 = vector.load %arg2[%c0_7, %c0_8] : memref<128x128xf32, #tpu.memory_space<vmem>>, vector<128x128xf32>
    %cst_9 = arith.constant dense<0.000000e+00> : vector<128x1xf32>
    %14 = tpu.matmul %13, %12, %cst_9 {dimension_numbers = #tpu.dot_dimension_numbers<[1], [0], [0], [1], [0, 0, 1, 1], [], []>} : vector<128x128xf32>, vector<128x1xf32>, vector<128x1xf32> -> vector<128x1xf32>
    %cst_10 = arith.constant 9.765625E-4 : f32
    %15 = vector.broadcast %cst_10 : f32 to vector<128x1xf32>
    %16 = arith.mulf %14, %15 : vector<128x1xf32>
    %cst_11 = arith.constant 9.99999974E-6 : f32
    %17 = vector.broadcast %cst_11 : f32 to vector<128x1xf32>
    %18 = arith.addf %16, %17 : vector<128x1xf32>
    %19 = math.rsqrt %18 : vector<128x1xf32>
    %20 = vector.broadcast %19 : vector<128x1xf32> to vector<128x256xf32>
    %21 = arith.mulf %9, %20 : vector<128x256xf32>
    %c0_12 = arith.constant 0 : index
    %c0_13 = arith.constant 0 : index
    %22 = vector.load %arg3[%c0_12, %c0_13] : memref<128x1xf32, #tpu.memory_space<vmem>>, vector<128x1xf32>
    %23 = vector.broadcast %22 : vector<128x1xf32> to vector<128x256xf32>
    %24 = arith.mulf %21, %23 : vector<128x256xf32>
    %c0_14 = arith.constant 0 : index
    %c0_15 = arith.constant 0 : index
    %25 = vector.load %arg4[%c0_14, %c0_15] : memref<128x1xf32, #tpu.memory_space<vmem>>, vector<128x1xf32>
    %26 = vector.broadcast %25 : vector<128x1xf32> to vector<128x256xf32>
    %27 = arith.addf %24, %26 : vector<128x256xf32>
    %28 = tpu.transpose %27, [1, 0] : vector<128x256xf32> -> vector<256x128xf32>
    %29 = arith.truncf %28 : vector<256x128xf32> to vector<256x128xbf16>
    %c0_16 = arith.constant 0 : index
    %c0_17 = arith.constant 0 : index
    %30 = vector.load %arg5[%c0_16, %c0_17] : memref<128x128xbf16, #tpu.memory_space<vmem>>, vector<128x128xbf16>
    %cst_18 = arith.constant dense<0.000000e+00> : vector<256x128xf32>
    %31 = tpu.matmul %29, %30, %cst_18 {dimension_numbers = #tpu.dot_dimension_numbers<[1], [0], [0], [1], [0, 0, 1, 1], [], []>} : vector<256x128xbf16>, vector<128x128xbf16>, vector<256x128xf32> -> vector<256x128xf32>
    %c0_19 = arith.constant 0 : index
    %c0_20 = arith.constant 0 : index
    %32 = vector.load %arg9[%c0_19, %c0_20] : memref<1x128xf32, #tpu.memory_space<vmem>>, vector<1x128xf32>
    %33 = vector.broadcast %32 : vector<1x128xf32> to vector<256x128xf32>
    %34 = arith.addf %31, %33 : vector<256x128xf32>
    %c0_21 = arith.constant 0 : index
    %c0_22 = arith.constant 0 : index
    %35 = vector.load %arg6[%c0_21, %c0_22] : memref<128x128xbf16, #tpu.memory_space<vmem>>, vector<128x128xbf16>
    %cst_23 = arith.constant dense<0.000000e+00> : vector<256x128xf32>
    %36 = tpu.matmul %29, %35, %cst_23 {dimension_numbers = #tpu.dot_dimension_numbers<[1], [0], [0], [1], [0, 0, 1, 1], [], []>} : vector<256x128xbf16>, vector<128x128xbf16>, vector<256x128xf32> -> vector<256x128xf32>
    %c0_24 = arith.constant 0 : index
    %c0_25 = arith.constant 0 : index
    %37 = vector.load %arg10[%c0_24, %c0_25] : memref<1x128xf32, #tpu.memory_space<vmem>>, vector<1x128xf32>
    %38 = vector.broadcast %37 : vector<1x128xf32> to vector<256x128xf32>
    %39 = arith.addf %36, %38 : vector<256x128xf32>
    %c0_26 = arith.constant 0 : index
    %c0_27 = arith.constant 0 : index
    %40 = vector.load %arg7[%c0_26, %c0_27] : memref<128x128xbf16, #tpu.memory_space<vmem>>, vector<128x128xbf16>
    %cst_28 = arith.constant dense<0.000000e+00> : vector<256x128xf32>
    %41 = tpu.matmul %29, %40, %cst_28 {dimension_numbers = #tpu.dot_dimension_numbers<[1], [0], [0], [1], [0, 0, 1, 1], [], []>} : vector<256x128xbf16>, vector<128x128xbf16>, vector<256x128xf32> -> vector<256x128xf32>
    %c0_29 = arith.constant 0 : index
    %c0_30 = arith.constant 0 : index
    %42 = vector.load %arg11[%c0_29, %c0_30] : memref<1x128xf32, #tpu.memory_space<vmem>>, vector<1x128xf32>
    %43 = vector.broadcast %42 : vector<1x128xf32> to vector<256x128xf32>
    %44 = arith.addf %41, %43 : vector<256x128xf32>
    %45 = arith.truncf %34 : vector<256x128xf32> to vector<256x128xbf16>
    %46 = arith.truncf %39 : vector<256x128xf32> to vector<256x128xbf16>
    %cst_31 = arith.constant dense<0.000000e+00> : vector<256x256xf32>
    %47 = tpu.matmul %45, %46, %cst_31 {dimension_numbers = #tpu.dot_dimension_numbers<[1], [1], [0], [0], [0, 0, 1, 0], [], []>} : vector<256x128xbf16>, vector<256x128xbf16>, vector<256x256xf32> -> vector<256x256xf32>
    %cst_32 = arith.constant dense<0xFF800000> : vector<256xf32>
    %48 = vector.multi_reduction <maximumf>, %47, %cst_32 [1] : vector<256x256xf32> to vector<256xf32>
    %49 = vector.shape_cast %48 : vector<256xf32> to vector<256x1xf32>
    %50 = vector.broadcast %49 : vector<256x1xf32> to vector<256x256xf32>
    %51 = arith.subf %47, %50 : vector<256x256xf32>
    %52 = math.exp %51 : vector<256x256xf32>
    %cst_33 = arith.constant dense<0.000000e+00> : vector<256xf32>
    %53 = vector.multi_reduction <add>, %52, %cst_33 [1] : vector<256x256xf32> to vector<256xf32>
    %54 = vector.shape_cast %53 : vector<256xf32> to vector<256x1xf32>
    %55 = arith.truncf %52 : vector<256x256xf32> to vector<256x256xbf16>
    %56 = arith.truncf %44 : vector<256x128xf32> to vector<256x128xbf16>
    %cst_34 = arith.constant dense<0.000000e+00> : vector<256x128xf32>
    %57 = tpu.matmul %55, %56, %cst_34 {dimension_numbers = #tpu.dot_dimension_numbers<[1], [0], [0], [1], [0, 0, 1, 1], [], []>} : vector<256x256xbf16>, vector<256x128xbf16>, vector<256x128xf32> -> vector<256x128xf32>
    %58 = tpu.reciprocal %54 {approx = true} : vector<256x1xf32> -> vector<256x1xf32>
    %59 = vector.broadcast %58 : vector<256x1xf32> to vector<256x128xf32>
    %60 = arith.mulf %57, %59 : vector<256x128xf32>
    %61 = arith.truncf %60 : vector<256x128xf32> to vector<256x128xbf16>
    %c0_35 = arith.constant 0 : index
    %c0_36 = arith.constant 0 : index
    %62 = vector.load %arg8[%c0_35, %c0_36] : memref<128x128xbf16, #tpu.memory_space<vmem>>, vector<128x128xbf16>
    %cst_37 = arith.constant dense<0.000000e+00> : vector<256x128xf32>
    %63 = tpu.matmul %61, %62, %cst_37 {dimension_numbers = #tpu.dot_dimension_numbers<[1], [0], [0], [1], [0, 0, 1, 1], [], []>} : vector<256x128xbf16>, vector<128x128xbf16>, vector<256x128xf32> -> vector<256x128xf32>
    %c0_38 = arith.constant 0 : index
    %c0_39 = arith.constant 0 : index
    %64 = vector.load %arg12[%c0_38, %c0_39] : memref<1x128xf32, #tpu.memory_space<vmem>>, vector<1x128xf32>
    %65 = vector.broadcast %64 : vector<1x128xf32> to vector<256x128xf32>
    %66 = arith.addf %63, %65 : vector<256x128xf32>
    %67 = tpu.transpose %66, [1, 0] : vector<256x128xf32> -> vector<128x256xf32>
    %68 = arith.addf %67, %1 : vector<128x256xf32>
    %c0_40 = arith.constant 0 : index
    %c0_41 = arith.constant 0 : index
    %c0_42 = arith.constant 0 : index
    %69 = vector.load %arg13[%c0_40, %c0_41, %c0_42] : memref<1x128x256xf32, #tpu.memory_space<vmem>>, vector<1x128x256xf32>
    %70 = vector.shape_cast %69 : vector<1x128x256xf32> to vector<128x256xf32>
    %71 = vector.shape_cast %68 : vector<128x256xf32> to vector<1x128x256xf32>
    tpu.vector_store %arg13[%c0_40, %c0_41, %c0_42], %71 {strides = array<i32>} : memref<1x128x256xf32, #tpu.memory_space<vmem>>, vector<1x128x256xf32>,
    return
  }
  func.func @transform_0(%arg0: i32) -> (i32, i32, i32) {
    %c0_i32 = arith.constant 0 : i32
    %c0_i32_0 = arith.constant 0 : i32
    %c0_i32_1 = arith.constant 0 : i32
    return %arg0, %c0_i32, %c0_i32_0 : i32, i32, i32
  }
  func.func @transform_1(%arg0: i32) -> (i32, i32) {
    %c0_i32 = arith.constant 0 : i32
    %c0_i32_0 = arith.constant 0 : i32
    %c0_i32_1 = arith.constant 0 : i32
    return %c0_i32, %c0_i32_0 : i32, i32
  }
  func.func @transform_2(%arg0: i32) -> (i32, i32) {
    %c0_i32 = arith.constant 0 : i32
    %c0_i32_0 = arith.constant 0 : i32
    %c0_i32_1 = arith.constant 0 : i32
    return %c0_i32, %c0_i32_0 : i32, i32
  }
  func.func @transform_3(%arg0: i32) -> (i32, i32) {
    %c0_i32 = arith.constant 0 : i32
    %c0_i32_0 = arith.constant 0 : i32
    %c0_i32_1 = arith.constant 0 : i32
    return %c0_i32, %c0_i32_0 : i32, i32
  }
  func.func @transform_4(%arg0: i32) -> (i32, i32) {
    %c0_i32 = arith.constant 0 : i32
    %c0_i32_0 = arith.constant 0 : i32
    %c0_i32_1 = arith.constant 0 : i32
    return %c0_i32, %c0_i32_0 : i32, i32
  }
  func.func @transform_5(%arg0: i32) -> (i32, i32) {
    %c0_i32 = arith.constant 0 : i32
    %c0_i32_0 = arith.constant 0 : i32
    %c0_i32_1 = arith.constant 0 : i32
    return %c0_i32, %c0_i32_0 : i32, i32
  }
  func.func @transform_6(%arg0: i32) -> (i32, i32) {
    %c0_i32 = arith.constant 0 : i32
    %c0_i32_0 = arith.constant 0 : i32
    %c0_i32_1 = arith.constant 0 : i32
    return %c0_i32, %c0_i32_0 : i32, i32
  }
  func.func @transform_7(%arg0: i32) -> (i32, i32) {
    %c0_i32 = arith.constant 0 : i32
    %c0_i32_0 = arith.constant 0 : i32
    %c0_i32_1 = arith.constant 0 : i32
    return %c0_i32, %c0_i32_0 : i32, i32
  }
  func.func @transform_8(%arg0: i32) -> (i32, i32) {
    %c0_i32 = arith.constant 0 : i32
    %c0_i32_0 = arith.constant 0 : i32
    %c0_i32_1 = arith.constant 0 : i32
    return %c0_i32, %c0_i32_0 : i32, i32
  }
  func.func @transform_9(%arg0: i32) -> (i32, i32) {
    %c0_i32 = arith.constant 0 : i32
    %c0_i32_0 = arith.constant 0 : i32
    %c0_i32_1 = arith.constant 0 : i32
    return %c0_i32, %c0_i32_0 : i32, i32
  }
  func.func @transform_10(%arg0: i32) -> (i32, i32) {
    %c0_i32 = arith.constant 0 : i32
    %c0_i32_0 = arith.constant 0 : i32
    %c0_i32_1 = arith.constant 0 : i32
    return %c0_i32, %c0_i32_0 : i32, i32
  }
  func.func @transform_11(%arg0: i32) -> (i32, i32) {
    %c0_i32 = arith.constant 0 : i32
    %c0_i32_0 = arith.constant 0 : i32
    %c0_i32_1 = arith.constant 0 : i32
    return %c0_i32, %c0_i32_0 : i32, i32
  }
  func.func @transform_12(%arg0: i32) -> (i32, i32, i32) {
    %c0_i32 = arith.constant 0 : i32
    %c0_i32_0 = arith.constant 0 : i32
    %c0_i32_1 = arith.constant 0 : i32
    return %arg0, %c0_i32, %c0_i32_0 : i32, i32, i32
  }
}

</mosaic_0001>

<llo_original>
// kernel: attention_block.1
$region0: #{attention_block.1}
  #allocation0 [shape = 'u32[]', space=smem, size = 0x4, offset = 0x4, fixed_abs, tag = 'smem constant byte address 0x4 - core index']
  #allocation1 [shape = 'u32[72,128]{1,0:T(1,128)}', space=vmem, size = 0x9000, scoped, tag = 'internal scratch']
  %s0 = inlined_call_operand.vmem [shape: f32[2,128,256], index: 0, kind: input, shape index: {}]
  %s1 = inlined_call_operand.vmem [shape: f32[128,128], index: 1, kind: input, shape index: {}]
  %s2 = inlined_call_operand.vmem [shape: f32[128,1], index: 2, kind: input, shape index: {}]
  %s3 = inlined_call_operand.vmem [shape: f32[128,1], index: 3, kind: input, shape index: {}]
  %s4 = inlined_call_operand.vmem [shape: bf16[128,128], index: 4, kind: input, shape index: {}]
  %s5 = inlined_call_operand.vmem [shape: bf16[128,128], index: 5, kind: input, shape index: {}]
  %s6 = inlined_call_operand.vmem [shape: bf16[128,128], index: 6, kind: input, shape index: {}]
  %s7 = inlined_call_operand.vmem [shape: bf16[128,128], index: 7, kind: input, shape index: {}]
  %s8 = inlined_call_operand.vmem [shape: f32[1,128], index: 8, kind: input, shape index: {}]
  %s9 = inlined_call_operand.vmem [shape: f32[1,128], index: 9, kind: input, shape index: {}]
  %s10 = inlined_call_operand.vmem [shape: f32[1,128], index: 10, kind: input, shape index: {}]
  %s11 = inlined_call_operand.vmem [shape: f32[1,128], index: 11, kind: input, shape index: {}]
  %s12 = inlined_call_operand.vmem [shape: f32[2,128,256], index: 12, kind: output, shape index: {}]
  %s13 = sld [smem:[#allocation0]]
  $region81: #{attention_block.1} parent=0
    _
  %s15 = ssub.s32 1, %s13
  %s16 = scalar_select 0, %s15, %s13
  loop: start=0, step=1, limit=4
  $region2: #{attention_block.1} parent=0 // loop_pre_header
    _
  $region3: #{attention_block.1} parent=0 // loop_header
    %s18 = sphi 0, %s22
    %p19 = scmp.ge.s32.totalorder %s18, 4
    %s28 = sphi 0, %s30
    %s31 = sphi 0, %s28
    %s32 = sphi 0, %s31
    %s48 = sphi 0, %s32
    %s52 = sphi 0, %s52
    %s54 = sphi 0, %s52
    %s55 = sphi 0, %s54
    %s69 = sphi 0, %s55
    %s73 = sphi 0, %s73
    %s75 = sphi 0, %s73
    %s76 = sphi 0, %s75
    %s90 = sphi 0, %s76
    %s94 = sphi 0, %s94
    %s96 = sphi 0, %s94
    %s97 = sphi 0, %s96
    %s111 = sphi 0, %s97
    %s115 = sphi 0, %s115
    %s117 = sphi 0, %s115
    %s118 = sphi 0, %s117
    %s132 = sphi 0, %s118
    %s136 = sphi 0, %s136
    %s138 = sphi 0, %s136
    %s139 = sphi 0, %s138
    %s153 = sphi 0, %s139
    %s157 = sphi 0, %s157
    %s159 = sphi 0, %s157
    %s160 = sphi 0, %s159
    %s174 = sphi 0, %s160
    %s178 = sphi 0, %s178
    %s180 = sphi 0, %s178
    %s181 = sphi 0, %s180
    %s195 = sphi 0, %s181
    %s199 = sphi 0, %s199
    %s201 = sphi 0, %s199
    %s202 = sphi 0, %s201
    %s216 = sphi 0, %s202
    %s220 = sphi 0, %s220
    %s222 = sphi 0, %s220
    %s223 = sphi 0, %s222
    %s237 = sphi 0, %s223
    %s241 = sphi 0, %s241
    %s243 = sphi 0, %s241
    %s244 = sphi 0, %s243
    %s258 = sphi 0, %s244
    %s262 = sphi 0, %s262
    %s264 = sphi 0, %s262
    %s265 = sphi 0, %s264
    %s279 = sphi 0, %s265
    %s285 = sphi 0, %s287
    %s288 = sphi 0, %s285
    %s289 = sphi 0, %s288
    %s305 = sphi 0, %s289
  $region4: #{attention_block.1} parent=0 // loop_header_branch
    %21 = sbr.rel (%p19) target = $region8
  $region5: #{attention_block.1} parent=0 // loop_body
    %s23 = ssub.s32 %s18, 1
    %s24 = ssub.s32 %s18, 2
    %s25 = sadd.s32 %s18, 1
    %s26 = ssub.s32 %s18, %s25
    %p27 = scmp.eq.s32.totalorder %s26, 0
    %s29 = sadd.s32 %s28, 1
    %s30 = scalar_select %p27, %s28, %s29
    %p33 = pneg %p27
    %p34 = scmp.eq.s32.totalorder %s18, 1
    %p35 = por %p33, %p34
    %p36 = scmp.ne.s32.totalorder %s28, %s31
    %p37 = scmp.eq.s32.totalorder %s18, 0
    %p38 = por %p36, %p37
    %p39 = scmp.ne.s32.totalorder %s28, %s31
    %p40 = scmp.eq.s32.totalorder %s23, 1
    %p41 = por %p39, %p40
    %p42 = scmp.ne.s32.totalorder %s31, %s32
    %p43 = scmp.eq.s32.totalorder %s23, 0
    %p44 = por %p42, %p43
    %p45 = scmp.ne.s32.totalorder %s31, %s32
    %p46 = scmp.eq.s32.totalorder %s24, 1
    %p47 = por %p45, %p46
    %p49 = scmp.ne.s32.totalorder %s32, %s48
    %p50 = scmp.eq.s32.totalorder %s24, 0
    %p51 = por %p49, %p50
    %s53 = sadd.s32 %s52, 1
    %p56 = scmp.eq.s32.totalorder %s18, 1
    %p57 = scmp.ne.s32.totalorder %s52, %s54
    %p58 = scmp.eq.s32.totalorder %s18, 0
    %p59 = por %p57, %p58
    %p60 = scmp.ne.s32.totalorder %s52, %s54
    %p61 = scmp.eq.s32.totalorder %s23, 1
    %p62 = por %p60, %p61
    %p63 = scmp.ne.s32.totalorder %s54, %s55
    %p64 = scmp.eq.s32.totalorder %s23, 0
    %p65 = por %p63, %p64
    %p66 = scmp.ne.s32.totalorder %s54, %s55
    %p67 = scmp.eq.s32.totalorder %s24, 1
    %p68 = por %p66, %p67
    %p70 = scmp.ne.s32.totalorder %s55, %s69
    %p71 = scmp.eq.s32.totalorder %s24, 0
    %p72 = por %p70, %p71
    %s74 = sadd.s32 %s73, 1
    %p77 = scmp.eq.s32.totalorder %s18, 1
    %p78 = scmp.ne.s32.totalorder %s73, %s75
    %p79 = scmp.eq.s32.totalorder %s18, 0
    %p80 = por %p78, %p79
    %p81 = scmp.ne.s32.totalorder %s73, %s75
    %p82 = scmp.eq.s32.totalorder %s23, 1
    %p83 = por %p81, %p82
    %p84 = scmp.ne.s32.totalorder %s75, %s76
    %p85 = scmp.eq.s32.totalorder %s23, 0
    %p86 = por %p84, %p85
    %p87 = scmp.ne.s32.totalorder %s75, %s76
    %p88 = scmp.eq.s32.totalorder %s24, 1
    %p89 = por %p87, %p88
    %p91 = scmp.ne.s32.totalorder %s76, %s90
    %p92 = scmp.eq.s32.totalorder %s24, 0
    %p93 = por %p91, %p92
    %s95 = sadd.s32 %s94, 1
    %p98 = scmp.eq.s32.totalorder %s18, 1
    %p99 = scmp.ne.s32.totalorder %s94, %s96
    %p100 = scmp.eq.s32.totalorder %s18, 0
    %p101 = por %p99, %p100
    %p102 = scmp.ne.s32.totalorder %s94, %s96
    %p103 = scmp.eq.s32.totalorder %s23, 1
    %p104 = por %p102, %p103
    %p105 = scmp.ne.s32.totalorder %s96, %s97
    %p106 = scmp.eq.s32.totalorder %s23, 0
    %p107 = por %p105, %p106
    %p108 = scmp.ne.s32.totalorder %s96, %s97
    %p109 = scmp.eq.s32.totalorder %s24, 1
    %p110 = por %p108, %p109
    %p112 = scmp.ne.s32.totalorder %s97, %s111
    %p113 = scmp.eq.s32.totalorder %s24, 0
    %p114 = por %p112, %p113
    %s116 = sadd.s32 %s115, 1
    %p119 = scmp.eq.s32.totalorder %s18, 1
    %p120 = scmp.ne.s32.totalorder %s115, %s117
    %p121 = scmp.eq.s32.totalorder %s18, 0
    %p122 = por %p120, %p121
    %p123 = scmp.ne.s32.totalorder %s115, %s117
    %p124 = scmp.eq.s32.totalorder %s23, 1
    %p125 = por %p123, %p124
    %p126 = scmp.ne.s32.totalorder %s117, %s118
    %p127 = scmp.eq.s32.totalorder %s23, 0
    %p128 = por %p126, %p127
    %p129 = scmp.ne.s32.totalorder %s117, %s118
    %p130 = scmp.eq.s32.totalorder %s24, 1
    %p131 = por %p129, %p130
    %p133 = scmp.ne.s32.totalorder %s118, %s132
    %p134 = scmp.eq.s32.totalorder %s24, 0
    %p135 = por %p133, %p134
    %s137 = sadd.s32 %s136, 1
    %p140 = scmp.eq.s32.totalorder %s18, 1
    %p141 = scmp.ne.s32.totalorder %s136, %s138
    %p142 = scmp.eq.s32.totalorder %s18, 0
    %p143 = por %p141, %p142
    %p144 = scmp.ne.s32.totalorder %s136, %s138
    %p145 = scmp.eq.s32.totalorder %s23, 1
    %p146 = por %p144, %p145
    %p147 = scmp.ne.s32.totalorder %s138, %s139
    %p148 = scmp.eq.s32.totalorder %s23, 0
    %p149 = por %p147, %p148
    %p150 = scmp.ne.s32.totalorder %s138, %s139
    %p151 = scmp.eq.s32.totalorder %s24, 1
    %p152 = por %p150, %p151
    %p154 = scmp.ne.s32.totalorder %s139, %s153
    %p155 = scmp.eq.s32.totalorder %s24, 0
    %p156 = por %p154, %p155
    %s158 = sadd.s32 %s157, 1
    %p161 = scmp.eq.s32.totalorder %s18, 1
    %p162 = scmp.ne.s32.totalorder %s157, %s159
    %p163 = scmp.eq.s32.totalorder %s18, 0
    %p164 = por %p162, %p163
    %p165 = scmp.ne.s32.totalorder %s157, %s159
    %p166 = scmp.eq.s32.totalorder %s23, 1
    %p167 = por %p165, %p166
    %p168 = scmp.ne.s32.totalorder %s159, %s160
    %p169 = scmp.eq.s32.totalorder %s23, 0
    %p170 = por %p168, %p169
    %p171 = scmp.ne.s32.totalorder %s159, %s160
    %p172 = scmp.eq.s32.totalorder %s24, 1
    %p173 = por %p171, %p172
    %p175 = scmp.ne.s32.totalorder %s160, %s174
    %p176 = scmp.eq.s32.totalorder %s24, 0
    %p177 = por %p175, %p176
    %s179 = sadd.s32 %s178, 1
    %p182 = scmp.eq.s32.totalorder %s18, 1
    %p183 = scmp.ne.s32.totalorder %s178, %s180
    %p184 = scmp.eq.s32.totalorder %s18, 0
    %p185 = por %p183, %p184
    %p186 = scmp.ne.s32.totalorder %s178, %s180
    %p187 = scmp.eq.s32.totalorder %s23, 1
    %p188 = por %p186, %p187
    %p189 = scmp.ne.s32.totalorder %s180, %s181
    %p190 = scmp.eq.s32.totalorder %s23, 0
    %p191 = por %p189, %p190
    %p192 = scmp.ne.s32.totalorder %s180, %s181
    %p193 = scmp.eq.s32.totalorder %s24, 1
    %p194 = por %p192, %p193
    %p196 = scmp.ne.s32.totalorder %s181, %s195
    %p197 = scmp.eq.s32.totalorder %s24, 0
    %p198 = por %p196, %p197
    %s200 = sadd.s32 %s199, 1
    %p203 = scmp.eq.s32.totalorder %s18, 1
    %p204 = scmp.ne.s32.totalorder %s199, %s201
    %p205 = scmp.eq.s32.totalorder %s18, 0
    %p206 = por %p204, %p205
    %p207 = scmp.ne.s32.totalorder %s199, %s201
    %p208 = scmp.eq.s32.totalorder %s23, 1
    %p209 = por %p207, %p208
    %p210 = scmp.ne.s32.totalorder %s201, %s202
    %p211 = scmp.eq.s32.totalorder %s23, 0
    %p212 = por %p210, %p211
    %p213 = scmp.ne.s32.totalorder %s201, %s202
    %p214 = scmp.eq.s32.totalorder %s24, 1
    %p215 = por %p213, %p214
    %p217 = scmp.ne.s32.totalorder %s202, %s216
    %p218 = scmp.eq.s32.totalorder %s24, 0
    %p219 = por %p217, %p218
    %s221 = sadd.s32 %s220, 1
    %p224 = scmp.eq.s32.totalorder %s18, 1
    %p225 = scmp.ne.s32.totalorder %s220, %s222
    %p226 = scmp.eq.s32.totalorder %s18, 0
    %p227 = por %p225, %p226
    %p228 = scmp.ne.s32.totalorder %s220, %s222
    %p229 = scmp.eq.s32.totalorder %s23, 1
    %p230 = por %p228, %p229
    %p231 = scmp.ne.s32.totalorder %s222, %s223
    %p232 = scmp.eq.s32.totalorder %s23, 0
    %p233 = por %p231, %p232
    %p234 = scmp.ne.s32.totalorder %s222, %s223
    %p235 = scmp.eq.s32.totalorder %s24, 1
    %p236 = por %p234, %p235
    %p238 = scmp.ne.s32.totalorder %s223, %s237
    %p239 = scmp.eq.s32.totalorder %s24, 0
    %p240 = por %p238, %p239
    %s242 = sadd.s32 %s241, 1
    %p245 = scmp.eq.s32.totalorder %s18, 1
    %p246 = scmp.ne.s32.totalorder %s241, %s243
    %p247 = scmp.eq.s32.totalorder %s18, 0
    %p248 = por %p246, %p247
    %p249 = scmp.ne.s32.totalorder %s241, %s243
    %p250 = scmp.eq.s32.totalorder %s23, 1
    %p251 = por %p249, %p250
    %p252 = scmp.ne.s32.totalorder %s243, %s244
    %p253 = scmp.eq.s32.totalorder %s23, 0
    %p254 = por %p252, %p253
    %p255 = scmp.ne.s32.totalorder %s243, %s244
    %p256 = scmp.eq.s32.totalorder %s24, 1
    %p257 = por %p255, %p256
    %p259 = scmp.ne.s32.totalorder %s244, %s258
    %p260 = scmp.eq.s32.totalorder %s24, 0
    %p261 = por %p259, %p260
    %s263 = sadd.s32 %s262, 1
    %p266 = scmp.eq.s32.totalorder %s18, 1
    %p267 = scmp.ne.s32.totalorder %s262, %s264
    %p268 = scmp.eq.s32.totalorder %s18, 0
    %p269 = por %p267, %p268
    %p270 = scmp.ne.s32.totalorder %s262, %s264
    %p271 = scmp.eq.s32.totalorder %s23, 1
    %p272 = por %p270, %p271
    %p273 = scmp.ne.s32.totalorder %s264, %s265
    %p274 = scmp.eq.s32.totalorder %s23, 0
    %p275 = por %p273, %p274
    %p276 = scmp.ne.s32.totalorder %s264, %s265
    %p277 = scmp.eq.s32.totalorder %s24, 1
    %p278 = por %p276, %p277
    %p280 = scmp.ne.s32.totalorder %s265, %s279
    %p281 = scmp.eq.s32.totalorder %s24, 0
    %p282 = por %p280, %p281
    %s283 = ssub.s32 %s18, %s25
    %p284 = scmp.eq.s32.totalorder %s283, 0
    %s286 = sadd.s32 %s285, 1
    %s287 = scalar_select %p284, %s285, %s286
    %p290 = pneg %p284
    %p291 = scmp.eq.s32.totalorder %s18, 1
    %p292 = por %p290, %p291
    %p293 = scmp.ne.s32.totalorder %s285, %s288
    %p294 = scmp.eq.s32.totalorder %s18, 0
    %p295 = por %p293, %p294
    %p296 = scmp.ne.s32.totalorder %s285, %s288
    %p297 = scmp.eq.s32.totalorder %s23, 1
    %p298 = por %p296, %p297
    %p299 = scmp.ne.s32.totalorder %s288, %s289
    %p300 = scmp.eq.s32.totalorder %s23, 0
    %p301 = por %p299, %p300
    %p302 = scmp.ne.s32.totalorder %s288, %s289
    %p303 = scmp.eq.s32.totalorder %s24, 1
    %p304 = por %p302, %p303
    %p306 = scmp.ne.s32.totalorder %s289, %s305
    %p307 = scmp.eq.s32.totalorder %s24, 0
    %p308 = por %p306, %p307
    %p309 = scmp.le.s32.totalorder 1, %s18
    %p310 = scmp.lt.s32.totalorder %s18, 3
    %p311 = pnand %p309, %p310
    %p312 = pneg %p311
    // Predicated region
    $region9: #{attention_block.1} parent=5 // pred_check
      _
    $region10: #{attention_block.1} parent=5 // pred_check_branch
      %314 = sbr.rel (%p311) target = $region12
    $region11: #{attention_block.1} parent=5 // pred_region
      %s315 = ssub.s32 %s18, 1
      // Predicated region
      $region13: #{attention_block.1} parent=11 // pred_check
        %p316 = pneg %p65
      $region14: #{attention_block.1} parent=11 // pred_check_branch
        %318 = sbr.rel (%p316) target = $region16
      $region15: #{attention_block.1} parent=11 // pred_region
        _
      $region16: #{attention_block.1} parent=11 // pred_fallthru
        _
      // Predicated region
      $region17: #{attention_block.1} parent=11 // pred_check
        %p319 = pneg %p86
      $region18: #{attention_block.1} parent=11 // pred_check_branch
        %321 = sbr.rel (%p319) target = $region20
      $region19: #{attention_block.1} parent=11 // pred_region
        _
      $region20: #{attention_block.1} parent=11 // pred_fallthru
        _
      // Predicated region
      $region21: #{attention_block.1} parent=11 // pred_check
        %p322 = pneg %p107
      $region22: #{attention_block.1} parent=11 // pred_check_branch
        %324 = sbr.rel (%p322) target = $region24
      $region23: #{attention_block.1} parent=11 // pred_region
        _
      $region24: #{attention_block.1} parent=11 // pred_fallthru
        _
      // Predicated region
      $region25: #{attention_block.1} parent=11 // pred_check
        %p325 = pneg %p128
      $region26: #{attention_block.1} parent=11 // pred_check_branch
        %327 = sbr.rel (%p325) target = $region28
      $region27: #{attention_block.1} parent=11 // pred_region
        _
      $region28: #{attention_block.1} parent=11 // pred_fallthru
        _
      // Predicated region
      $region29: #{attention_block.1} parent=11 // pred_check
        %p328 = pneg %p149
      $region30: #{attention_block.1} parent=11 // pred_check_branch
        %330 = sbr.rel (%p328) target = $region32
      $region31: #{attention_block.1} parent=11 // pred_region
        _
      $region32: #{attention_block.1} parent=11 // pred_fallthru
        _
      // Predicated region
      $region33: #{attention_block.1} parent=11 // pred_check
        %p331 = pneg %p170
      $region34: #{attention_block.1} parent=11 // pred_check_branch
        %333 = sbr.rel (%p331) target = $region36
      $region35: #{attention_block.1} parent=11 // pred_region
        _
      $region36: #{attention_block.1} parent=11 // pred_fallthru
        _
      // Predicated region
      $region37: #{attention_block.1} parent=11 // pred_check
        %p334 = pneg %p191
      $region38: #{attention_block.1} parent=11 // pred_check_branch
        %336 = sbr.rel (%p334) target = $region40
      $region39: #{attention_block.1} parent=11 // pred_region
        _
      $region40: #{attention_block.1} parent=11 // pred_fallthru
        _
      // Predicated region
      $region41: #{attention_block.1} parent=11 // pred_check
        %p337 = pneg %p212
      $region42: #{attention_block.1} parent=11 // pred_check_branch
        %339 = sbr.rel (%p337) target = $region44
      $region43: #{attention_block.1} parent=11 // pred_region
        _
      $region44: #{attention_block.1} parent=11 // pred_fallthru
        _
      // Predicated region
      $region45: #{attention_block.1} parent=11 // pred_check
        %p340 = pneg %p233
      $region46: #{attention_block.1} parent=11 // pred_check_branch
        %342 = sbr.rel (%p340) target = $region48
      $region47: #{attention_block.1} parent=11 // pred_region
        _
      $region48: #{attention_block.1} parent=11 // pred_fallthru
        _
      // Predicated region
      $region49: #{attention_block.1} parent=11 // pred_check
        %p343 = pneg %p254
      $region50: #{attention_block.1} parent=11 // pred_check_branch
        %345 = sbr.rel (%p343) target = $region52
      $region51: #{attention_block.1} parent=11 // pred_region
        _
      $region52: #{attention_block.1} parent=11 // pred_fallthru
        _
      // Predicated region
      $region53: #{attention_block.1} parent=11 // pred_check
        %p346 = pneg %p275
      $region54: #{attention_block.1} parent=11 // pred_check_branch
        %348 = sbr.rel (%p346) target = $region56
      $region55: #{attention_block.1} parent=11 // pred_region
        _
      $region56: #{attention_block.1} parent=11 // pred_fallthru
        _
    $region12: #{attention_block.1} parent=5 // pred_fallthru
      _
    %p349 = scmp.lt.s32.totalorder %s18, 2
    // Predicated region
    $region57: #{attention_block.1} parent=5 // pred_check
      %p350 = pneg %p349
    $region58: #{attention_block.1} parent=5 // pred_check_branch
      %352 = sbr.rel (%p350) target = $region60
    $region59: #{attention_block.1} parent=5 // pred_region
      // Predicated region
      $region61: #{attention_block.1} parent=59 // pred_check
        %p353 = pneg %p38
      $region62: #{attention_block.1} parent=59 // pred_check_branch
        %355 = sbr.rel (%p353) target = $region64
      $region63: #{attention_block.1} parent=59 // pred_region
        %p356 = scmp.lt.s32.totalorder %s18, 1
        %s357 = scalar_select %p356, %s18, 1
        %s358 = smul.addr %s357, 32
        %s359 = smul.addr %s358, 8
        %s360 = scalar_lea.vmem %s0, %s359
      $region64: #{attention_block.1} parent=59 // pred_fallthru
        _
    $region60: #{attention_block.1} parent=5 // pred_fallthru
      _
    %p361 = scmp.le.s32.totalorder 1, %s18
    %p362 = scmp.lt.s32.totalorder %s18, 3
    %p363 = pnand %p361, %p362
    %p364 = pneg %p363
    // Predicated region
    $region65: #{attention_block.1} parent=5 // pred_check
      _
    $region66: #{attention_block.1} parent=5 // pred_check_branch
      %366 = sbr.rel (%p363) target = $region68
    $region67: #{attention_block.1} parent=5 // pred_region
      %s367 = ssub.s32 %s18, 1
      %p368 = scmp.lt.s32.totalorder %s23, 1
      %s369 = scalar_select %p368, %s23, 1
      %s370 = smul.addr %s369, 32
      %s371 = smul.addr %s370, 8
      %s372 = scalar_lea.vmem %s0, %s371
      %p373 = pneg %p44
      %p374 = pneg %p41
      %p375 = pneg %p65
      %p376 = pneg %p62
      %p377 = pneg %p86
      %p378 = pneg %p83
      %p379 = pneg %p107
      %p380 = pneg %p104
      %p381 = pneg %p128
      %p382 = pneg %p125
      %p383 = pneg %p149
      %p384 = pneg %p146
      %p385 = pneg %p170
      %p386 = pneg %p167
      %p387 = pneg %p191
      %p388 = pneg %p188
      %p389 = pneg %p212
      %p390 = pneg %p209
      %p391 = pneg %p233
      %p392 = pneg %p230
      %p393 = pneg %p254
      %p394 = pneg %p251
      %p395 = pneg %p275
      %p396 = pneg %p272
      %p397 = pneg %p301
      %p398 = pneg %p298
      %p399 = scmp.lt.s32.totalorder %s23, 1
      %s400 = scalar_select %p399, %s23, 1
      %s401 = smul.addr %s400, 32
      %s402 = smul.addr %s401, 8
      %s403 = scalar_lea.vmem %s12, %s402
      %p404 = scmp.lt.s32.totalorder %s23, 1
      %s405 = scalar_select %p404, %s23, 1
      %s406 = smul.addr %s405, 32
      %s407 = smul.addr %s406, 8
      %s408 = scalar_lea.vmem %s0, %s407
      %p409 = scmp.lt.s32.totalorder %s23, 1
      %s410 = scalar_select %p409, %s23, 1
      %s411 = smul.addr %s410, 32
      %s412 = smul.addr %s411, 8
      %s413 = scalar_lea.vmem %s12, %s412
      %v414 = vld [vmem:[%s408] sm:$0xff]
      %v415 = vld [vmem:[%s408 + $0x8] sm:$0xff]
      %v416 = vld [vmem:[%s408 + $0x10] sm:$0xff]
      %v417 = vld [vmem:[%s408 + $0x18] sm:$0xff]
      %v418 = vld [vmem:[%s408 + $0x20] sm:$0xff]
      %v419 = vld [vmem:[%s408 + $0x28] sm:$0xff]
      %v420 = vld [vmem:[%s408 + $0x30] sm:$0xff]
      %v421 = vld [vmem:[%s408 + $0x38] sm:$0xff]
      %v422 = vld [vmem:[%s408 + $0x40] sm:$0xff]
      %v423 = vld [vmem:[%s408 + $0x48] sm:$0xff]
      %v424 = vld [vmem:[%s408 + $0x50] sm:$0xff]
      %v425 = vld [vmem:[%s408 + $0x58] sm:$0xff]
      %v426 = vld [vmem:[%s408 + $0x60] sm:$0xff]
      %v427 = vld [vmem:[%s408 + $0x68] sm:$0xff]
      %v428 = vld [vmem:[%s408 + $0x70] sm:$0xff]
      %v429 = vld [vmem:[%s408 + $0x78] sm:$0xff]
      %v430 = vld [vmem:[%s408 + $0x80] sm:$0xff]
      %v431 = vld [vmem:[%s408 + $0x88] sm:$0xff]
      %v432 = vld [vmem:[%s408 + $0x90] sm:$0xff]
      %v433 = vld [vmem:[%s408 + $0x98] sm:$0xff]
      %v434 = vld [vmem:[%s408 + $0xa0] sm:$0xff]
      %v435 = vld [vmem:[%s408 + $0xa8] sm:$0xff]
      %v436 = vld [vmem:[%s408 + $0xb0] sm:$0xff]
      %v437 = vld [vmem:[%s408 + $0xb8] sm:$0xff]
      %v438 = vld [vmem:[%s408 + $0xc0] sm:$0xff]
      %v439 = vld [vmem:[%s408 + $0xc8] sm:$0xff]
      %v440 = vld [vmem:[%s408 + $0xd0] sm:$0xff]
      %v441 = vld [vmem:[%s408 + $0xd8] sm:$0xff]
      %v442 = vld [vmem:[%s408 + $0xe0] sm:$0xff]
      %v443 = vld [vmem:[%s408 + $0xe8] sm:$0xff]
      %v444 = vld [vmem:[%s408 + $0xf0] sm:$0xff]
      %v445 = vld [vmem:[%s408 + $0xf8] sm:$0xff]
      %v446 = vadd.f32 %v414, %v415
      %447 = vadd.xlane.f32.xlu0 %v446
      %v448 = vpop.xlane.xlu0 %447
      %v449 = vadd.f32 %v416, %v417
      %450 = vadd.xlane.f32.xlu0 %v449
      %v451 = vpop.xlane.xlu0 %450
      %v452 = vadd.f32 %v418, %v419
      %453 = vadd.xlane.f32.xlu0 %v452
      %v454 = vpop.xlane.xlu0 %453
      %v455 = vadd.f32 %v420, %v421
      %456 = vadd.xlane.f32.xlu0 %v455
      %v457 = vpop.xlane.xlu0 %456
      %v458 = vadd.f32 %v422, %v423
      %459 = vadd.xlane.f32.xlu0 %v458
      %v460 = vpop.xlane.xlu0 %459
      %v461 = vadd.f32 %v424, %v425
      %462 = vadd.xlane.f32.xlu0 %v461
      %v463 = vpop.xlane.xlu0 %462
      %v464 = vadd.f32 %v426, %v427
      %465 = vadd.xlane.f32.xlu0 %v464
      %v466 = vpop.xlane.xlu0 %465
      %v467 = vadd.f32 %v428, %v429
      %468 = vadd.xlane.f32.xlu0 %v467
      %v469 = vpop.xlane.xlu0 %468
      %v470 = vadd.f32 %v430, %v431
      %471 = vadd.xlane.f32.xlu0 %v470
      %v472 = vpop.xlane.xlu0 %471
      %v473 = vadd.f32 %v432, %v433
      %474 = vadd.xlane.f32.xlu0 %v473
      %v475 = vpop.xlane.xlu0 %474
      %v476 = vadd.f32 %v434, %v435
      %477 = vadd.xlane.f32.xlu0 %v476
      %v478 = vpop.xlane.xlu0 %477
      %v479 = vadd.f32 %v436, %v437
      %480 = vadd.xlane.f32.xlu0 %v479
      %v481 = vpop.xlane.xlu0 %480
      %v482 = vadd.f32 %v438, %v439
      %483 = vadd.xlane.f32.xlu0 %v482
      %v484 = vpop.xlane.xlu0 %483
      %v485 = vadd.f32 %v440, %v441
      %486 = vadd.xlane.f32.xlu0 %v485
      %v487 = vpop.xlane.xlu0 %486
      %v488 = vadd.f32 %v442, %v443
      %489 = vadd.xlane.f32.xlu0 %v488
      %v490 = vpop.xlane.xlu0 %489
      %v491 = vadd.f32 %v444, %v445
      %492 = vadd.xlane.f32.xlu0 %v491
      %v493 = vpop.xlane.xlu0 %492
      %v494 = vld [vmem:[%s1] sm:$0xff]
      %v495 = vld [vmem:[%s1 + $0x8] sm:$0xff]
      %v496 = vld [vmem:[%s1 + $0x10] sm:$0xff]
      %v497 = vld [vmem:[%s1 + $0x18] sm:$0xff]
      %v498 = vld [vmem:[%s1 + $0x20] sm:$0xff]
      %v499 = vld [vmem:[%s1 + $0x28] sm:$0xff]
      %v500 = vld [vmem:[%s1 + $0x30] sm:$0xff]
      %v501 = vld [vmem:[%s1 + $0x38] sm:$0xff]
      %v502 = vld [vmem:[%s1 + $0x40] sm:$0xff]
      %v503 = vld [vmem:[%s1 + $0x48] sm:$0xff]
      %v504 = vld [vmem:[%s1 + $0x50] sm:$0xff]
      %v505 = vld [vmem:[%s1 + $0x58] sm:$0xff]
      %v506 = vld [vmem:[%s1 + $0x60] sm:$0xff]
      %v507 = vld [vmem:[%s1 + $0x68] sm:$0xff]
      %v508 = vld [vmem:[%s1 + $0x70] sm:$0xff]
      %v509 = vld [vmem:[%s1 + $0x78] sm:$0xff]
      %510 = vmatpush.msra.mxu0 %v493
      %511 = vmatpush.msra.mxu0 %v490
      %512 = vmatpush.msra.mxu0 %v487
      %513 = vmatpush.msra.mxu0 %v484
      %514 = vmatpush.msra.mxu0 %v481
      %515 = vmatpush.msra.mxu0 %v478
      %516 = vmatpush.msra.mxu0 %v475
      %517 = vmatpush.msra.mxu0 %v472
      %518 = vmatpush.msra.mxu0 %v469
      %519 = vmatpush.msra.mxu0 %v466
      %520 = vmatpush.msra.mxu0 %v463
      %521 = vmatpush.msra.mxu0 %v460
      %522 = vmatpush.msra.mxu0 %v457
      %523 = vmatpush.msra.mxu0 %v454
      %524 = vmatpush.msra.mxu0 %v451
      %525 = vmatpush.msra.mxu0 %v448
      %526 = vmatmul.f32.gmra.mxu0 %v494
      %v527 = vpop.f32.mrf.mxu0
      %v528 = vadd.f32 0.0, %v527
      %529 = vmatmul.f32.gmra.mxu0 %v495
      %v530 = vpop.f32.mrf.mxu0
      %v531 = vadd.f32 0.0, %v530
      %532 = vmatmul.f32.gmra.mxu0 %v496
      %v533 = vpop.f32.mrf.mxu0
      %v534 = vadd.f32 0.0, %v533
      %535 = vmatmul.f32.gmra.mxu0 %v497
      %v536 = vpop.f32.mrf.mxu0
      %v537 = vadd.f32 0.0, %v536
      %538 = vmatmul.f32.gmra.mxu0 %v498
      %v539 = vpop.f32.mrf.mxu0
      %v540 = vadd.f32 0.0, %v539
      %541 = vmatmul.f32.gmra.mxu0 %v499
      %v542 = vpop.f32.mrf.mxu0
      %v543 = vadd.f32 0.0, %v542
      %544 = vmatmul.f32.gmra.mxu0 %v500
      %v545 = vpop.f32.mrf.mxu0
      %v546 = vadd.f32 0.0, %v545
      %547 = vmatmul.f32.gmra.mxu0 %v501
      %v548 = vpop.f32.mrf.mxu0
      %v549 = vadd.f32 0.0, %v548
      %550 = vmatmul.f32.gmra.mxu0 %v502
      %v551 = vpop.f32.mrf.mxu0
      %v552 = vadd.f32 0.0, %v551
      %553 = vmatmul.f32.gmra.mxu0 %v503
      %v554 = vpop.f32.mrf.mxu0
      %v555 = vadd.f32 0.0, %v554
      %556 = vmatmul.f32.gmra.mxu0 %v504
      %v557 = vpop.f32.mrf.mxu0
      %v558 = vadd.f32 0.0, %v557
      %559 = vmatmul.f32.gmra.mxu0 %v505
      %v560 = vpop.f32.mrf.mxu0
      %v561 = vadd.f32 0.0, %v560
      %562 = vmatmul.f32.gmra.mxu0 %v506
      %v563 = vpop.f32.mrf.mxu0
      %v564 = vadd.f32 0.0, %v563
      %565 = vmatmul.f32.gmra.mxu0 %v507
      %v566 = vpop.f32.mrf.mxu0
      %v567 = vadd.f32 0.0, %v566
      %568 = vmatmul.f32.gmra.mxu0 %v508
      %v569 = vpop.f32.mrf.mxu0
      %v570 = vadd.f32 0.0, %v569
      %571 = vmatmul.f32.gmra.mxu0 %v509
      %v572 = vpop.f32.mrf.mxu0
      %v573 = vadd.f32 0.0, %v572
      %574 = vdwg.mxu0
      %v575 = vmul.f32 %v528, 0.0009765625
      %v576 = vmul.f32 %v531, 0.0009765625
      %v577 = vmul.f32 %v534, 0.0009765625
      %v578 = vmul.f32 %v537, 0.0009765625
      %v579 = vmul.f32 %v540, 0.0009765625
      %v580 = vmul.f32 %v543, 0.0009765625
      %v581 = vmul.f32 %v546, 0.0009765625
      %v582 = vmul.f32 %v549, 0.0009765625
      %v583 = vmul.f32 %v552, 0.0009765625
      %v584 = vmul.f32 %v555, 0.0009765625
      %v585 = vmul.f32 %v558, 0.0009765625
      %v586 = vmul.f32 %v561, 0.0009765625
      %v587 = vmul.f32 %v564, 0.0009765625
      %v588 = vmul.f32 %v567, 0.0009765625
      %v589 = vmul.f32 %v570, 0.0009765625
      %v590 = vmul.f32 %v573, 0.0009765625
      %592 = vset.pattern.permute.xlu0 0
      %593 = vperm.xlu0 %592, %v575
      %v594 = vpop.permute.xlu0 %593
      %597 = vset.pattern.permute.xlu0 0
      %598 = vperm.xlu0 %597, %v576
      %v599 = vpop.permute.xlu0 %598
      %602 = vset.pattern.permute.xlu0 0
      %603 = vperm.xlu0 %602, %v577
      %v604 = vpop.permute.xlu0 %603
      %607 = vset.pattern.permute.xlu0 0
      %608 = vperm.xlu0 %607, %v578
      %v609 = vpop.permute.xlu0 %608
      %612 = vset.pattern.permute.xlu0 0
      %613 = vperm.xlu0 %612, %v579
      %v614 = vpop.permute.xlu0 %613
      %617 = vset.pattern.permute.xlu0 0
      %618 = vperm.xlu0 %617, %v580
      %v619 = vpop.permute.xlu0 %618
      %622 = vset.pattern.permute.xlu0 0
      %623 = vperm.xlu0 %622, %v581
      %v624 = vpop.permute.xlu0 %623
      %627 = vset.pattern.permute.xlu0 0
      %628 = vperm.xlu0 %627, %v582
      %v629 = vpop.permute.xlu0 %628
      %632 = vset.pattern.permute.xlu0 0
      %633 = vperm.xlu0 %632, %v583
      %v634 = vpop.permute.xlu0 %633
      %637 = vset.pattern.permute.xlu0 0
      %638 = vperm.xlu0 %637, %v584
      %v639 = vpop.permute.xlu0 %638
      %642 = vset.pattern.permute.xlu0 0
      %643 = vperm.xlu0 %642, %v585
      %v644 = vpop.permute.xlu0 %643
      %647 = vset.pattern.permute.xlu0 0
      %648 = vperm.xlu0 %647, %v586
      %v649 = vpop.permute.xlu0 %648
      %652 = vset.pattern.permute.xlu0 0
      %653 = vperm.xlu0 %652, %v587
      %v654 = vpop.permute.xlu0 %653
      %657 = vset.pattern.permute.xlu0 0
      %658 = vperm.xlu0 %657, %v588
      %v659 = vpop.permute.xlu0 %658
      %662 = vset.pattern.permute.xlu0 0
      %663 = vperm.xlu0 %662, %v589
      %v664 = vpop.permute.xlu0 %663
      %667 = vset.pattern.permute.xlu0 0
      %668 = vperm.xlu0 %667, %v590
      %v669 = vpop.permute.xlu0 %668
      %v671 = vsub.f32 %v414, %v594
      %v672 = vsub.f32 %v415, %v594
      %v673 = vsub.f32 %v416, %v599
      %v674 = vsub.f32 %v417, %v599
      %v675 = vsub.f32 %v418, %v604
      %v676 = vsub.f32 %v419, %v604
      %v677 = vsub.f32 %v420, %v609
      %v678 = vsub.f32 %v421, %v609
      %v679 = vsub.f32 %v422, %v614
      %v680 = vsub.f32 %v423, %v614
      %v681 = vsub.f32 %v424, %v619
      %v682 = vsub.f32 %v425, %v619
      %v683 = vsub.f32 %v426, %v624
      %v684 = vsub.f32 %v427, %v624
      %v685 = vsub.f32 %v428, %v629
      %v686 = vsub.f32 %v429, %v629
      %v687 = vsub.f32 %v430, %v634
      %v688 = vsub.f32 %v431, %v634
      %v689 = vsub.f32 %v432, %v639
      %v690 = vsub.f32 %v433, %v639
      %v691 = vsub.f32 %v434, %v644
      %v692 = vsub.f32 %v435, %v644
      %v693 = vsub.f32 %v436, %v649
      %v694 = vsub.f32 %v437, %v649
      %v695 = vsub.f32 %v438, %v654
      %v696 = vsub.f32 %v439, %v654
      %v697 = vsub.f32 %v440, %v659
      %v698 = vsub.f32 %v441, %v659
      %v699 = vsub.f32 %v442, %v664
      %v700 = vsub.f32 %v443, %v664
      %v701 = vsub.f32 %v444, %v669
      %v702 = vsub.f32 %v445, %v669
      %v703 = vmul.f32 %v671, %v671
      %v704 = vmul.f32 %v672, %v672
      %v705 = vmul.f32 %v673, %v673
      %v706 = vmul.f32 %v674, %v674
      %v707 = vmul.f32 %v675, %v675
      %v708 = vmul.f32 %v676, %v676
      %v709 = vmul.f32 %v677, %v677
      %v710 = vmul.f32 %v678, %v678
      %v711 = vmul.f32 %v679, %v679
      %v712 = vmul.f32 %v680, %v680
      %v713 = vmul.f32 %v681, %v681
      %v714 = vmul.f32 %v682, %v682
      %v715 = vmul.f32 %v683, %v683
      %v716 = vmul.f32 %v684, %v684
      %v717 = vmul.f32 %v685, %v685
      %v718 = vmul.f32 %v686, %v686
      %v719 = vmul.f32 %v687, %v687
      %v720 = vmul.f32 %v688, %v688
      %v721 = vmul.f32 %v689, %v689
      %v722 = vmul.f32 %v690, %v690
      %v723 = vmul.f32 %v691, %v691
      %v724 = vmul.f32 %v692, %v692
      %v725 = vmul.f32 %v693, %v693
      %v726 = vmul.f32 %v694, %v694
      %v727 = vmul.f32 %v695, %v695
      %v728 = vmul.f32 %v696, %v696
      %v729 = vmul.f32 %v697, %v697
      %v730 = vmul.f32 %v698, %v698
      %v731 = vmul.f32 %v699, %v699
      %v732 = vmul.f32 %v700, %v700
      %v733 = vmul.f32 %v701, %v701
      %v734 = vmul.f32 %v702, %v702
      %v735 = vadd.f32 %v703, %v704
      %736 = vadd.xlane.f32.xlu0 %v735
      %v737 = vpop.xlane.xlu0 %736
      %v738 = vadd.f32 %v705, %v706
      %739 = vadd.xlane.f32.xlu0 %v738
      %v740 = vpop.xlane.xlu0 %739
      %v741 = vadd.f32 %v707, %v708
      %742 = vadd.xlane.f32.xlu0 %v741
      %v743 = vpop.xlane.xlu0 %742
      %v744 = vadd.f32 %v709, %v710
      %745 = vadd.xlane.f32.xlu0 %v744
      %v746 = vpop.xlane.xlu0 %745
      %v747 = vadd.f32 %v711, %v712
      %748 = vadd.xlane.f32.xlu0 %v747
      %v749 = vpop.xlane.xlu0 %748
      %v750 = vadd.f32 %v713, %v714
      %751 = vadd.xlane.f32.xlu0 %v750
      %v752 = vpop.xlane.xlu0 %751
      %v753 = vadd.f32 %v715, %v716
      %754 = vadd.xlane.f32.xlu0 %v753
      %v755 = vpop.xlane.xlu0 %754
      %v756 = vadd.f32 %v717, %v718
      %757 = vadd.xlane.f32.xlu0 %v756
      %v758 = vpop.xlane.xlu0 %757
      %v759 = vadd.f32 %v719, %v720
      %760 = vadd.xlane.f32.xlu0 %v759
      %v761 = vpop.xlane.xlu0 %760
      %v762 = vadd.f32 %v721, %v722
      %763 = vadd.xlane.f32.xlu0 %v762
      %v764 = vpop.xlane.xlu0 %763
      %v765 = vadd.f32 %v723, %v724
      %766 = vadd.xlane.f32.xlu0 %v765
      %v767 = vpop.xlane.xlu0 %766
      %v768 = vadd.f32 %v725, %v726
      %769 = vadd.xlane.f32.xlu0 %v768
      %v770 = vpop.xlane.xlu0 %769
      %v771 = vadd.f32 %v727, %v728
      %772 = vadd.xlane.f32.xlu0 %v771
      %v773 = vpop.xlane.xlu0 %772
      %v774 = vadd.f32 %v729, %v730
      %775 = vadd.xlane.f32.xlu0 %v774
      %v776 = vpop.xlane.xlu0 %775
      %v777 = vadd.f32 %v731, %v732
      %778 = vadd.xlane.f32.xlu0 %v777
      %v779 = vpop.xlane.xlu0 %778
      %v780 = vadd.f32 %v733, %v734
      %781 = vadd.xlane.f32.xlu0 %v780
      %v782 = vpop.xlane.xlu0 %781
      %783 = vmatpush.msra.mxu0 %v782
      %784 = vmatpush.msra.mxu0 %v779
      %785 = vmatpush.msra.mxu0 %v776
      %786 = vmatpush.msra.mxu0 %v773
      %787 = vmatpush.msra.mxu0 %v770
      %788 = vmatpush.msra.mxu0 %v767
      %789 = vmatpush.msra.mxu0 %v764
      %790 = vmatpush.msra.mxu0 %v761
      %791 = vmatpush.msra.mxu0 %v758
      %792 = vmatpush.msra.mxu0 %v755
      %793 = vmatpush.msra.mxu0 %v752
      %794 = vmatpush.msra.mxu0 %v749
      %795 = vmatpush.msra.mxu0 %v746
      %796 = vmatpush.msra.mxu0 %v743
      %797 = vmatpush.msra.mxu0 %v740
      %798 = vmatpush.msra.mxu0 %v737
      %799 = vmatmul.f32.gmra.mxu0 %v494
      %v800 = vpop.f32.mrf.mxu0
      %v801 = vadd.f32 0.0, %v800
      %802 = vmatmul.f32.gmra.mxu0 %v495
      %v803 = vpop.f32.mrf.mxu0
      %v804 = vadd.f32 0.0, %v803
      %805 = vmatmul.f32.gmra.mxu0 %v496
      %v806 = vpop.f32.mrf.mxu0
      %v807 = vadd.f32 0.0, %v806
      %808 = vmatmul.f32.gmra.mxu0 %v497
      %v809 = vpop.f32.mrf.mxu0
      %v810 = vadd.f32 0.0, %v809
      %811 = vmatmul.f32.gmra.mxu0 %v498
      %v812 = vpop.f32.mrf.mxu0
      %v813 = vadd.f32 0.0, %v812
      %814 = vmatmul.f32.gmra.mxu0 %v499
      %v815 = vpop.f32.mrf.mxu0
      %v816 = vadd.f32 0.0, %v815
      %817 = vmatmul.f32.gmra.mxu0 %v500
      %v818 = vpop.f32.mrf.mxu0
      %v819 = vadd.f32 0.0, %v818
      %820 = vmatmul.f32.gmra.mxu0 %v501
      %v821 = vpop.f32.mrf.mxu0
      %v822 = vadd.f32 0.0, %v821
      %823 = vmatmul.f32.gmra.mxu0 %v502
      %v824 = vpop.f32.mrf.mxu0
      %v825 = vadd.f32 0.0, %v824
      %826 = vmatmul.f32.gmra.mxu0 %v503
      %v827 = vpop.f32.mrf.mxu0
      %v828 = vadd.f32 0.0, %v827
      %829 = vmatmul.f32.gmra.mxu0 %v504
      %v830 = vpop.f32.mrf.mxu0
      %v831 = vadd.f32 0.0, %v830
      %832 = vmatmul.f32.gmra.mxu0 %v505
      %v833 = vpop.f32.mrf.mxu0
      %v834 = vadd.f32 0.0, %v833
      %835 = vmatmul.f32.gmra.mxu0 %v506
      %v836 = vpop.f32.mrf.mxu0
      %v837 = vadd.f32 0.0, %v836
      %838 = vmatmul.f32.gmra.mxu0 %v507
      %v839 = vpop.f32.mrf.mxu0
      %v840 = vadd.f32 0.0, %v839
      %841 = vmatmul.f32.gmra.mxu0 %v508
      %v842 = vpop.f32.mrf.mxu0
      %v843 = vadd.f32 0.0, %v842
      %844 = vmatmul.f32.gmra.mxu0 %v509
      %v845 = vpop.f32.mrf.mxu0
      %v846 = vadd.f32 0.0, %v845
      %847 = vdwg.mxu0
      %v848 = vmul.f32 %v801, 0.0009765625
      %v849 = vmul.f32 %v804, 0.0009765625
      %v850 = vmul.f32 %v807, 0.0009765625
      %v851 = vmul.f32 %v810, 0.0009765625
      %v852 = vmul.f32 %v813, 0.0009765625
      %v853 = vmul.f32 %v816, 0.0009765625
      %v854 = vmul.f32 %v819, 0.0009765625
      %v855 = vmul.f32 %v822, 0.0009765625
      %v856 = vmul.f32 %v825, 0.0009765625
      %v857 = vmul.f32 %v828, 0.0009765625
      %v858 = vmul.f32 %v831, 0.0009765625
      %v859 = vmul.f32 %v834, 0.0009765625
      %v860 = vmul.f32 %v837, 0.0009765625
      %v861 = vmul.f32 %v840, 0.0009765625
      %v862 = vmul.f32 %v843, 0.0009765625
      %v863 = vmul.f32 %v846, 0.0009765625
      %v864 = vadd.f32 %v848, 1e-05
      %v865 = vadd.f32 %v849, 1e-05
      %v866 = vadd.f32 %v850, 1e-05
      %v867 = vadd.f32 %v851, 1e-05
      %v868 = vadd.f32 %v852, 1e-05
      %v869 = vadd.f32 %v853, 1e-05
      %v870 = vadd.f32 %v854, 1e-05
      %v871 = vadd.f32 %v855, 1e-05
      %v872 = vadd.f32 %v856, 1e-05
      %v873 = vadd.f32 %v857, 1e-05
      %v874 = vadd.f32 %v858, 1e-05
      %v875 = vadd.f32 %v859, 1e-05
      %v876 = vadd.f32 %v860, 1e-05
      %v877 = vadd.f32 %v861, 1e-05
      %v878 = vadd.f32 %v862, 1e-05
      %v879 = vadd.f32 %v863, 1e-05
      %v880 = vrsqrt.pop %v864
      %v881 = vmul.f32 %v880, %v864
      %v882 = vmul.f32 %v881, %v880
      %v883 = vmul.f32 0.5, %v882
      %v884 = vsub.f32 1.5, %v883
      %v885 = vmul.f32 %v880, %v884
      %vm886 = vweird.f32 %v864
      %vm887 = vweird.f32 %v880
      %vm888 = vmor %vm886, %vm887
      %v889 = vsel %vm888, %v880, %v885
      %v890 = vrsqrt.pop %v865
      %v891 = vmul.f32 %v890, %v865
      %v892 = vmul.f32 %v891, %v890
      %v893 = vmul.f32 0.5, %v892
      %v894 = vsub.f32 1.5, %v893
      %v895 = vmul.f32 %v890, %v894
      %vm896 = vweird.f32 %v865
      %vm897 = vweird.f32 %v890
      %vm898 = vmor %vm896, %vm897
      %v899 = vsel %vm898, %v890, %v895
      %v900 = vrsqrt.pop %v866
      %v901 = vmul.f32 %v900, %v866
      %v902 = vmul.f32 %v901, %v900
      %v903 = vmul.f32 0.5, %v902
      %v904 = vsub.f32 1.5, %v903
      %v905 = vmul.f32 %v900, %v904
      %vm906 = vweird.f32 %v866
      %vm907 = vweird.f32 %v900
      %vm908 = vmor %vm906, %vm907
      %v909 = vsel %vm908, %v900, %v905
      %v910 = vrsqrt.pop %v867
      %v911 = vmul.f32 %v910, %v867
      %v912 = vmul.f32 %v911, %v910
      %v913 = vmul.f32 0.5, %v912
      %v914 = vsub.f32 1.5, %v913
      %v915 = vmul.f32 %v910, %v914
      %vm916 = vweird.f32 %v867
      %vm917 = vweird.f32 %v910
      %vm918 = vmor %vm916, %vm917
      %v919 = vsel %vm918, %v910, %v915
      %v920 = vrsqrt.pop %v868
      %v921 = vmul.f32 %v920, %v868
      %v922 = vmul.f32 %v921, %v920
      %v923 = vmul.f32 0.5, %v922
      %v924 = vsub.f32 1.5, %v923
      %v925 = vmul.f32 %v920, %v924
      %vm926 = vweird.f32 %v868
      %vm927 = vweird.f32 %v920
      %vm928 = vmor %vm926, %vm927
      %v929 = vsel %vm928, %v920, %v925
      %v930 = vrsqrt.pop %v869
      %v931 = vmul.f32 %v930, %v869
      %v932 = vmul.f32 %v931, %v930
      %v933 = vmul.f32 0.5, %v932
      %v934 = vsub.f32 1.5, %v933
      %v935 = vmul.f32 %v930, %v934
      %vm936 = vweird.f32 %v869
      %vm937 = vweird.f32 %v930
      %vm938 = vmor %vm936, %vm937
      %v939 = vsel %vm938, %v930, %v935
      %v940 = vrsqrt.pop %v870
      %v941 = vmul.f32 %v940, %v870
      %v942 = vmul.f32 %v941, %v940
      %v943 = vmul.f32 0.5, %v942
      %v944 = vsub.f32 1.5, %v943
      %v945 = vmul.f32 %v940, %v944
      %vm946 = vweird.f32 %v870
      %vm947 = vweird.f32 %v940
      %vm948 = vmor %vm946, %vm947
      %v949 = vsel %vm948, %v940, %v945
      %v950 = vrsqrt.pop %v871
      %v951 = vmul.f32 %v950, %v871
      %v952 = vmul.f32 %v951, %v950
      %v953 = vmul.f32 0.5, %v952
      %v954 = vsub.f32 1.5, %v953
      %v955 = vmul.f32 %v950, %v954
      %vm956 = vweird.f32 %v871
      %vm957 = vweird.f32 %v950
      %vm958 = vmor %vm956, %vm957
      %v959 = vsel %vm958, %v950, %v955
      %v960 = vrsqrt.pop %v872
      %v961 = vmul.f32 %v960, %v872
      %v962 = vmul.f32 %v961, %v960
      %v963 = vmul.f32 0.5, %v962
      %v964 = vsub.f32 1.5, %v963
      %v965 = vmul.f32 %v960, %v964
      %vm966 = vweird.f32 %v872
      %vm967 = vweird.f32 %v960
      %vm968 = vmor %vm966, %vm967
      %v969 = vsel %vm968, %v960, %v965
      %v970 = vrsqrt.pop %v873
      %v971 = vmul.f32 %v970, %v873
      %v972 = vmul.f32 %v971, %v970
      %v973 = vmul.f32 0.5, %v972
      %v974 = vsub.f32 1.5, %v973
      %v975 = vmul.f32 %v970, %v974
      %vm976 = vweird.f32 %v873
      %vm977 = vweird.f32 %v970
      %vm978 = vmor %vm976, %vm977
      %v979 = vsel %vm978, %v970, %v975
      %v980 = vrsqrt.pop %v874
      %v981 = vmul.f32 %v980, %v874
      %v982 = vmul.f32 %v981, %v980
      %v983 = vmul.f32 0.5, %v982
      %v984 = vsub.f32 1.5, %v983
      %v985 = vmul.f32 %v980, %v984
      %vm986 = vweird.f32 %v874
      %vm987 = vweird.f32 %v980
      %vm988 = vmor %vm986, %vm987
      %v989 = vsel %vm988, %v980, %v985
      %v990 = vrsqrt.pop %v875
      %v991 = vmul.f32 %v990, %v875
      %v992 = vmul.f32 %v991, %v990
      %v993 = vmul.f32 0.5, %v992
      %v994 = vsub.f32 1.5, %v993
      %v995 = vmul.f32 %v990, %v994
      %vm996 = vweird.f32 %v875
      %vm997 = vweird.f32 %v990
      %vm998 = vmor %vm996, %vm997
      %v999 = vsel %vm998, %v990, %v995
      %v1000 = vrsqrt.pop %v876
      %v1001 = vmul.f32 %v1000, %v876
      %v1002 = vmul.f32 %v1001, %v1000
      %v1003 = vmul.f32 0.5, %v1002
      %v1004 = vsub.f32 1.5, %v1003
      %v1005 = vmul.f32 %v1000, %v1004
      %vm1006 = vweird.f32 %v876
      %vm1007 = vweird.f32 %v1000
      %vm1008 = vmor %vm1006, %vm1007
      %v1009 = vsel %vm1008, %v1000, %v1005
      %v1010 = vrsqrt.pop %v877
      %v1011 = vmul.f32 %v1010, %v877
      %v1012 = vmul.f32 %v1011, %v1010
      %v1013 = vmul.f32 0.5, %v1012
      %v1014 = vsub.f32 1.5, %v1013
      %v1015 = vmul.f32 %v1010, %v1014
      %vm1016 = vweird.f32 %v877
      %vm1017 = vweird.f32 %v1010
      %vm1018 = vmor %vm1016, %vm1017
      %v1019 = vsel %vm1018, %v1010, %v1015
      %v1020 = vrsqrt.pop %v878
      %v1021 = vmul.f32 %v1020, %v878
      %v1022 = vmul.f32 %v1021, %v1020
      %v1023 = vmul.f32 0.5, %v1022
      %v1024 = vsub.f32 1.5, %v1023
      %v1025 = vmul.f32 %v1020, %v1024
      %vm1026 = vweird.f32 %v878
      %vm1027 = vweird.f32 %v1020
      %vm1028 = vmor %vm1026, %vm1027
      %v1029 = vsel %vm1028, %v1020, %v1025
      %v1030 = vrsqrt.pop %v879
      %v1031 = vmul.f32 %v1030, %v879
      %v1032 = vmul.f32 %v1031, %v1030
      %v1033 = vmul.f32 0.5, %v1032
      %v1034 = vsub.f32 1.5, %v1033
      %v1035 = vmul.f32 %v1030, %v1034
      %vm1036 = vweird.f32 %v879
      %vm1037 = vweird.f32 %v1030
      %vm1038 = vmor %vm1036, %vm1037
      %v1039 = vsel %vm1038, %v1030, %v1035
      %1041 = vset.pattern.permute.xlu0 0
      %1042 = vperm.xlu0 %1041, %v889
      %v1043 = vpop.permute.xlu0 %1042
      %1046 = vset.pattern.permute.xlu0 0
      %1047 = vperm.xlu0 %1046, %v899
      %v1048 = vpop.permute.xlu0 %1047
      %1051 = vset.pattern.permute.xlu0 0
      %1052 = vperm.xlu0 %1051, %v909
      %v1053 = vpop.permute.xlu0 %1052
      %1056 = vset.pattern.permute.xlu0 0
      %1057 = vperm.xlu0 %1056, %v919
      %v1058 = vpop.permute.xlu0 %1057
      %1061 = vset.pattern.permute.xlu0 0
      %1062 = vperm.xlu0 %1061, %v929
      %v1063 = vpop.permute.xlu0 %1062
      %1066 = vset.pattern.permute.xlu0 0
      %1067 = vperm.xlu0 %1066, %v939
      %v1068 = vpop.permute.xlu0 %1067
      %1071 = vset.pattern.permute.xlu0 0
      %1072 = vperm.xlu0 %1071, %v949
      %v1073 = vpop.permute.xlu0 %1072
      %1076 = vset.pattern.permute.xlu0 0
      %1077 = vperm.xlu0 %1076, %v959
      %v1078 = vpop.permute.xlu0 %1077
      %1081 = vset.pattern.permute.xlu0 0
      %1082 = vperm.xlu0 %1081, %v969
      %v1083 = vpop.permute.xlu0 %1082
      %1086 = vset.pattern.permute.xlu0 0
      %1087 = vperm.xlu0 %1086, %v979
      %v1088 = vpop.permute.xlu0 %1087
      %1091 = vset.pattern.permute.xlu0 0
      %1092 = vperm.xlu0 %1091, %v989
      %v1093 = vpop.permute.xlu0 %1092
      %1096 = vset.pattern.permute.xlu0 0
      %1097 = vperm.xlu0 %1096, %v999
      %v1098 = vpop.permute.xlu0 %1097
      %1101 = vset.pattern.permute.xlu0 0
      %1102 = vperm.xlu0 %1101, %v1009
      %v1103 = vpop.permute.xlu0 %1102
      %1106 = vset.pattern.permute.xlu0 0
      %1107 = vperm.xlu0 %1106, %v1019
      %v1108 = vpop.permute.xlu0 %1107
      %1111 = vset.pattern.permute.xlu0 0
      %1112 = vperm.xlu0 %1111, %v1029
      %v1113 = vpop.permute.xlu0 %1112
      %1116 = vset.pattern.permute.xlu0 0
      %1117 = vperm.xlu0 %1116, %v1039
      %v1118 = vpop.permute.xlu0 %1117
      %v1120 = vmul.f32 %v671, %v1043
      %v1121 = vmul.f32 %v672, %v1043
      %v1122 = vmul.f32 %v673, %v1048
      %v1123 = vmul.f32 %v674, %v1048
      %v1124 = vmul.f32 %v675, %v1053
      %v1125 = vmul.f32 %v676, %v1053
      %v1126 = vmul.f32 %v677, %v1058
      %v1127 = vmul.f32 %v678, %v1058
      %v1128 = vmul.f32 %v679, %v1063
      %v1129 = vmul.f32 %v680, %v1063
      %v1130 = vmul.f32 %v681, %v1068
      %v1131 = vmul.f32 %v682, %v1068
      %v1132 = vmul.f32 %v683, %v1073
      %v1133 = vmul.f32 %v684, %v1073
      %v1134 = vmul.f32 %v685, %v1078
      %v1135 = vmul.f32 %v686, %v1078
      %v1136 = vmul.f32 %v687, %v1083
      %v1137 = vmul.f32 %v688, %v1083
      %v1138 = vmul.f32 %v689, %v1088
      %v1139 = vmul.f32 %v690, %v1088
      %v1140 = vmul.f32 %v691, %v1093
      %v1141 = vmul.f32 %v692, %v1093
      %v1142 = vmul.f32 %v693, %v1098
      %v1143 = vmul.f32 %v694, %v1098
      %v1144 = vmul.f32 %v695, %v1103
      %v1145 = vmul.f32 %v696, %v1103
      %v1146 = vmul.f32 %v697, %v1108
      %v1147 = vmul.f32 %v698, %v1108
      %v1148 = vmul.f32 %v699, %v1113
      %v1149 = vmul.f32 %v700, %v1113
      %v1150 = vmul.f32 %v701, %v1118
      %v1151 = vmul.f32 %v702, %v1118
      %v1152 = vld [vmem:[%s2] sm:$0xff]
      %v1153 = vld [vmem:[%s2 + $0x8] sm:$0xff]
      %v1154 = vld [vmem:[%s2 + $0x10] sm:$0xff]
      %v1155 = vld [vmem:[%s2 + $0x18] sm:$0xff]
      %v1156 = vld [vmem:[%s2 + $0x20] sm:$0xff]
      %v1157 = vld [vmem:[%s2 + $0x28] sm:$0xff]
      %v1158 = vld [vmem:[%s2 + $0x30] sm:$0xff]
      %v1159 = vld [vmem:[%s2 + $0x38] sm:$0xff]
      %v1160 = vld [vmem:[%s2 + $0x40] sm:$0xff]
      %v1161 = vld [vmem:[%s2 + $0x48] sm:$0xff]
      %v1162 = vld [vmem:[%s2 + $0x50] sm:$0xff]
      %v1163 = vld [vmem:[%s2 + $0x58] sm:$0xff]
      %v1164 = vld [vmem:[%s2 + $0x60] sm:$0xff]
      %v1165 = vld [vmem:[%s2 + $0x68] sm:$0xff]
      %v1166 = vld [vmem:[%s2 + $0x70] sm:$0xff]
      %v1167 = vld [vmem:[%s2 + $0x78] sm:$0xff]
      %1169 = vset.pattern.permute.xlu0 0
      %1170 = vperm.xlu0 %1169, %v1152
      %v1171 = vpop.permute.xlu0 %1170
      %1174 = vset.pattern.permute.xlu0 0
      %1175 = vperm.xlu0 %1174, %v1153
      %v1176 = vpop.permute.xlu0 %1175
      %1179 = vset.pattern.permute.xlu0 0
      %1180 = vperm.xlu0 %1179, %v1154
      %v1181 = vpop.permute.xlu0 %1180
      %1184 = vset.pattern.permute.xlu0 0
      %1185 = vperm.xlu0 %1184, %v1155
      %v1186 = vpop.permute.xlu0 %1185
      %1189 = vset.pattern.permute.xlu0 0
      %1190 = vperm.xlu0 %1189, %v1156
      %v1191 = vpop.permute.xlu0 %1190
      %1194 = vset.pattern.permute.xlu0 0
      %1195 = vperm.xlu0 %1194, %v1157
      %v1196 = vpop.permute.xlu0 %1195
      %1199 = vset.pattern.permute.xlu0 0
      %1200 = vperm.xlu0 %1199, %v1158
      %v1201 = vpop.permute.xlu0 %1200
      %1204 = vset.pattern.permute.xlu0 0
      %1205 = vperm.xlu0 %1204, %v1159
      %v1206 = vpop.permute.xlu0 %1205
      %1209 = vset.pattern.permute.xlu0 0
      %1210 = vperm.xlu0 %1209, %v1160
      %v1211 = vpop.permute.xlu0 %1210
      %1214 = vset.pattern.permute.xlu0 0
      %1215 = vperm.xlu0 %1214, %v1161
      %v1216 = vpop.permute.xlu0 %1215
      %1219 = vset.pattern.permute.xlu0 0
      %1220 = vperm.xlu0 %1219, %v1162
      %v1221 = vpop.permute.xlu0 %1220
      %1224 = vset.pattern.permute.xlu0 0
      %1225 = vperm.xlu0 %1224, %v1163
      %v1226 = vpop.permute.xlu0 %1225
      %1229 = vset.pattern.permute.xlu0 0
      %1230 = vperm.xlu0 %1229, %v1164
      %v1231 = vpop.permute.xlu0 %1230
      %1234 = vset.pattern.permute.xlu0 0
      %1235 = vperm.xlu0 %1234, %v1165
      %v1236 = vpop.permute.xlu0 %1235
      %1239 = vset.pattern.permute.xlu0 0
      %1240 = vperm.xlu0 %1239, %v1166
      %v1241 = vpop.permute.xlu0 %1240
      %1244 = vset.pattern.permute.xlu0 0
      %1245 = vperm.xlu0 %1244, %v1167
      %v1246 = vpop.permute.xlu0 %1245
      %v1248 = vmul.f32 %v1120, %v1171
      %v1249 = vmul.f32 %v1121, %v1171
      %v1250 = vmul.f32 %v1122, %v1176
      %v1251 = vmul.f32 %v1123, %v1176
      %v1252 = vmul.f32 %v1124, %v1181
      %v1253 = vmul.f32 %v1125, %v1181
      %v1254 = vmul.f32 %v1126, %v1186
      %v1255 = vmul.f32 %v1127, %v1186
      %v1256 = vmul.f32 %v1128, %v1191
      %v1257 = vmul.f32 %v1129, %v1191
      %v1258 = vmul.f32 %v1130, %v1196
      %v1259 = vmul.f32 %v1131, %v1196
      %v1260 = vmul.f32 %v1132, %v1201
      %v1261 = vmul.f32 %v1133, %v1201
      %v1262 = vmul.f32 %v1134, %v1206
      %v1263 = vmul.f32 %v1135, %v1206
      %v1264 = vmul.f32 %v1136, %v1211
      %v1265 = vmul.f32 %v1137, %v1211
      %v1266 = vmul.f32 %v1138, %v1216
      %v1267 = vmul.f32 %v1139, %v1216
      %v1268 = vmul.f32 %v1140, %v1221
      %v1269 = vmul.f32 %v1141, %v1221
      %v1270 = vmul.f32 %v1142, %v1226
      %v1271 = vmul.f32 %v1143, %v1226
      %v1272 = vmul.f32 %v1144, %v1231
      %v1273 = vmul.f32 %v1145, %v1231
      %v1274 = vmul.f32 %v1146, %v1236
      %v1275 = vmul.f32 %v1147, %v1236
      %v1276 = vmul.f32 %v1148, %v1241
      %v1277 = vmul.f32 %v1149, %v1241
      %v1278 = vmul.f32 %v1150, %v1246
      %v1279 = vmul.f32 %v1151, %v1246
      %v1280 = vld [vmem:[%s3] sm:$0xff]
      %v1281 = vld [vmem:[%s3 + $0x8] sm:$0xff]
      %v1282 = vld [vmem:[%s3 + $0x10] sm:$0xff]
      %v1283 = vld [vmem:[%s3 + $0x18] sm:$0xff]
      %v1284 = vld [vmem:[%s3 + $0x20] sm:$0xff]
      %v1285 = vld [vmem:[%s3 + $0x28] sm:$0xff]
      %v1286 = vld [vmem:[%s3 + $0x30] sm:$0xff]
      %v1287 = vld [vmem:[%s3 + $0x38] sm:$0xff]
      %v1288 = vld [vmem:[%s3 + $0x40] sm:$0xff]
      %v1289 = vld [vmem:[%s3 + $0x48] sm:$0xff]
      %v1290 = vld [vmem:[%s3 + $0x50] sm:$0xff]
      %v1291 = vld [vmem:[%s3 + $0x58] sm:$0xff]
      %v1292 = vld [vmem:[%s3 + $0x60] sm:$0xff]
      %v1293 = vld [vmem:[%s3 + $0x68] sm:$0xff]
      %v1294 = vld [vmem:[%s3 + $0x70] sm:$0xff]
      %v1295 = vld [vmem:[%s3 + $0x78] sm:$0xff]
      %1297 = vset.pattern.permute.xlu0 0
      %1298 = vperm.xlu0 %1297, %v1280
      %v1299 = vpop.permute.xlu0 %1298
      %1302 = vset.pattern.permute.xlu0 0
      %1303 = vperm.xlu0 %1302, %v1281
      %v1304 = vpop.permute.xlu0 %1303
      %1307 = vset.pattern.permute.xlu0 0
      %1308 = vperm.xlu0 %1307, %v1282
      %v1309 = vpop.permute.xlu0 %1308
      %1312 = vset.pattern.permute.xlu0 0
      %1313 = vperm.xlu0 %1312, %v1283
      %v1314 = vpop.permute.xlu0 %1313
      %1317 = vset.pattern.permute.xlu0 0
      %1318 = vperm.xlu0 %1317, %v1284
      %v1319 = vpop.permute.xlu0 %1318
      %1322 = vset.pattern.permute.xlu0 0
      %1323 = vperm.xlu0 %1322, %v1285
      %v1324 = vpop.permute.xlu0 %1323
      %1327 = vset.pattern.permute.xlu0 0
      %1328 = vperm.xlu0 %1327, %v1286
      %v1329 = vpop.permute.xlu0 %1328
      %1332 = vset.pattern.permute.xlu0 0
      %1333 = vperm.xlu0 %1332, %v1287
      %v1334 = vpop.permute.xlu0 %1333
      %1337 = vset.pattern.permute.xlu0 0
      %1338 = vperm.xlu0 %1337, %v1288
      %v1339 = vpop.permute.xlu0 %1338
      %1342 = vset.pattern.permute.xlu0 0
      %1343 = vperm.xlu0 %1342, %v1289
      %v1344 = vpop.permute.xlu0 %1343
      %1347 = vset.pattern.permute.xlu0 0
      %1348 = vperm.xlu0 %1347, %v1290
      %v1349 = vpop.permute.xlu0 %1348
      %1352 = vset.pattern.permute.xlu0 0
      %1353 = vperm.xlu0 %1352, %v1291
      %v1354 = vpop.permute.xlu0 %1353
      %1357 = vset.pattern.permute.xlu0 0
      %1358 = vperm.xlu0 %1357, %v1292
      %v1359 = vpop.permute.xlu0 %1358
      %1362 = vset.pattern.permute.xlu0 0
      %1363 = vperm.xlu0 %1362, %v1293
      %v1364 = vpop.permute.xlu0 %1363
      %1367 = vset.pattern.permute.xlu0 0
      %1368 = vperm.xlu0 %1367, %v1294
      %v1369 = vpop.permute.xlu0 %1368
      %1372 = vset.pattern.permute.xlu0 0
      %1373 = vperm.xlu0 %1372, %v1295
      %v1374 = vpop.permute.xlu0 %1373
      %v1376 = vadd.f32 %v1248, %v1299
      %v1377 = vadd.f32 %v1249, %v1299
      %v1378 = vadd.f32 %v1250, %v1304
      %v1379 = vadd.f32 %v1251, %v1304
      %v1380 = vadd.f32 %v1252, %v1309
      %v1381 = vadd.f32 %v1253, %v1309
      %v1382 = vadd.f32 %v1254, %v1314
      %v1383 = vadd.f32 %v1255, %v1314
      %v1384 = vadd.f32 %v1256, %v1319
      %v1385 = vadd.f32 %v1257, %v1319
      %v1386 = vadd.f32 %v1258, %v1324
      %v1387 = vadd.f32 %v1259, %v1324
      %v1388 = vadd.f32 %v1260, %v1329
      %v1389 = vadd.f32 %v1261, %v1329
      %v1390 = vadd.f32 %v1262, %v1334
      %v1391 = vadd.f32 %v1263, %v1334
      %v1392 = vadd.f32 %v1264, %v1339
      %v1393 = vadd.f32 %v1265, %v1339
      %v1394 = vadd.f32 %v1266, %v1344
      %v1395 = vadd.f32 %v1267, %v1344
      %v1396 = vadd.f32 %v1268, %v1349
      %v1397 = vadd.f32 %v1269, %v1349
      %v1398 = vadd.f32 %v1270, %v1354
      %v1399 = vadd.f32 %v1271, %v1354
      %v1400 = vadd.f32 %v1272, %v1359
      %v1401 = vadd.f32 %v1273, %v1359
      %v1402 = vadd.f32 %v1274, %v1364
      %v1403 = vadd.f32 %v1275, %v1364
      %v1404 = vadd.f32 %v1276, %v1369
      %v1405 = vadd.f32 %v1277, %v1369
      %v1406 = vadd.f32 %v1278, %v1374
      %v1407 = vadd.f32 %v1279, %v1374
      %1408 = vxpose.xlu0.b32.start [1/16] %v1376, 128
      %1409 = vxpose.xlu0.b32.cont [2/16] %v1378, 128
      %1410 = vxpose.xlu0.b32.cont [3/16] %v1380, 128
      %1411 = vxpose.xlu0.b32.cont [4/16] %v1382, 128
      %1412 = vxpose.xlu0.b32.cont [5/16] %v1384, 128
      %1413 = vxpose.xlu0.b32.cont [6/16] %v1386, 128
      %1414 = vxpose.xlu0.b32.cont [7/16] %v1388, 128
      %1415 = vxpose.xlu0.b32.cont [8/16] %v1390, 128
      %1416 = vxpose.xlu0.b32.cont [9/16] %v1392, 128
      %1417 = vxpose.xlu0.b32.cont [10/16] %v1394, 128
      %1418 = vxpose.xlu0.b32.cont [11/16] %v1396, 128
      %1419 = vxpose.xlu0.b32.cont [12/16] %v1398, 128
      %1420 = vxpose.xlu0.b32.cont [13/16] %v1400, 128
      %1421 = vxpose.xlu0.b32.cont [14/16] %v1402, 128
      %1422 = vxpose.xlu0.b32.cont [15/16] %v1404, 128
      %1423 = vxpose.xlu0.b32.end [16/16] %v1406, 128
      %v1424 = vpop.trf.xlu0
      %v1425 = vpop.trf.xlu0
      %v1426 = vpop.trf.xlu0
      %v1427 = vpop.trf.xlu0
      %v1428 = vpop.trf.xlu0
      %v1429 = vpop.trf.xlu0
      %v1430 = vpop.trf.xlu0
      %v1431 = vpop.trf.xlu0
      %v1432 = vpop.trf.xlu0
      %v1433 = vpop.trf.xlu0
      %v1434 = vpop.trf.xlu0
      %v1435 = vpop.trf.xlu0
      %v1436 = vpop.trf.xlu0
      %v1437 = vpop.trf.xlu0
      %v1438 = vpop.trf.xlu0
      %v1439 = vpop.trf.xlu0
      %1440 = vxpose.xlu0.b32.start [1/16] %v1377, 128
      %1441 = vxpose.xlu0.b32.cont [2/16] %v1379, 128
      %1442 = vxpose.xlu0.b32.cont [3/16] %v1381, 128
      %1443 = vxpose.xlu0.b32.cont [4/16] %v1383, 128
      %1444 = vxpose.xlu0.b32.cont [5/16] %v1385, 128
      %1445 = vxpose.xlu0.b32.cont [6/16] %v1387, 128
      %1446 = vxpose.xlu0.b32.cont [7/16] %v1389, 128
      %1447 = vxpose.xlu0.b32.cont [8/16] %v1391, 128
      %1448 = vxpose.xlu0.b32.cont [9/16] %v1393, 128
      %1449 = vxpose.xlu0.b32.cont [10/16] %v1395, 128
      %1450 = vxpose.xlu0.b32.cont [11/16] %v1397, 128
      %1451 = vxpose.xlu0.b32.cont [12/16] %v1399, 128
      %1452 = vxpose.xlu0.b32.cont [13/16] %v1401, 128
      %1453 = vxpose.xlu0.b32.cont [14/16] %v1403, 128
      %1454 = vxpose.xlu0.b32.cont [15/16] %v1405, 128
      %1455 = vxpose.xlu0.b32.end [16/16] %v1407, 128
      %v1456 = vpop.trf.xlu0
      %v1457 = vpop.trf.xlu0
      %v1458 = vpop.trf.xlu0
      %v1459 = vpop.trf.xlu0
      %v1460 = vpop.trf.xlu0
      %v1461 = vpop.trf.xlu0
      %v1462 = vpop.trf.xlu0
      %v1463 = vpop.trf.xlu0
      %v1464 = vpop.trf.xlu0
      %v1465 = vpop.trf.xlu0
      %v1466 = vpop.trf.xlu0
      %v1467 = vpop.trf.xlu0
      %v1468 = vpop.trf.xlu0
      %v1469 = vpop.trf.xlu0
      %v1470 = vpop.trf.xlu0
      %v1471 = vpop.trf.xlu0
      %v1472 = vpack.c.bf16 %v1425, %v1424
      %v1473 = vpack.c.bf16 %v1427, %v1426
      %v1474 = vpack.c.bf16 %v1429, %v1428
      %v1475 = vpack.c.bf16 %v1431, %v1430
      %v1476 = vpack.c.bf16 %v1433, %v1432
      %v1477 = vpack.c.bf16 %v1435, %v1434
      %v1478 = vpack.c.bf16 %v1437, %v1436
      %v1479 = vpack.c.bf16 %v1439, %v1438
      %v1480 = vpack.c.bf16 %v1457, %v1456
      %v1481 = vpack.c.bf16 %v1459, %v1458
      %v1482 = vpack.c.bf16 %v1461, %v1460
      %v1483 = vpack.c.bf16 %v1463, %v1462
      %v1484 = vpack.c.bf16 %v1465, %v1464
      %v1485 = vpack.c.bf16 %v1467, %v1466
      %v1486 = vpack.c.bf16 %v1469, %v1468
      %v1487 = vpack.c.bf16 %v1471, %v1470
      %v1488 = vld [vmem:[%s4] sm:$0xf]
      %v1489 = vld [vmem:[%s4 + $0x4] sm:$0xf]
      %v1490 = vld [vmem:[%s4 + $0x8] sm:$0xf]
      %v1491 = vld [vmem:[%s4 + $0xc] sm:$0xf]
      %v1492 = vld [vmem:[%s4 + $0x10] sm:$0xf]
      %v1493 = vld [vmem:[%s4 + $0x14] sm:$0xf]
      %v1494 = vld [vmem:[%s4 + $0x18] sm:$0xf]
      %v1495 = vld [vmem:[%s4 + $0x1c] sm:$0xf]
      %v1496 = vld [vmem:[%s4 + $0x20] sm:$0xf]
      %v1497 = vld [vmem:[%s4 + $0x24] sm:$0xf]
      %v1498 = vld [vmem:[%s4 + $0x28] sm:$0xf]
      %v1499 = vld [vmem:[%s4 + $0x2c] sm:$0xf]
      %v1500 = vld [vmem:[%s4 + $0x30] sm:$0xf]
      %v1501 = vld [vmem:[%s4 + $0x34] sm:$0xf]
      %v1502 = vld [vmem:[%s4 + $0x38] sm:$0xf]
      %v1503 = vld [vmem:[%s4 + $0x3c] sm:$0xf]
      %v1504 = vld [vmem:[%s8] sm:$0x1]
      %v1506 = vperm.slane %v1504, 0
      %v1524 = vunpack.c.l.b16 %v1488
      %v1525 = vunpack.c.l.b16 %v1489
      %v1526 = vunpack.c.l.b16 %v1490
      %v1527 = vunpack.c.l.b16 %v1491
      %v1528 = vunpack.c.l.b16 %v1492
      %v1529 = vunpack.c.l.b16 %v1493
      %v1530 = vunpack.c.l.b16 %v1494
      %v1531 = vunpack.c.l.b16 %v1495
      %v1532 = vunpack.c.l.b16 %v1496
      %v1533 = vunpack.c.l.b16 %v1497
      %v1534 = vunpack.c.l.b16 %v1498
      %v1535 = vunpack.c.l.b16 %v1499
      %v1536 = vunpack.c.l.b16 %v1500
      %v1537 = vunpack.c.l.b16 %v1501
      %v1538 = vunpack.c.l.b16 %v1502
      %v1539 = vunpack.c.l.b16 %v1503
      %v1540 = vpack.c.b16 %v1525, %v1524
      %v1541 = vpack.c.b16 %v1527, %v1526
      %v1542 = vpack.c.b16 %v1529, %v1528
      %v1543 = vpack.c.b16 %v1531, %v1530
      %v1544 = vpack.c.b16 %v1533, %v1532
      %v1545 = vpack.c.b16 %v1535, %v1534
      %v1546 = vpack.c.b16 %v1537, %v1536
      %v1547 = vpack.c.b16 %v1539, %v1538
      %1556 = vmatpush.bf16.msra.mxu0 %v1547
      %1557 = vmatpush.bf16.msra.mxu0 %v1546
      %1558 = vmatpush.bf16.msra.mxu0 %v1545
      %1559 = vmatpush.bf16.msra.mxu0 %v1544
      %1560 = vmatpush.bf16.msra.mxu0 %v1543
      %1561 = vmatpush.bf16.msra.mxu0 %v1542
      %1562 = vmatpush.bf16.msra.mxu0 %v1541
      %1563 = vmatpush.bf16.msra.mxu0 %v1540
      %1564 = vmatmul.bf16.gmra.mxu0 %v1472
      %v1565 = vpop.f32.mrf.mxu0
      %v1566 = vadd.f32 %v1506, %v1565
      %v1567 = vpop.f32.mrf.mxu0
      %v1568 = vadd.f32 %v1506, %v1567
      %1569 = vmatmul.bf16.gmra.mxu0 %v1473
      %v1570 = vpop.f32.mrf.mxu0
      %v1571 = vadd.f32 %v1506, %v1570
      %v1572 = vpop.f32.mrf.mxu0
      %v1573 = vadd.f32 %v1506, %v1572
      %1574 = vmatmul.bf16.gmra.mxu0 %v1474
      %v1575 = vpop.f32.mrf.mxu0
      %v1576 = vadd.f32 %v1506, %v1575
      %v1577 = vpop.f32.mrf.mxu0
      %v1578 = vadd.f32 %v1506, %v1577
      %1579 = vmatmul.bf16.gmra.mxu0 %v1475
      %v1580 = vpop.f32.mrf.mxu0
      %v1581 = vadd.f32 %v1506, %v1580
      %v1582 = vpop.f32.mrf.mxu0
      %v1583 = vadd.f32 %v1506, %v1582
      %1584 = vmatmul.bf16.gmra.mxu0 %v1476
      %v1585 = vpop.f32.mrf.mxu0
      %v1586 = vadd.f32 %v1506, %v1585
      %v1587 = vpop.f32.mrf.mxu0
      %v1588 = vadd.f32 %v1506, %v1587
      %1589 = vmatmul.bf16.gmra.mxu0 %v1477
      %v1590 = vpop.f32.mrf.mxu0
      %v1591 = vadd.f32 %v1506, %v1590
      %v1592 = vpop.f32.mrf.mxu0
      %v1593 = vadd.f32 %v1506, %v1592
      %1594 = vmatmul.bf16.gmra.mxu0 %v1478
      %v1595 = vpop.f32.mrf.mxu0
      %v1596 = vadd.f32 %v1506, %v1595
      %v1597 = vpop.f32.mrf.mxu0
      %v1598 = vadd.f32 %v1506, %v1597
      %1599 = vmatmul.bf16.gmra.mxu0 %v1479
      %v1600 = vpop.f32.mrf.mxu0
      %v1601 = vadd.f32 %v1506, %v1600
      %v1602 = vpop.f32.mrf.mxu0
      %v1603 = vadd.f32 %v1506, %v1602
      %1604 = vmatmul.bf16.gmra.mxu0 %v1480
      %v1605 = vpop.f32.mrf.mxu0
      %v1606 = vadd.f32 %v1506, %v1605
      %v1607 = vpop.f32.mrf.mxu0
      %v1608 = vadd.f32 %v1506, %v1607
      %1609 = vmatmul.bf16.gmra.mxu0 %v1481
      %v1610 = vpop.f32.mrf.mxu0
      %v1611 = vadd.f32 %v1506, %v1610
      %v1612 = vpop.f32.mrf.mxu0
      %v1613 = vadd.f32 %v1506, %v1612
      %1614 = vmatmul.bf16.gmra.mxu0 %v1482
      %v1615 = vpop.f32.mrf.mxu0
      %v1616 = vadd.f32 %v1506, %v1615
      %v1617 = vpop.f32.mrf.mxu0
      %v1618 = vadd.f32 %v1506, %v1617
      %1619 = vmatmul.bf16.gmra.mxu0 %v1483
      %v1620 = vpop.f32.mrf.mxu0
      %v1621 = vadd.f32 %v1506, %v1620
      %v1622 = vpop.f32.mrf.mxu0
      %v1623 = vadd.f32 %v1506, %v1622
      %1624 = vmatmul.bf16.gmra.mxu0 %v1484
      %v1625 = vpop.f32.mrf.mxu0
      %v1626 = vadd.f32 %v1506, %v1625
      %v1627 = vpop.f32.mrf.mxu0
      %v1628 = vadd.f32 %v1506, %v1627
      %1629 = vmatmul.bf16.gmra.mxu0 %v1485
      %v1630 = vpop.f32.mrf.mxu0
      %v1631 = vadd.f32 %v1506, %v1630
      %v1632 = vpop.f32.mrf.mxu0
      %v1633 = vadd.f32 %v1506, %v1632
      %1634 = vmatmul.bf16.gmra.mxu0 %v1486
      %v1635 = vpop.f32.mrf.mxu0
      %v1636 = vadd.f32 %v1506, %v1635
      %v1637 = vpop.f32.mrf.mxu0
      %v1638 = vadd.f32 %v1506, %v1637
      %1639 = vmatmul.bf16.gmra.mxu0 %v1487
      %v1640 = vpop.f32.mrf.mxu0
      %v1641 = vadd.f32 %v1506, %v1640
      %v1642 = vpop.f32.mrf.mxu0
      %v1643 = vadd.f32 %v1506, %v1642
      %1644 = vdwg.mxu0
      %v1645 = vld [vmem:[%s5] sm:$0xf]
      %v1646 = vld [vmem:[%s5 + $0x4] sm:$0xf]
      %v1647 = vld [vmem:[%s5 + $0x8] sm:$0xf]
      %v1648 = vld [vmem:[%s5 + $0xc] sm:$0xf]
      %v1649 = vld [vmem:[%s5 + $0x10] sm:$0xf]
      %v1650 = vld [vmem:[%s5 + $0x14] sm:$0xf]
      %v1651 = vld [vmem:[%s5 + $0x18] sm:$0xf]
      %v1652 = vld [vmem:[%s5 + $0x1c] sm:$0xf]
      %v1653 = vld [vmem:[%s5 + $0x20] sm:$0xf]
      %v1654 = vld [vmem:[%s5 + $0x24] sm:$0xf]
      %v1655 = vld [vmem:[%s5 + $0x28] sm:$0xf]
      %v1656 = vld [vmem:[%s5 + $0x2c] sm:$0xf]
      %v1657 = vld [vmem:[%s5 + $0x30] sm:$0xf]
      %v1658 = vld [vmem:[%s5 + $0x34] sm:$0xf]
      %v1659 = vld [vmem:[%s5 + $0x38] sm:$0xf]
      %v1660 = vld [vmem:[%s5 + $0x3c] sm:$0xf]
      %v1661 = vld [vmem:[%s9] sm:$0x1]
      %v1663 = vperm.slane %v1661, 0
      %v1681 = vunpack.c.l.b16 %v1645
      %v1682 = vunpack.c.l.b16 %v1646
      %v1683 = vunpack.c.l.b16 %v1647
      %v1684 = vunpack.c.l.b16 %v1648
      %v1685 = vunpack.c.l.b16 %v1649
      %v1686 = vunpack.c.l.b16 %v1650
      %v1687 = vunpack.c.l.b16 %v1651
      %v1688 = vunpack.c.l.b16 %v1652
      %v1689 = vunpack.c.l.b16 %v1653
      %v1690 = vunpack.c.l.b16 %v1654
      %v1691 = vunpack.c.l.b16 %v1655
      %v1692 = vunpack.c.l.b16 %v1656
      %v1693 = vunpack.c.l.b16 %v1657
      %v1694 = vunpack.c.l.b16 %v1658
      %v1695 = vunpack.c.l.b16 %v1659
      %v1696 = vunpack.c.l.b16 %v1660
      %v1697 = vpack.c.b16 %v1682, %v1681
      %v1698 = vpack.c.b16 %v1684, %v1683
      %v1699 = vpack.c.b16 %v1686, %v1685
      %v1700 = vpack.c.b16 %v1688, %v1687
      %v1701 = vpack.c.b16 %v1690, %v1689
      %v1702 = vpack.c.b16 %v1692, %v1691
      %v1703 = vpack.c.b16 %v1694, %v1693
      %v1704 = vpack.c.b16 %v1696, %v1695
      %1713 = vmatpush.bf16.msra.mxu0 %v1704
      %1714 = vmatpush.bf16.msra.mxu0 %v1703
      %1715 = vmatpush.bf16.msra.mxu0 %v1702
      %1716 = vmatpush.bf16.msra.mxu0 %v1701
      %1717 = vmatpush.bf16.msra.mxu0 %v1700
      %1718 = vmatpush.bf16.msra.mxu0 %v1699
      %1719 = vmatpush.bf16.msra.mxu0 %v1698
      %1720 = vmatpush.bf16.msra.mxu0 %v1697
      %1721 = vmatmul.bf16.gmra.mxu0 %v1472
      %v1722 = vpop.f32.mrf.mxu0
      %v1723 = vadd.f32 %v1663, %v1722
      %v1724 = vpop.f32.mrf.mxu0
      %v1725 = vadd.f32 %v1663, %v1724
      %1726 = vmatmul.bf16.gmra.mxu0 %v1473
      %v1727 = vpop.f32.mrf.mxu0
      %v1728 = vadd.f32 %v1663, %v1727
      %v1729 = vpop.f32.mrf.mxu0
      %v1730 = vadd.f32 %v1663, %v1729
      %1731 = vmatmul.bf16.gmra.mxu0 %v1474
      %v1732 = vpop.f32.mrf.mxu0
      %v1733 = vadd.f32 %v1663, %v1732
      %v1734 = vpop.f32.mrf.mxu0
      %v1735 = vadd.f32 %v1663, %v1734
      %1736 = vmatmul.bf16.gmra.mxu0 %v1475
      %v1737 = vpop.f32.mrf.mxu0
      %v1738 = vadd.f32 %v1663, %v1737
      %v1739 = vpop.f32.mrf.mxu0
      %v1740 = vadd.f32 %v1663, %v1739
      %1741 = vmatmul.bf16.gmra.mxu0 %v1476
      %v1742 = vpop.f32.mrf.mxu0
      %v1743 = vadd.f32 %v1663, %v1742
      %v1744 = vpop.f32.mrf.mxu0
      %v1745 = vadd.f32 %v1663, %v1744
      %1746 = vmatmul.bf16.gmra.mxu0 %v1477
      %v1747 = vpop.f32.mrf.mxu0
      %v1748 = vadd.f32 %v1663, %v1747
      %v1749 = vpop.f32.mrf.mxu0
      %v1750 = vadd.f32 %v1663, %v1749
      %1751 = vmatmul.bf16.gmra.mxu0 %v1478
      %v1752 = vpop.f32.mrf.mxu0
      %v1753 = vadd.f32 %v1663, %v1752
      %v1754 = vpop.f32.mrf.mxu0
      %v1755 = vadd.f32 %v1663, %v1754
      %1756 = vmatmul.bf16.gmra.mxu0 %v1479
      %v1757 = vpop.f32.mrf.mxu0
      %v1758 = vadd.f32 %v1663, %v1757
      %v1759 = vpop.f32.mrf.mxu0
      %v1760 = vadd.f32 %v1663, %v1759
      %1761 = vmatmul.bf16.gmra.mxu0 %v1480
      %v1762 = vpop.f32.mrf.mxu0
      %v1763 = vadd.f32 %v1663, %v1762
      %v1764 = vpop.f32.mrf.mxu0
      %v1765 = vadd.f32 %v1663, %v1764
      %1766 = vmatmul.bf16.gmra.mxu0 %v1481
      %v1767 = vpop.f32.mrf.mxu0
      %v1768 = vadd.f32 %v1663, %v1767
      %v1769 = vpop.f32.mrf.mxu0
      %v1770 = vadd.f32 %v1663, %v1769
      %1771 = vmatmul.bf16.gmra.mxu0 %v1482
      %v1772 = vpop.f32.mrf.mxu0
      %v1773 = vadd.f32 %v1663, %v1772
      %v1774 = vpop.f32.mrf.mxu0
      %v1775 = vadd.f32 %v1663, %v1774
      %1776 = vmatmul.bf16.gmra.mxu0 %v1483
      %v1777 = vpop.f32.mrf.mxu0
      %v1778 = vadd.f32 %v1663, %v1777
      %v1779 = vpop.f32.mrf.mxu0
      %v1780 = vadd.f32 %v1663, %v1779
      %1781 = vmatmul.bf16.gmra.mxu0 %v1484
      %v1782 = vpop.f32.mrf.mxu0
      %v1783 = vadd.f32 %v1663, %v1782
      %v1784 = vpop.f32.mrf.mxu0
      %v1785 = vadd.f32 %v1663, %v1784
      %1786 = vmatmul.bf16.gmra.mxu0 %v1485
      %v1787 = vpop.f32.mrf.mxu0
      %v1788 = vadd.f32 %v1663, %v1787
      %v1789 = vpop.f32.mrf.mxu0
      %v1790 = vadd.f32 %v1663, %v1789
      %1791 = vmatmul.bf16.gmra.mxu0 %v1486
      %v1792 = vpop.f32.mrf.mxu0
      %v1793 = vadd.f32 %v1663, %v1792
      %v1794 = vpop.f32.mrf.mxu0
      %v1795 = vadd.f32 %v1663, %v1794
      %1796 = vmatmul.bf16.gmra.mxu0 %v1487
      %v1797 = vpop.f32.mrf.mxu0
      %v1798 = vadd.f32 %v1663, %v1797
      %v1799 = vpop.f32.mrf.mxu0
      %v1800 = vadd.f32 %v1663, %v1799
      %1801 = vdwg.mxu0
      %v1802 = vld [vmem:[%s6] sm:$0xf]
      %v1803 = vld [vmem:[%s6 + $0x4] sm:$0xf]
      %v1804 = vld [vmem:[%s6 + $0x8] sm:$0xf]
      %v1805 = vld [vmem:[%s6 + $0xc] sm:$0xf]
      %v1806 = vld [vmem:[%s6 + $0x10] sm:$0xf]
      %v1807 = vld [vmem:[%s6 + $0x14] sm:$0xf]
      %v1808 = vld [vmem:[%s6 + $0x18] sm:$0xf]
      %v1809 = vld [vmem:[%s6 + $0x1c] sm:$0xf]
      %v1810 = vld [vmem:[%s6 + $0x20] sm:$0xf]
      %v1811 = vld [vmem:[%s6 + $0x24] sm:$0xf]
      %v1812 = vld [vmem:[%s6 + $0x28] sm:$0xf]
      %v1813 = vld [vmem:[%s6 + $0x2c] sm:$0xf]
      %v1814 = vld [vmem:[%s6 + $0x30] sm:$0xf]
      %v1815 = vld [vmem:[%s6 + $0x34] sm:$0xf]
      %v1816 = vld [vmem:[%s6 + $0x38] sm:$0xf]
      %v1817 = vld [vmem:[%s6 + $0x3c] sm:$0xf]
      %v1818 = vld [vmem:[%s10] sm:$0x1]
      %v1820 = vperm.slane %v1818, 0
      %v1838 = vunpack.c.l.b16 %v1802
      %v1839 = vunpack.c.l.b16 %v1803
      %v1840 = vunpack.c.l.b16 %v1804
      %v1841 = vunpack.c.l.b16 %v1805
      %v1842 = vunpack.c.l.b16 %v1806
      %v1843 = vunpack.c.l.b16 %v1807
      %v1844 = vunpack.c.l.b16 %v1808
      %v1845 = vunpack.c.l.b16 %v1809
      %v1846 = vunpack.c.l.b16 %v1810
      %v1847 = vunpack.c.l.b16 %v1811
      %v1848 = vunpack.c.l.b16 %v1812
      %v1849 = vunpack.c.l.b16 %v1813
      %v1850 = vunpack.c.l.b16 %v1814
      %v1851 = vunpack.c.l.b16 %v1815
      %v1852 = vunpack.c.l.b16 %v1816
      %v1853 = vunpack.c.l.b16 %v1817
      %v1854 = vpack.c.b16 %v1839, %v1838
      %v1855 = vpack.c.b16 %v1841, %v1840
      %v1856 = vpack.c.b16 %v1843, %v1842
      %v1857 = vpack.c.b16 %v1845, %v1844
      %v1858 = vpack.c.b16 %v1847, %v1846
      %v1859 = vpack.c.b16 %v1849, %v1848
      %v1860 = vpack.c.b16 %v1851, %v1850
      %v1861 = vpack.c.b16 %v1853, %v1852
      %1870 = vmatpush.bf16.msra.mxu0 %v1861
      %1871 = vmatpush.bf16.msra.mxu0 %v1860
      %1872 = vmatpush.bf16.msra.mxu0 %v1859
      %1873 = vmatpush.bf16.msra.mxu0 %v1858
      %1874 = vmatpush.bf16.msra.mxu0 %v1857
      %1875 = vmatpush.bf16.msra.mxu0 %v1856
      %1876 = vmatpush.bf16.msra.mxu0 %v1855
      %1877 = vmatpush.bf16.msra.mxu0 %v1854
      %1878 = vmatmul.bf16.gmra.mxu0 %v1472
      %v1879 = vpop.f32.mrf.mxu0
      %v1880 = vadd.f32 %v1820, %v1879
      %v1881 = vpop.f32.mrf.mxu0
      %v1882 = vadd.f32 %v1820, %v1881
      %1883 = vmatmul.bf16.gmra.mxu0 %v1473
      %v1884 = vpop.f32.mrf.mxu0
      %v1885 = vadd.f32 %v1820, %v1884
      %v1886 = vpop.f32.mrf.mxu0
      %v1887 = vadd.f32 %v1820, %v1886
      %1888 = vmatmul.bf16.gmra.mxu0 %v1474
      %v1889 = vpop.f32.mrf.mxu0
      %v1890 = vadd.f32 %v1820, %v1889
      %v1891 = vpop.f32.mrf.mxu0
      %v1892 = vadd.f32 %v1820, %v1891
      %1893 = vmatmul.bf16.gmra.mxu0 %v1475
      %v1894 = vpop.f32.mrf.mxu0
      %v1895 = vadd.f32 %v1820, %v1894
      %v1896 = vpop.f32.mrf.mxu0
      %v1897 = vadd.f32 %v1820, %v1896
      %1898 = vmatmul.bf16.gmra.mxu0 %v1476
      %v1899 = vpop.f32.mrf.mxu0
      %v1900 = vadd.f32 %v1820, %v1899
      %v1901 = vpop.f32.mrf.mxu0
      %v1902 = vadd.f32 %v1820, %v1901
      %1903 = vmatmul.bf16.gmra.mxu0 %v1477
      %v1904 = vpop.f32.mrf.mxu0
      %v1905 = vadd.f32 %v1820, %v1904
      %v1906 = vpop.f32.mrf.mxu0
      %v1907 = vadd.f32 %v1820, %v1906
      %1908 = vmatmul.bf16.gmra.mxu0 %v1478
      %v1909 = vpop.f32.mrf.mxu0
      %v1910 = vadd.f32 %v1820, %v1909
      %v1911 = vpop.f32.mrf.mxu0
      %v1912 = vadd.f32 %v1820, %v1911
      %1913 = vmatmul.bf16.gmra.mxu0 %v1479
      %v1914 = vpop.f32.mrf.mxu0
      %v1915 = vadd.f32 %v1820, %v1914
      %v1916 = vpop.f32.mrf.mxu0
      %v1917 = vadd.f32 %v1820, %v1916
      %1918 = vmatmul.bf16.gmra.mxu0 %v1480
      %v1919 = vpop.f32.mrf.mxu0
      %v1920 = vadd.f32 %v1820, %v1919
      %v1921 = vpop.f32.mrf.mxu0
      %v1922 = vadd.f32 %v1820, %v1921
      %1923 = vmatmul.bf16.gmra.mxu0 %v1481
      %v1924 = vpop.f32.mrf.mxu0
      %v1925 = vadd.f32 %v1820, %v1924
      %v1926 = vpop.f32.mrf.mxu0
      %v1927 = vadd.f32 %v1820, %v1926
      %1928 = vmatmul.bf16.gmra.mxu0 %v1482
      %v1929 = vpop.f32.mrf.mxu0
      %v1930 = vadd.f32 %v1820, %v1929
      %v1931 = vpop.f32.mrf.mxu0
      %v1932 = vadd.f32 %v1820, %v1931
      %1933 = vmatmul.bf16.gmra.mxu0 %v1483
      %v1934 = vpop.f32.mrf.mxu0
      %v1935 = vadd.f32 %v1820, %v1934
      %v1936 = vpop.f32.mrf.mxu0
      %v1937 = vadd.f32 %v1820, %v1936
      %1938 = vmatmul.bf16.gmra.mxu0 %v1484
      %v1939 = vpop.f32.mrf.mxu0
      %v1940 = vadd.f32 %v1820, %v1939
      %v1941 = vpop.f32.mrf.mxu0
      %v1942 = vadd.f32 %v1820, %v1941
      %1943 = vmatmul.bf16.gmra.mxu0 %v1485
      %v1944 = vpop.f32.mrf.mxu0
      %v1945 = vadd.f32 %v1820, %v1944
      %v1946 = vpop.f32.mrf.mxu0
      %v1947 = vadd.f32 %v1820, %v1946
      %1948 = vmatmul.bf16.gmra.mxu0 %v1486
      %v1949 = vpop.f32.mrf.mxu0
      %v1950 = vadd.f32 %v1820, %v1949
      %v1951 = vpop.f32.mrf.mxu0
      %v1952 = vadd.f32 %v1820, %v1951
      %1953 = vmatmul.bf16.gmra.mxu0 %v1487
      %v1954 = vpop.f32.mrf.mxu0
      %v1955 = vadd.f32 %v1820, %v1954
      %v1956 = vpop.f32.mrf.mxu0
      %v1957 = vadd.f32 %v1820, %v1956
      %1958 = vdwg.mxu0
      %v1959 = vpack.c.bf16 %v1568, %v1566
      %v1960 = vpack.c.bf16 %v1573, %v1571
      %v1961 = vpack.c.bf16 %v1578, %v1576
      %v1962 = vpack.c.bf16 %v1583, %v1581
      %v1963 = vpack.c.bf16 %v1588, %v1586
      %v1964 = vpack.c.bf16 %v1593, %v1591
      %v1965 = vpack.c.bf16 %v1598, %v1596
      %v1966 = vpack.c.bf16 %v1603, %v1601
      %v1967 = vpack.c.bf16 %v1608, %v1606
      %v1968 = vpack.c.bf16 %v1613, %v1611
      %v1969 = vpack.c.bf16 %v1618, %v1616
      %v1970 = vpack.c.bf16 %v1623, %v1621
      %v1971 = vpack.c.bf16 %v1628, %v1626
      %v1972 = vpack.c.bf16 %v1633, %v1631
      %v1973 = vpack.c.bf16 %v1638, %v1636
      %v1974 = vpack.c.bf16 %v1643, %v1641
      %v1975 = vpack.c.bf16 %v1725, %v1723
      %v1976 = vpack.c.bf16 %v1730, %v1728
      %v1977 = vpack.c.bf16 %v1735, %v1733
      %v1978 = vpack.c.bf16 %v1740, %v1738
      %v1979 = vpack.c.bf16 %v1745, %v1743
      %v1980 = vpack.c.bf16 %v1750, %v1748
      %v1981 = vpack.c.bf16 %v1755, %v1753
      %v1982 = vpack.c.bf16 %v1760, %v1758
      %v1983 = vpack.c.bf16 %v1765, %v1763
      %v1984 = vpack.c.bf16 %v1770, %v1768
      %v1985 = vpack.c.bf16 %v1775, %v1773
      %v1986 = vpack.c.bf16 %v1780, %v1778
      %v1987 = vpack.c.bf16 %v1785, %v1783
      %v1988 = vpack.c.bf16 %v1790, %v1788
      %v1989 = vpack.c.bf16 %v1795, %v1793
      %v1990 = vpack.c.bf16 %v1800, %v1798
      %1991 = vmatpush.bf16.xpose.msra.mxu0 %v1982
      %1992 = vmatpush.bf16.xpose.msra.mxu0 %v1981
      %1993 = vmatpush.bf16.xpose.msra.mxu0 %v1980
      %1994 = vmatpush.bf16.xpose.msra.mxu0 %v1979
      %1995 = vmatpush.bf16.xpose.msra.mxu0 %v1978
      %1996 = vmatpush.bf16.xpose.msra.mxu0 %v1977
      %1997 = vmatpush.bf16.xpose.msra.mxu0 %v1976
      %1998 = vmatpush.bf16.xpose.msra.mxu0 %v1975
      %1999 = vmatmul.bf16.gmra.mxu0 %v1959
      %v2000 = vpop.f32.mrf.mxu0
      %v2001 = vadd.f32 0.0, %v2000
      %v2002 = vpop.f32.mrf.mxu0
      %v2003 = vadd.f32 0.0, %v2002
      %2004 = vmatmul.bf16.gmra.mxu0 %v1960
      %v2005 = vpop.f32.mrf.mxu0
      %v2006 = vadd.f32 0.0, %v2005
      %v2007 = vpop.f32.mrf.mxu0
      %v2008 = vadd.f32 0.0, %v2007
      %2009 = vmatmul.bf16.gmra.mxu0 %v1961
      %v2010 = vpop.f32.mrf.mxu0
      %v2011 = vadd.f32 0.0, %v2010
      %v2012 = vpop.f32.mrf.mxu0
      %v2013 = vadd.f32 0.0, %v2012
      %2014 = vmatmul.bf16.gmra.mxu0 %v1962
      %v2015 = vpop.f32.mrf.mxu0
      %v2016 = vadd.f32 0.0, %v2015
      %v2017 = vpop.f32.mrf.mxu0
      %v2018 = vadd.f32 0.0, %v2017
      %2019 = vmatmul.bf16.gmra.mxu0 %v1963
      %v2020 = vpop.f32.mrf.mxu0
      %v2021 = vadd.f32 0.0, %v2020
      %v2022 = vpop.f32.mrf.mxu0
      %v2023 = vadd.f32 0.0, %v2022
      %2024 = vmatmul.bf16.gmra.mxu0 %v1964
      %v2025 = vpop.f32.mrf.mxu0
      %v2026 = vadd.f32 0.0, %v2025
      %v2027 = vpop.f32.mrf.mxu0
      %v2028 = vadd.f32 0.0, %v2027
      %2029 = vmatmul.bf16.gmra.mxu0 %v1965
      %v2030 = vpop.f32.mrf.mxu0
      %v2031 = vadd.f32 0.0, %v2030
      %v2032 = vpop.f32.mrf.mxu0
      %v2033 = vadd.f32 0.0, %v2032
      %2034 = vmatmul.bf16.gmra.mxu0 %v1966
      %v2035 = vpop.f32.mrf.mxu0
      %v2036 = vadd.f32 0.0, %v2035
      %v2037 = vpop.f32.mrf.mxu0
      %v2038 = vadd.f32 0.0, %v2037
      %2039 = vmatmul.bf16.gmra.mxu0 %v1967
      %v2040 = vpop.f32.mrf.mxu0
      %v2041 = vadd.f32 0.0, %v2040
      %v2042 = vpop.f32.mrf.mxu0
      %v2043 = vadd.f32 0.0, %v2042
      %2044 = vmatmul.bf16.gmra.mxu0 %v1968
      %v2045 = vpop.f32.mrf.mxu0
      %v2046 = vadd.f32 0.0, %v2045
      %v2047 = vpop.f32.mrf.mxu0
      %v2048 = vadd.f32 0.0, %v2047
      %2049 = vmatmul.bf16.gmra.mxu0 %v1969
      %v2050 = vpop.f32.mrf.mxu0
      %v2051 = vadd.f32 0.0, %v2050
      %v2052 = vpop.f32.mrf.mxu0
      %v2053 = vadd.f32 0.0, %v2052
      %2054 = vmatmul.bf16.gmra.mxu0 %v1970
      %v2055 = vpop.f32.mrf.mxu0
      %v2056 = vadd.f32 0.0, %v2055
      %v2057 = vpop.f32.mrf.mxu0
      %v2058 = vadd.f32 0.0, %v2057
      %2059 = vmatmul.bf16.gmra.mxu0 %v1971
      %v2060 = vpop.f32.mrf.mxu0
      %v2061 = vadd.f32 0.0, %v2060
      %v2062 = vpop.f32.mrf.mxu0
      %v2063 = vadd.f32 0.0, %v2062
      %2064 = vmatmul.bf16.gmra.mxu0 %v1972
      %v2065 = vpop.f32.mrf.mxu0
      %v2066 = vadd.f32 0.0, %v2065
      %v2067 = vpop.f32.mrf.mxu0
      %v2068 = vadd.f32 0.0, %v2067
      %2069 = vmatmul.bf16.gmra.mxu0 %v1973
      %v2070 = vpop.f32.mrf.mxu0
      %v2071 = vadd.f32 0.0, %v2070
      %v2072 = vpop.f32.mrf.mxu0
      %v2073 = vadd.f32 0.0, %v2072
      %2074 = vmatmul.bf16.gmra.mxu0 %v1974
      %v2075 = vpop.f32.mrf.mxu0
      %v2076 = vadd.f32 0.0, %v2075
      %v2077 = vpop.f32.mrf.mxu0
      %v2078 = vadd.f32 0.0, %v2077
      %2079 = vdwg.mxu0
      %2080 = vmatpush.bf16.xpose.msra.mxu0 %v1990
      %2081 = vmatpush.bf16.xpose.msra.mxu0 %v1989
      %2082 = vmatpush.bf16.xpose.msra.mxu0 %v1988
      %2083 = vmatpush.bf16.xpose.msra.mxu0 %v1987
      %2084 = vmatpush.bf16.xpose.msra.mxu0 %v1986
      %2085 = vmatpush.bf16.xpose.msra.mxu0 %v1985
      %2086 = vmatpush.bf16.xpose.msra.mxu0 %v1984
      %2087 = vmatpush.bf16.xpose.msra.mxu0 %v1983
      %2088 = vmatmul.bf16.gmra.mxu0 %v1959
      %v2089 = vpop.f32.mrf.mxu0
      %v2090 = vadd.f32 0.0, %v2089
      %v2091 = vpop.f32.mrf.mxu0
      %v2092 = vadd.f32 0.0, %v2091
      %2093 = vmatmul.bf16.gmra.mxu0 %v1960
      %v2094 = vpop.f32.mrf.mxu0
      %v2095 = vadd.f32 0.0, %v2094
      %v2096 = vpop.f32.mrf.mxu0
      %v2097 = vadd.f32 0.0, %v2096
      %2098 = vmatmul.bf16.gmra.mxu0 %v1961
      %v2099 = vpop.f32.mrf.mxu0
      %v2100 = vadd.f32 0.0, %v2099
      %v2101 = vpop.f32.mrf.mxu0
      %v2102 = vadd.f32 0.0, %v2101
      %2103 = vmatmul.bf16.gmra.mxu0 %v1962
      %v2104 = vpop.f32.mrf.mxu0
      %v2105 = vadd.f32 0.0, %v2104
      %v2106 = vpop.f32.mrf.mxu0
      %v2107 = vadd.f32 0.0, %v2106
      %2108 = vmatmul.bf16.gmra.mxu0 %v1963
      %v2109 = vpop.f32.mrf.mxu0
      %v2110 = vadd.f32 0.0, %v2109
      %v2111 = vpop.f32.mrf.mxu0
      %v2112 = vadd.f32 0.0, %v2111
      %2113 = vmatmul.bf16.gmra.mxu0 %v1964
      %v2114 = vpop.f32.mrf.mxu0
      %v2115 = vadd.f32 0.0, %v2114
      %v2116 = vpop.f32.mrf.mxu0
      %v2117 = vadd.f32 0.0, %v2116
      %2118 = vmatmul.bf16.gmra.mxu0 %v1965
      %v2119 = vpop.f32.mrf.mxu0
      %v2120 = vadd.f32 0.0, %v2119
      %v2121 = vpop.f32.mrf.mxu0
      %v2122 = vadd.f32 0.0, %v2121
      %2123 = vmatmul.bf16.gmra.mxu0 %v1966
      %v2124 = vpop.f32.mrf.mxu0
      %v2125 = vadd.f32 0.0, %v2124
      %v2126 = vpop.f32.mrf.mxu0
      %v2127 = vadd.f32 0.0, %v2126
      %2128 = vmatmul.bf16.gmra.mxu0 %v1967
      %v2129 = vpop.f32.mrf.mxu0
      %v2130 = vadd.f32 0.0, %v2129
      %v2131 = vpop.f32.mrf.mxu0
      %v2132 = vadd.f32 0.0, %v2131
      %2133 = vmatmul.bf16.gmra.mxu0 %v1968
      %v2134 = vpop.f32.mrf.mxu0
      %v2135 = vadd.f32 0.0, %v2134
      %v2136 = vpop.f32.mrf.mxu0
      %v2137 = vadd.f32 0.0, %v2136
      %2138 = vmatmul.bf16.gmra.mxu0 %v1969
      %v2139 = vpop.f32.mrf.mxu0
      %v2140 = vadd.f32 0.0, %v2139
      %v2141 = vpop.f32.mrf.mxu0
      %v2142 = vadd.f32 0.0, %v2141
      %2143 = vmatmul.bf16.gmra.mxu0 %v1970
      %v2144 = vpop.f32.mrf.mxu0
      %v2145 = vadd.f32 0.0, %v2144
      %v2146 = vpop.f32.mrf.mxu0
      %v2147 = vadd.f32 0.0, %v2146
      %2148 = vmatmul.bf16.gmra.mxu0 %v1971
      %v2149 = vpop.f32.mrf.mxu0
      %v2150 = vadd.f32 0.0, %v2149
      %v2151 = vpop.f32.mrf.mxu0
      %v2152 = vadd.f32 0.0, %v2151
      %2153 = vmatmul.bf16.gmra.mxu0 %v1972
      %v2154 = vpop.f32.mrf.mxu0
      %v2155 = vadd.f32 0.0, %v2154
      %v2156 = vpop.f32.mrf.mxu0
      %v2157 = vadd.f32 0.0, %v2156
      %2158 = vmatmul.bf16.gmra.mxu0 %v1973
      %v2159 = vpop.f32.mrf.mxu0
      %v2160 = vadd.f32 0.0, %v2159
      %v2161 = vpop.f32.mrf.mxu0
      %v2162 = vadd.f32 0.0, %v2161
      %2163 = vmatmul.bf16.gmra.mxu0 %v1974
      %v2164 = vpop.f32.mrf.mxu0
      %v2165 = vadd.f32 0.0, %v2164
      %v2166 = vpop.f32.mrf.mxu0
      %v2167 = vadd.f32 0.0, %v2166
      %2168 = vdwg.mxu0
      %v2169 = vmax.f32 %v2001, %v2090
      %2170 = vmax.xlane.f32.xlu0 %v2169
      %v2171 = vpop.xlane.xlu0 %2170
      %v2172 = vmax.f32 %v2003, %v2092
      %2173 = vmax.xlane.f32.xlu0 %v2172
      %v2174 = vpop.xlane.xlu0 %2173
      %v2175 = vmax.f32 %v2006, %v2095
      %2176 = vmax.xlane.f32.xlu0 %v2175
      %v2177 = vpop.xlane.xlu0 %2176
      %v2178 = vmax.f32 %v2008, %v2097
      %2179 = vmax.xlane.f32.xlu0 %v2178
      %v2180 = vpop.xlane.xlu0 %2179
      %v2181 = vmax.f32 %v2011, %v2100
      %2182 = vmax.xlane.f32.xlu0 %v2181
      %v2183 = vpop.xlane.xlu0 %2182
      %v2184 = vmax.f32 %v2013, %v2102
      %2185 = vmax.xlane.f32.xlu0 %v2184
      %v2186 = vpop.xlane.xlu0 %2185
      %v2187 = vmax.f32 %v2016, %v2105
      %2188 = vmax.xlane.f32.xlu0 %v2187
      %v2189 = vpop.xlane.xlu0 %2188
      %v2190 = vmax.f32 %v2018, %v2107
      %2191 = vmax.xlane.f32.xlu0 %v2190
      %v2192 = vpop.xlane.xlu0 %2191
      %v2193 = vmax.f32 %v2021, %v2110
      %2194 = vmax.xlane.f32.xlu0 %v2193
      %v2195 = vpop.xlane.xlu0 %2194
      %v2196 = vmax.f32 %v2023, %v2112
      %2197 = vmax.xlane.f32.xlu0 %v2196
      %v2198 = vpop.xlane.xlu0 %2197
      %v2199 = vmax.f32 %v2026, %v2115
      %2200 = vmax.xlane.f32.xlu0 %v2199
      %v2201 = vpop.xlane.xlu0 %2200
      %v2202 = vmax.f32 %v2028, %v2117
      %2203 = vmax.xlane.f32.xlu0 %v2202
      %v2204 = vpop.xlane.xlu0 %2203
      %v2205 = vmax.f32 %v2031, %v2120
      %2206 = vmax.xlane.f32.xlu0 %v2205
      %v2207 = vpop.xlane.xlu0 %2206
      %v2208 = vmax.f32 %v2033, %v2122
      %2209 = vmax.xlane.f32.xlu0 %v2208
      %v2210 = vpop.xlane.xlu0 %2209
      %v2211 = vmax.f32 %v2036, %v2125
      %2212 = vmax.xlane.f32.xlu0 %v2211
      %v2213 = vpop.xlane.xlu0 %2212
      %v2214 = vmax.f32 %v2038, %v2127
      %2215 = vmax.xlane.f32.xlu0 %v2214
      %v2216 = vpop.xlane.xlu0 %2215
      %v2217 = vmax.f32 %v2041, %v2130
      %2218 = vmax.xlane.f32.xlu0 %v2217
      %v2219 = vpop.xlane.xlu0 %2218
      %v2220 = vmax.f32 %v2043, %v2132
      %2221 = vmax.xlane.f32.xlu0 %v2220
      %v2222 = vpop.xlane.xlu0 %2221
      %v2223 = vmax.f32 %v2046, %v2135
      %2224 = vmax.xlane.f32.xlu0 %v2223
      %v2225 = vpop.xlane.xlu0 %2224
      %v2226 = vmax.f32 %v2048, %v2137
      %2227 = vmax.xlane.f32.xlu0 %v2226
      %v2228 = vpop.xlane.xlu0 %2227
      %v2229 = vmax.f32 %v2051, %v2140
      %2230 = vmax.xlane.f32.xlu0 %v2229
      %v2231 = vpop.xlane.xlu0 %2230
      %v2232 = vmax.f32 %v2053, %v2142
      %2233 = vmax.xlane.f32.xlu0 %v2232
      %v2234 = vpop.xlane.xlu0 %2233
      %v2235 = vmax.f32 %v2056, %v2145
      %2236 = vmax.xlane.f32.xlu0 %v2235
      %v2237 = vpop.xlane.xlu0 %2236
      %v2238 = vmax.f32 %v2058, %v2147
      %2239 = vmax.xlane.f32.xlu0 %v2238
      %v2240 = vpop.xlane.xlu0 %2239
      %v2241 = vmax.f32 %v2061, %v2150
      %2242 = vmax.xlane.f32.xlu0 %v2241
      %v2243 = vpop.xlane.xlu0 %2242
      %v2244 = vmax.f32 %v2063, %v2152
      %2245 = vmax.xlane.f32.xlu0 %v2244
      %v2246 = vpop.xlane.xlu0 %2245
      %v2247 = vmax.f32 %v2066, %v2155
      %2248 = vmax.xlane.f32.xlu0 %v2247
      %v2249 = vpop.xlane.xlu0 %2248
      %v2250 = vmax.f32 %v2068, %v2157
      %2251 = vmax.xlane.f32.xlu0 %v2250
      %v2252 = vpop.xlane.xlu0 %2251
      %v2253 = vmax.f32 %v2071, %v2160
      %2254 = vmax.xlane.f32.xlu0 %v2253
      %v2255 = vpop.xlane.xlu0 %2254
      %v2256 = vmax.f32 %v2073, %v2162
      %2257 = vmax.xlane.f32.xlu0 %v2256
      %v2258 = vpop.xlane.xlu0 %2257
      %v2259 = vmax.f32 %v2076, %v2165
      %2260 = vmax.xlane.f32.xlu0 %v2259
      %v2261 = vpop.xlane.xlu0 %2260
      %v2262 = vmax.f32 %v2078, %v2167
      %2263 = vmax.xlane.f32.xlu0 %v2262
      %v2264 = vpop.xlane.xlu0 %2263
      %v2265 = vsub.f32 %v2001, %v2171
      %v2266 = vsub.f32 %v2090, %v2171
      %v2267 = vsub.f32 %v2003, %v2174
      %v2268 = vsub.f32 %v2092, %v2174
      %v2269 = vsub.f32 %v2006, %v2177
      %v2270 = vsub.f32 %v2095, %v2177
      %v2271 = vsub.f32 %v2008, %v2180
      %v2272 = vsub.f32 %v2097, %v2180
      %v2273 = vsub.f32 %v2011, %v2183
      %v2274 = vsub.f32 %v2100, %v2183
      %v2275 = vsub.f32 %v2013, %v2186
      %v2276 = vsub.f32 %v2102, %v2186
      %v2277 = vsub.f32 %v2016, %v2189
      %v2278 = vsub.f32 %v2105, %v2189
      %v2279 = vsub.f32 %v2018, %v2192
      %v2280 = vsub.f32 %v2107, %v2192
      %v2281 = vsub.f32 %v2021, %v2195
      %v2282 = vsub.f32 %v2110, %v2195
      %v2283 = vsub.f32 %v2023, %v2198
      %v2284 = vsub.f32 %v2112, %v2198
      %v2285 = vsub.f32 %v2026, %v2201
      %v2286 = vsub.f32 %v2115, %v2201
      %v2287 = vsub.f32 %v2028, %v2204
      %v2288 = vsub.f32 %v2117, %v2204
      %v2289 = vsub.f32 %v2031, %v2207
      %v2290 = vsub.f32 %v2120, %v2207
      %v2291 = vsub.f32 %v2033, %v2210
      %v2292 = vsub.f32 %v2122, %v2210
      %v2293 = vsub.f32 %v2036, %v2213
      %v2294 = vsub.f32 %v2125, %v2213
      %v2295 = vsub.f32 %v2038, %v2216
      %v2296 = vsub.f32 %v2127, %v2216
      %v2297 = vsub.f32 %v2041, %v2219
      %v2298 = vsub.f32 %v2130, %v2219
      %v2299 = vsub.f32 %v2043, %v2222
      %v2300 = vsub.f32 %v2132, %v2222
      %v2301 = vsub.f32 %v2046, %v2225
      %v2302 = vsub.f32 %v2135, %v2225
      %v2303 = vsub.f32 %v2048, %v2228
      %v2304 = vsub.f32 %v2137, %v2228
      %v2305 = vsub.f32 %v2051, %v2231
      %v2306 = vsub.f32 %v2140, %v2231
      %v2307 = vsub.f32 %v2053, %v2234
      %v2308 = vsub.f32 %v2142, %v2234
      %v2309 = vsub.f32 %v2056, %v2237
      %v2310 = vsub.f32 %v2145, %v2237
      %v2311 = vsub.f32 %v2058, %v2240
      %v2312 = vsub.f32 %v2147, %v2240
      %v2313 = vsub.f32 %v2061, %v2243
      %v2314 = vsub.f32 %v2150, %v2243
      %v2315 = vsub.f32 %v2063, %v2246
      %v2316 = vsub.f32 %v2152, %v2246
      %v2317 = vsub.f32 %v2066, %v2249
      %v2318 = vsub.f32 %v2155, %v2249
      %v2319 = vsub.f32 %v2068, %v2252
      %v2320 = vsub.f32 %v2157, %v2252
      %v2321 = vsub.f32 %v2071, %v2255
      %v2322 = vsub.f32 %v2160, %v2255
      %v2323 = vsub.f32 %v2073, %v2258
      %v2324 = vsub.f32 %v2162, %v2258
      %v2325 = vsub.f32 %v2076, %v2261
      %v2326 = vsub.f32 %v2165, %v2261
      %v2327 = vsub.f32 %v2078, %v2264
      %v2328 = vsub.f32 %v2167, %v2264
      %v2329 = vmul.f32 %v2265, 1.442695
      %v2330 = vpow.pop %v2329
      %v2331 = vmul.f32 %v2266, 1.442695
      %v2332 = vpow.pop %v2331
      %v2333 = vmul.f32 %v2267, 1.442695
      %v2334 = vpow.pop %v2333
      %v2335 = vmul.f32 %v2268, 1.442695
      %v2336 = vpow.pop %v2335
      %v2337 = vmul.f32 %v2269, 1.442695
      %v2338 = vpow.pop %v2337
      %v2339 = vmul.f32 %v2270, 1.442695
      %v2340 = vpow.pop %v2339
      %v2341 = vmul.f32 %v2271, 1.442695
      %v2342 = vpow.pop %v2341
      %v2343 = vmul.f32 %v2272, 1.442695
      %v2344 = vpow.pop %v2343
      %v2345 = vmul.f32 %v2273, 1.442695
      %v2346 = vpow.pop %v2345
      %v2347 = vmul.f32 %v2274, 1.442695
      %v2348 = vpow.pop %v2347
      %v2349 = vmul.f32 %v2275, 1.442695
      %v2350 = vpow.pop %v2349
      %v2351 = vmul.f32 %v2276, 1.442695
      %v2352 = vpow.pop %v2351
      %v2353 = vmul.f32 %v2277, 1.442695
      %v2354 = vpow.pop %v2353
      %v2355 = vmul.f32 %v2278, 1.442695
      %v2356 = vpow.pop %v2355
      %v2357 = vmul.f32 %v2279, 1.442695
      %v2358 = vpow.pop %v2357
      %v2359 = vmul.f32 %v2280, 1.442695
      %v2360 = vpow.pop %v2359
      %v2361 = vmul.f32 %v2281, 1.442695
      %v2362 = vpow.pop %v2361
      %v2363 = vmul.f32 %v2282, 1.442695
      %v2364 = vpow.pop %v2363
      %v2365 = vmul.f32 %v2283, 1.442695
      %v2366 = vpow.pop %v2365
      %v2367 = vmul.f32 %v2284, 1.442695
      %v2368 = vpow.pop %v2367
      %v2369 = vmul.f32 %v2285, 1.442695
      %v2370 = vpow.pop %v2369
      %v2371 = vmul.f32 %v2286, 1.442695
      %v2372 = vpow.pop %v2371
      %v2373 = vmul.f32 %v2287, 1.442695
      %v2374 = vpow.pop %v2373
      %v2375 = vmul.f32 %v2288, 1.442695
      %v2376 = vpow.pop %v2375
      %v2377 = vmul.f32 %v2289, 1.442695
      %v2378 = vpow.pop %v2377
      %v2379 = vmul.f32 %v2290, 1.442695
      %v2380 = vpow.pop %v2379
      %v2381 = vmul.f32 %v2291, 1.442695
      %v2382 = vpow.pop %v2381
      %v2383 = vmul.f32 %v2292, 1.442695
      %v2384 = vpow.pop %v2383
      %v2385 = vmul.f32 %v2293, 1.442695
      %v2386 = vpow.pop %v2385
      %v2387 = vmul.f32 %v2294, 1.442695
      %v2388 = vpow.pop %v2387
      %v2389 = vmul.f32 %v2295, 1.442695
      %v2390 = vpow.pop %v2389
      %v2391 = vmul.f32 %v2296, 1.442695
      %v2392 = vpow.pop %v2391
      %v2393 = vmul.f32 %v2297, 1.442695
      %v2394 = vpow.pop %v2393
      %v2395 = vmul.f32 %v2298, 1.442695
      %v2396 = vpow.pop %v2395
      %v2397 = vmul.f32 %v2299, 1.442695
      %v2398 = vpow.pop %v2397
      %v2399 = vmul.f32 %v2300, 1.442695
      %v2400 = vpow.pop %v2399
      %v2401 = vmul.f32 %v2301, 1.442695
      %v2402 = vpow.pop %v2401
      %v2403 = vmul.f32 %v2302, 1.442695
      %v2404 = vpow.pop %v2403
      %v2405 = vmul.f32 %v2303, 1.442695
      %v2406 = vpow.pop %v2405
      %v2407 = vmul.f32 %v2304, 1.442695
      %v2408 = vpow.pop %v2407
      %v2409 = vmul.f32 %v2305, 1.442695
      %v2410 = vpow.pop %v2409
      %v2411 = vmul.f32 %v2306, 1.442695
      %v2412 = vpow.pop %v2411
      %v2413 = vmul.f32 %v2307, 1.442695
      %v2414 = vpow.pop %v2413
      %v2415 = vmul.f32 %v2308, 1.442695
      %v2416 = vpow.pop %v2415
      %v2417 = vmul.f32 %v2309, 1.442695
      %v2418 = vpow.pop %v2417
      %v2419 = vmul.f32 %v2310, 1.442695
      %v2420 = vpow.pop %v2419
      %v2421 = vmul.f32 %v2311, 1.442695
      %v2422 = vpow.pop %v2421
      %v2423 = vmul.f32 %v2312, 1.442695
      %v2424 = vpow.pop %v2423
      %v2425 = vmul.f32 %v2313, 1.442695
      %v2426 = vpow.pop %v2425
      %v2427 = vmul.f32 %v2314, 1.442695
      %v2428 = vpow.pop %v2427
      %v2429 = vmul.f32 %v2315, 1.442695
      %v2430 = vpow.pop %v2429
      %v2431 = vmul.f32 %v2316, 1.442695
      %v2432 = vpow.pop %v2431
      %v2433 = vmul.f32 %v2317, 1.442695
      %v2434 = vpow.pop %v2433
      %v2435 = vmul.f32 %v2318, 1.442695
      %v2436 = vpow.pop %v2435
      %v2437 = vmul.f32 %v2319, 1.442695
      %v2438 = vpow.pop %v2437
      %v2439 = vmul.f32 %v2320, 1.442695
      %v2440 = vpow.pop %v2439
      %v2441 = vmul.f32 %v2321, 1.442695
      %v2442 = vpow.pop %v2441
      %v2443 = vmul.f32 %v2322, 1.442695
      %v2444 = vpow.pop %v2443
      %v2445 = vmul.f32 %v2323, 1.442695
      %v2446 = vpow.pop %v2445
      %v2447 = vmul.f32 %v2324, 1.442695
      %v2448 = vpow.pop %v2447
      %v2449 = vmul.f32 %v2325, 1.442695
      %v2450 = vpow.pop %v2449
      %v2451 = vmul.f32 %v2326, 1.442695
      %v2452 = vpow.pop %v2451
      %v2453 = vmul.f32 %v2327, 1.442695
      %v2454 = vpow.pop %v2453
      %v2455 = vmul.f32 %v2328, 1.442695
      %v2456 = vpow.pop %v2455
      %v2457 = vadd.f32 %v2330, %v2332
      %2458 = vadd.xlane.f32.xlu0 %v2457
      %v2459 = vpop.xlane.xlu0 %2458
      %v2460 = vadd.f32 %v2334, %v2336
      %2461 = vadd.xlane.f32.xlu0 %v2460
      %v2462 = vpop.xlane.xlu0 %2461
      %v2463 = vadd.f32 %v2338, %v2340
      %2464 = vadd.xlane.f32.xlu0 %v2463
      %v2465 = vpop.xlane.xlu0 %2464
      %v2466 = vadd.f32 %v2342, %v2344
      %2467 = vadd.xlane.f32.xlu0 %v2466
      %v2468 = vpop.xlane.xlu0 %2467
      %v2469 = vadd.f32 %v2346, %v2348
      %2470 = vadd.xlane.f32.xlu0 %v2469
      %v2471 = vpop.xlane.xlu0 %2470
      %v2472 = vadd.f32 %v2350, %v2352
      %2473 = vadd.xlane.f32.xlu0 %v2472
      %v2474 = vpop.xlane.xlu0 %2473
      %v2475 = vadd.f32 %v2354, %v2356
      %2476 = vadd.xlane.f32.xlu0 %v2475
      %v2477 = vpop.xlane.xlu0 %2476
      %v2478 = vadd.f32 %v2358, %v2360
      %2479 = vadd.xlane.f32.xlu0 %v2478
      %v2480 = vpop.xlane.xlu0 %2479
      %v2481 = vadd.f32 %v2362, %v2364
      %2482 = vadd.xlane.f32.xlu0 %v2481
      %v2483 = vpop.xlane.xlu0 %2482
      %v2484 = vadd.f32 %v2366, %v2368
      %2485 = vadd.xlane.f32.xlu0 %v2484
      %v2486 = vpop.xlane.xlu0 %2485
      %v2487 = vadd.f32 %v2370, %v2372
      %2488 = vadd.xlane.f32.xlu0 %v2487
      %v2489 = vpop.xlane.xlu0 %2488
      %v2490 = vadd.f32 %v2374, %v2376
      %2491 = vadd.xlane.f32.xlu0 %v2490
      %v2492 = vpop.xlane.xlu0 %2491
      %v2493 = vadd.f32 %v2378, %v2380
      %2494 = vadd.xlane.f32.xlu0 %v2493
      %v2495 = vpop.xlane.xlu0 %2494
      %v2496 = vadd.f32 %v2382, %v2384
      %2497 = vadd.xlane.f32.xlu0 %v2496
      %v2498 = vpop.xlane.xlu0 %2497
      %v2499 = vadd.f32 %v2386, %v2388
      %2500 = vadd.xlane.f32.xlu0 %v2499
      %v2501 = vpop.xlane.xlu0 %2500
      %v2502 = vadd.f32 %v2390, %v2392
      %2503 = vadd.xlane.f32.xlu0 %v2502
      %v2504 = vpop.xlane.xlu0 %2503
      %v2505 = vadd.f32 %v2394, %v2396
      %2506 = vadd.xlane.f32.xlu0 %v2505
      %v2507 = vpop.xlane.xlu0 %2506
      %v2508 = vadd.f32 %v2398, %v2400
      %2509 = vadd.xlane.f32.xlu0 %v2508
      %v2510 = vpop.xlane.xlu0 %2509
      %v2511 = vadd.f32 %v2402, %v2404
      %2512 = vadd.xlane.f32.xlu0 %v2511
      %v2513 = vpop.xlane.xlu0 %2512
      %v2514 = vadd.f32 %v2406, %v2408
      %2515 = vadd.xlane.f32.xlu0 %v2514
      %v2516 = vpop.xlane.xlu0 %2515
      %v2517 = vadd.f32 %v2410, %v2412
      %2518 = vadd.xlane.f32.xlu0 %v2517
      %v2519 = vpop.xlane.xlu0 %2518
      %v2520 = vadd.f32 %v2414, %v2416
      %2521 = vadd.xlane.f32.xlu0 %v2520
      %v2522 = vpop.xlane.xlu0 %2521
      %v2523 = vadd.f32 %v2418, %v2420
      %2524 = vadd.xlane.f32.xlu0 %v2523
      %v2525 = vpop.xlane.xlu0 %2524
      %v2526 = vadd.f32 %v2422, %v2424
      %2527 = vadd.xlane.f32.xlu0 %v2526
      %v2528 = vpop.xlane.xlu0 %2527
      %v2529 = vadd.f32 %v2426, %v2428
      %2530 = vadd.xlane.f32.xlu0 %v2529
      %v2531 = vpop.xlane.xlu0 %2530
      %v2532 = vadd.f32 %v2430, %v2432
      %2533 = vadd.xlane.f32.xlu0 %v2532
      %v2534 = vpop.xlane.xlu0 %2533
      %v2535 = vadd.f32 %v2434, %v2436
      %2536 = vadd.xlane.f32.xlu0 %v2535
      %v2537 = vpop.xlane.xlu0 %2536
      %v2538 = vadd.f32 %v2438, %v2440
      %2539 = vadd.xlane.f32.xlu0 %v2538
      %v2540 = vpop.xlane.xlu0 %2539
      %v2541 = vadd.f32 %v2442, %v2444
      %2542 = vadd.xlane.f32.xlu0 %v2541
      %v2543 = vpop.xlane.xlu0 %2542
      %v2544 = vadd.f32 %v2446, %v2448
      %2545 = vadd.xlane.f32.xlu0 %v2544
      %v2546 = vpop.xlane.xlu0 %2545
      %v2547 = vadd.f32 %v2450, %v2452
      %2548 = vadd.xlane.f32.xlu0 %v2547
      %v2549 = vpop.xlane.xlu0 %2548
      %v2550 = vadd.f32 %v2454, %v2456
      %2551 = vadd.xlane.f32.xlu0 %v2550
      %v2552 = vpop.xlane.xlu0 %2551
      %v2553 = vpack.c.bf16 %v2334, %v2330
      %v2554 = vpack.c.bf16 %v2336, %v2332
      %v2555 = vpack.c.bf16 %v2342, %v2338
      %v2556 = vpack.c.bf16 %v2344, %v2340
      %v2557 = vpack.c.bf16 %v2350, %v2346
      %v2558 = vpack.c.bf16 %v2352, %v2348
      %v2559 = vpack.c.bf16 %v2358, %v2354
      %v2560 = vpack.c.bf16 %v2360, %v2356
      %v2561 = vpack.c.bf16 %v2366, %v2362
      %v2562 = vpack.c.bf16 %v2368, %v2364
      %v2563 = vpack.c.bf16 %v2374, %v2370
      %v2564 = vpack.c.bf16 %v2376, %v2372
      %v2565 = vpack.c.bf16 %v2382, %v2378
      %v2566 = vpack.c.bf16 %v2384, %v2380
      %v2567 = vpack.c.bf16 %v2390, %v2386
      %v2568 = vpack.c.bf16 %v2392, %v2388
      %v2569 = vpack.c.bf16 %v2398, %v2394
      %v2570 = vpack.c.bf16 %v2400, %v2396
      %v2571 = vpack.c.bf16 %v2406, %v2402
      %v2572 = vpack.c.bf16 %v2408, %v2404
      %v2573 = vpack.c.bf16 %v2414, %v2410
      %v2574 = vpack.c.bf16 %v2416, %v2412
      %v2575 = vpack.c.bf16 %v2422, %v2418
      %v2576 = vpack.c.bf16 %v2424, %v2420
      %v2577 = vpack.c.bf16 %v2430, %v2426
      %v2578 = vpack.c.bf16 %v2432, %v2428
      %v2579 = vpack.c.bf16 %v2438, %v2434
      %v2580 = vpack.c.bf16 %v2440, %v2436
      %v2581 = vpack.c.bf16 %v2446, %v2442
      %v2582 = vpack.c.bf16 %v2448, %v2444
      %v2583 = vpack.c.bf16 %v2454, %v2450
      %v2584 = vpack.c.bf16 %v2456, %v2452
      %v2585 = vpack.c.bf16 %v1882, %v1880
      %v2586 = vpack.c.bf16 %v1887, %v1885
      %v2587 = vpack.c.bf16 %v1892, %v1890
      %v2588 = vpack.c.bf16 %v1897, %v1895
      %v2589 = vpack.c.bf16 %v1902, %v1900
      %v2590 = vpack.c.bf16 %v1907, %v1905
      %v2591 = vpack.c.bf16 %v1912, %v1910
      %v2592 = vpack.c.bf16 %v1917, %v1915
      %v2593 = vpack.c.bf16 %v1922, %v1920
      %v2594 = vpack.c.bf16 %v1927, %v1925
      %v2595 = vpack.c.bf16 %v1932, %v1930
      %v2596 = vpack.c.bf16 %v1937, %v1935
      %v2597 = vpack.c.bf16 %v1942, %v1940
      %v2598 = vpack.c.bf16 %v1947, %v1945
      %v2599 = vpack.c.bf16 %v1952, %v1950
      %v2600 = vpack.c.bf16 %v1957, %v1955
      %2601 = vmatpush.bf16.msra.mxu0 %v2592
      %2602 = vmatpush.bf16.msra.mxu0 %v2591
      %2603 = vmatpush.bf16.msra.mxu0 %v2590
      %2604 = vmatpush.bf16.msra.mxu0 %v2589
      %2605 = vmatpush.bf16.msra.mxu0 %v2588
      %2606 = vmatpush.bf16.msra.mxu0 %v2587
      %2607 = vmatpush.bf16.msra.mxu0 %v2586
      %2608 = vmatpush.bf16.msra.mxu0 %v2585
      %2609 = vmatmul.bf16.gmra.mxu0 %v2553
      %v2610 = vpop.f32.mrf.mxu0
      %v2611 = vadd.f32 0.0, %v2610
      %v2612 = vpop.f32.mrf.mxu0
      %v2613 = vadd.f32 0.0, %v2612
      %2614 = vmatmul.bf16.gmra.mxu0 %v2555
      %v2615 = vpop.f32.mrf.mxu0
      %v2616 = vadd.f32 0.0, %v2615
      %v2617 = vpop.f32.mrf.mxu0
      %v2618 = vadd.f32 0.0, %v2617
      %2619 = vmatmul.bf16.gmra.mxu0 %v2557
      %v2620 = vpop.f32.mrf.mxu0
      %v2621 = vadd.f32 0.0, %v2620
      %v2622 = vpop.f32.mrf.mxu0
      %v2623 = vadd.f32 0.0, %v2622
      %2624 = vmatmul.bf16.gmra.mxu0 %v2559
      %v2625 = vpop.f32.mrf.mxu0
      %v2626 = vadd.f32 0.0, %v2625
      %v2627 = vpop.f32.mrf.mxu0
      %v2628 = vadd.f32 0.0, %v2627
      %2629 = vmatmul.bf16.gmra.mxu0 %v2561
      %v2630 = vpop.f32.mrf.mxu0
      %v2631 = vadd.f32 0.0, %v2630
      %v2632 = vpop.f32.mrf.mxu0
      %v2633 = vadd.f32 0.0, %v2632
      %2634 = vmatmul.bf16.gmra.mxu0 %v2563
      %v2635 = vpop.f32.mrf.mxu0
      %v2636 = vadd.f32 0.0, %v2635
      %v2637 = vpop.f32.mrf.mxu0
      %v2638 = vadd.f32 0.0, %v2637
      %2639 = vmatmul.bf16.gmra.mxu0 %v2565
      %v2640 = vpop.f32.mrf.mxu0
      %v2641 = vadd.f32 0.0, %v2640
      %v2642 = vpop.f32.mrf.mxu0
      %v2643 = vadd.f32 0.0, %v2642
      %2644 = vmatmul.bf16.gmra.mxu0 %v2567
      %v2645 = vpop.f32.mrf.mxu0
      %v2646 = vadd.f32 0.0, %v2645
      %v2647 = vpop.f32.mrf.mxu0
      %v2648 = vadd.f32 0.0, %v2647
      %2649 = vmatmul.bf16.gmra.mxu0 %v2569
      %v2650 = vpop.f32.mrf.mxu0
      %v2651 = vadd.f32 0.0, %v2650
      %v2652 = vpop.f32.mrf.mxu0
      %v2653 = vadd.f32 0.0, %v2652
      %2654 = vmatmul.bf16.gmra.mxu0 %v2571
      %v2655 = vpop.f32.mrf.mxu0
      %v2656 = vadd.f32 0.0, %v2655
      %v2657 = vpop.f32.mrf.mxu0
      %v2658 = vadd.f32 0.0, %v2657
      %2659 = vmatmul.bf16.gmra.mxu0 %v2573
      %v2660 = vpop.f32.mrf.mxu0
      %v2661 = vadd.f32 0.0, %v2660
      %v2662 = vpop.f32.mrf.mxu0
      %v2663 = vadd.f32 0.0, %v2662
      %2664 = vmatmul.bf16.gmra.mxu0 %v2575
      %v2665 = vpop.f32.mrf.mxu0
      %v2666 = vadd.f32 0.0, %v2665
      %v2667 = vpop.f32.mrf.mxu0
      %v2668 = vadd.f32 0.0, %v2667
      %2669 = vmatmul.bf16.gmra.mxu0 %v2577
      %v2670 = vpop.f32.mrf.mxu0
      %v2671 = vadd.f32 0.0, %v2670
      %v2672 = vpop.f32.mrf.mxu0
      %v2673 = vadd.f32 0.0, %v2672
      %2674 = vmatmul.bf16.gmra.mxu0 %v2579
      %v2675 = vpop.f32.mrf.mxu0
      %v2676 = vadd.f32 0.0, %v2675
      %v2677 = vpop.f32.mrf.mxu0
      %v2678 = vadd.f32 0.0, %v2677
      %2679 = vmatmul.bf16.gmra.mxu0 %v2581
      %v2680 = vpop.f32.mrf.mxu0
      %v2681 = vadd.f32 0.0, %v2680
      %v2682 = vpop.f32.mrf.mxu0
      %v2683 = vadd.f32 0.0, %v2682
      %2684 = vmatmul.bf16.gmra.mxu0 %v2583
      %v2685 = vpop.f32.mrf.mxu0
      %v2686 = vadd.f32 0.0, %v2685
      %v2687 = vpop.f32.mrf.mxu0
      %v2688 = vadd.f32 0.0, %v2687
      %2689 = vdwg.mxu0
      %2690 = vmatpush.bf16.msra.mxu0 %v2600
      %2691 = vmatpush.bf16.msra.mxu0 %v2599
      %2692 = vmatpush.bf16.msra.mxu0 %v2598
      %2693 = vmatpush.bf16.msra.mxu0 %v2597
      %2694 = vmatpush.bf16.msra.mxu0 %v2596
      %2695 = vmatpush.bf16.msra.mxu0 %v2595
      %2696 = vmatpush.bf16.msra.mxu0 %v2594
      %2697 = vmatpush.bf16.msra.mxu0 %v2593
      %2698 = vmatmul.bf16.gmra.mxu0 %v2554
      %v2699 = vpop.f32.mrf.mxu0
      %v2700 = vadd.f32 %v2611, %v2699
      %v2701 = vpop.f32.mrf.mxu0
      %v2702 = vadd.f32 %v2613, %v2701
      %2703 = vmatmul.bf16.gmra.mxu0 %v2556
      %v2704 = vpop.f32.mrf.mxu0
      %v2705 = vadd.f32 %v2616, %v2704
      %v2706 = vpop.f32.mrf.mxu0
      %v2707 = vadd.f32 %v2618, %v2706
      %2708 = vmatmul.bf16.gmra.mxu0 %v2558
      %v2709 = vpop.f32.mrf.mxu0
      %v2710 = vadd.f32 %v2621, %v2709
      %v2711 = vpop.f32.mrf.mxu0
      %v2712 = vadd.f32 %v2623, %v2711
      %2713 = vmatmul.bf16.gmra.mxu0 %v2560
      %v2714 = vpop.f32.mrf.mxu0
      %v2715 = vadd.f32 %v2626, %v2714
      %v2716 = vpop.f32.mrf.mxu0
      %v2717 = vadd.f32 %v2628, %v2716
      %2718 = vmatmul.bf16.gmra.mxu0 %v2562
      %v2719 = vpop.f32.mrf.mxu0
      %v2720 = vadd.f32 %v2631, %v2719
      %v2721 = vpop.f32.mrf.mxu0
      %v2722 = vadd.f32 %v2633, %v2721
      %2723 = vmatmul.bf16.gmra.mxu0 %v2564
      %v2724 = vpop.f32.mrf.mxu0
      %v2725 = vadd.f32 %v2636, %v2724
      %v2726 = vpop.f32.mrf.mxu0
      %v2727 = vadd.f32 %v2638, %v2726
      %2728 = vmatmul.bf16.gmra.mxu0 %v2566
      %v2729 = vpop.f32.mrf.mxu0
      %v2730 = vadd.f32 %v2641, %v2729
      %v2731 = vpop.f32.mrf.mxu0
      %v2732 = vadd.f32 %v2643, %v2731
      %2733 = vmatmul.bf16.gmra.mxu0 %v2568
      %v2734 = vpop.f32.mrf.mxu0
      %v2735 = vadd.f32 %v2646, %v2734
      %v2736 = vpop.f32.mrf.mxu0
      %v2737 = vadd.f32 %v2648, %v2736
      %2738 = vmatmul.bf16.gmra.mxu0 %v2570
      %v2739 = vpop.f32.mrf.mxu0
      %v2740 = vadd.f32 %v2651, %v2739
      %v2741 = vpop.f32.mrf.mxu0
      %v2742 = vadd.f32 %v2653, %v2741
      %2743 = vmatmul.bf16.gmra.mxu0 %v2572
      %v2744 = vpop.f32.mrf.mxu0
      %v2745 = vadd.f32 %v2656, %v2744
      %v2746 = vpop.f32.mrf.mxu0
      %v2747 = vadd.f32 %v2658, %v2746
      %2748 = vmatmul.bf16.gmra.mxu0 %v2574
      %v2749 = vpop.f32.mrf.mxu0
      %v2750 = vadd.f32 %v2661, %v2749
      %v2751 = vpop.f32.mrf.mxu0
      %v2752 = vadd.f32 %v2663, %v2751
      %2753 = vmatmul.bf16.gmra.mxu0 %v2576
      %v2754 = vpop.f32.mrf.mxu0
      %v2755 = vadd.f32 %v2666, %v2754
      %v2756 = vpop.f32.mrf.mxu0
      %v2757 = vadd.f32 %v2668, %v2756
      %2758 = vmatmul.bf16.gmra.mxu0 %v2578
      %v2759 = vpop.f32.mrf.mxu0
      %v2760 = vadd.f32 %v2671, %v2759
      %v2761 = vpop.f32.mrf.mxu0
      %v2762 = vadd.f32 %v2673, %v2761
      %2763 = vmatmul.bf16.gmra.mxu0 %v2580
      %v2764 = vpop.f32.mrf.mxu0
      %v2765 = vadd.f32 %v2676, %v2764
      %v2766 = vpop.f32.mrf.mxu0
      %v2767 = vadd.f32 %v2678, %v2766
      %2768 = vmatmul.bf16.gmra.mxu0 %v2582
      %v2769 = vpop.f32.mrf.mxu0
      %v2770 = vadd.f32 %v2681, %v2769
      %v2771 = vpop.f32.mrf.mxu0
      %v2772 = vadd.f32 %v2683, %v2771
      %2773 = vmatmul.bf16.gmra.mxu0 %v2584
      %v2774 = vpop.f32.mrf.mxu0
      %v2775 = vadd.f32 %v2686, %v2774
      %v2776 = vpop.f32.mrf.mxu0
      %v2777 = vadd.f32 %v2688, %v2776
      %2778 = vdwg.mxu0
      %v2779 = vrcp.pop %v2459
      %v2780 = vrcp.pop %v2462
      %v2781 = vrcp.pop %v2465
      %v2782 = vrcp.pop %v2468
      %v2783 = vrcp.pop %v2471
      %v2784 = vrcp.pop %v2474
      %v2785 = vrcp.pop %v2477
      %v2786 = vrcp.pop %v2480
      %v2787 = vrcp.pop %v2483
      %v2788 = vrcp.pop %v2486
      %v2789 = vrcp.pop %v2489
      %v2790 = vrcp.pop %v2492
      %v2791 = vrcp.pop %v2495
      %v2792 = vrcp.pop %v2498
      %v2793 = vrcp.pop %v2501
      %v2794 = vrcp.pop %v2504
      %v2795 = vrcp.pop %v2507
      %v2796 = vrcp.pop %v2510
      %v2797 = vrcp.pop %v2513
      %v2798 = vrcp.pop %v2516
      %v2799 = vrcp.pop %v2519
      %v2800 = vrcp.pop %v2522
      %v2801 = vrcp.pop %v2525
      %v2802 = vrcp.pop %v2528
      %v2803 = vrcp.pop %v2531
      %v2804 = vrcp.pop %v2534
      %v2805 = vrcp.pop %v2537
      %v2806 = vrcp.pop %v2540
      %v2807 = vrcp.pop %v2543
      %v2808 = vrcp.pop %v2546
      %v2809 = vrcp.pop %v2549
      %v2810 = vrcp.pop %v2552
      %v2811 = vmul.f32 %v2700, %v2779
      %v2812 = vmul.f32 %v2702, %v2780
      %v2813 = vmul.f32 %v2705, %v2781
      %v2814 = vmul.f32 %v2707, %v2782
      %v2815 = vmul.f32 %v2710, %v2783
      %v2816 = vmul.f32 %v2712, %v2784
      %v2817 = vmul.f32 %v2715, %v2785
      %v2818 = vmul.f32 %v2717, %v2786
      %v2819 = vmul.f32 %v2720, %v2787
      %v2820 = vmul.f32 %v2722, %v2788
      %v2821 = vmul.f32 %v2725, %v2789
      %v2822 = vmul.f32 %v2727, %v2790
      %v2823 = vmul.f32 %v2730, %v2791
      %v2824 = vmul.f32 %v2732, %v2792
      %v2825 = vmul.f32 %v2735, %v2793
      %v2826 = vmul.f32 %v2737, %v2794
      %v2827 = vmul.f32 %v2740, %v2795
      %v2828 = vmul.f32 %v2742, %v2796
      %v2829 = vmul.f32 %v2745, %v2797
      %v2830 = vmul.f32 %v2747, %v2798
      %v2831 = vmul.f32 %v2750, %v2799
      %v2832 = vmul.f32 %v2752, %v2800
      %v2833 = vmul.f32 %v2755, %v2801
      %v2834 = vmul.f32 %v2757, %v2802
      %v2835 = vmul.f32 %v2760, %v2803
      %v2836 = vmul.f32 %v2762, %v2804
      %v2837 = vmul.f32 %v2765, %v2805
      %v2838 = vmul.f32 %v2767, %v2806
      %v2839 = vmul.f32 %v2770, %v2807
      %v2840 = vmul.f32 %v2772, %v2808
      %v2841 = vmul.f32 %v2775, %v2809
      %v2842 = vmul.f32 %v2777, %v2810
      %v2843 = vpack.c.bf16 %v2812, %v2811
      %v2844 = vpack.c.bf16 %v2814, %v2813
      %v2845 = vpack.c.bf16 %v2816, %v2815
      %v2846 = vpack.c.bf16 %v2818, %v2817
      %v2847 = vpack.c.bf16 %v2820, %v2819
      %v2848 = vpack.c.bf16 %v2822, %v2821
      %v2849 = vpack.c.bf16 %v2824, %v2823
      %v2850 = vpack.c.bf16 %v2826, %v2825
      %v2851 = vpack.c.bf16 %v2828, %v2827
      %v2852 = vpack.c.bf16 %v2830, %v2829
      %v2853 = vpack.c.bf16 %v2832, %v2831
      %v2854 = vpack.c.bf16 %v2834, %v2833
      %v2855 = vpack.c.bf16 %v2836, %v2835
      %v2856 = vpack.c.bf16 %v2838, %v2837
      %v2857 = vpack.c.bf16 %v2840, %v2839
      %v2858 = vpack.c.bf16 %v2842, %v2841
      %v2859 = vld [vmem:[%s7] sm:$0xf]
      %v2860 = vld [vmem:[%s7 + $0x4] sm:$0xf]
      %v2861 = vld [vmem:[%s7 + $0x8] sm:$0xf]
      %v2862 = vld [vmem:[%s7 + $0xc] sm:$0xf]
      %v2863 = vld [vmem:[%s7 + $0x10] sm:$0xf]
      %v2864 = vld [vmem:[%s7 + $0x14] sm:$0xf]
      %v2865 = vld [vmem:[%s7 + $0x18] sm:$0xf]
      %v2866 = vld [vmem:[%s7 + $0x1c] sm:$0xf]
      %v2867 = vld [vmem:[%s7 + $0x20] sm:$0xf]
      %v2868 = vld [vmem:[%s7 + $0x24] sm:$0xf]
      %v2869 = vld [vmem:[%s7 + $0x28] sm:$0xf]
      %v2870 = vld [vmem:[%s7 + $0x2c] sm:$0xf]
      %v2871 = vld [vmem:[%s7 + $0x30] sm:$0xf]
      %v2872 = vld [vmem:[%s7 + $0x34] sm:$0xf]
      %v2873 = vld [vmem:[%s7 + $0x38] sm:$0xf]
      %v2874 = vld [vmem:[%s7 + $0x3c] sm:$0xf]
      %v2875 = vld [vmem:[%s11] sm:$0x1]
      %v2877 = vperm.slane %v2875, 0
      %v2895 = vunpack.c.l.b16 %v2859
      %v2896 = vunpack.c.l.b16 %v2860
      %v2897 = vunpack.c.l.b16 %v2861
      %v2898 = vunpack.c.l.b16 %v2862
      %v2899 = vunpack.c.l.b16 %v2863
      %v2900 = vunpack.c.l.b16 %v2864
      %v2901 = vunpack.c.l.b16 %v2865
      %v2902 = vunpack.c.l.b16 %v2866
      %v2903 = vunpack.c.l.b16 %v2867
      %v2904 = vunpack.c.l.b16 %v2868
      %v2905 = vunpack.c.l.b16 %v2869
      %v2906 = vunpack.c.l.b16 %v2870
      %v2907 = vunpack.c.l.b16 %v2871
      %v2908 = vunpack.c.l.b16 %v2872
      %v2909 = vunpack.c.l.b16 %v2873
      %v2910 = vunpack.c.l.b16 %v2874
      %v2911 = vpack.c.b16 %v2896, %v2895
      %v2912 = vpack.c.b16 %v2898, %v2897
      %v2913 = vpack.c.b16 %v2900, %v2899
      %v2914 = vpack.c.b16 %v2902, %v2901
      %v2915 = vpack.c.b16 %v2904, %v2903
      %v2916 = vpack.c.b16 %v2906, %v2905
      %v2917 = vpack.c.b16 %v2908, %v2907
      %v2918 = vpack.c.b16 %v2910, %v2909
      %2927 = vmatpush.bf16.msra.mxu0 %v2918
      %2928 = vmatpush.bf16.msra.mxu0 %v2917
      %2929 = vmatpush.bf16.msra.mxu0 %v2916
      %2930 = vmatpush.bf16.msra.mxu0 %v2915
      %2931 = vmatpush.bf16.msra.mxu0 %v2914
      %2932 = vmatpush.bf16.msra.mxu0 %v2913
      %2933 = vmatpush.bf16.msra.mxu0 %v2912
      %2934 = vmatpush.bf16.msra.mxu0 %v2911
      %2935 = vmatmul.bf16.gmra.mxu0 %v2843
      %v2936 = vpop.f32.mrf.mxu0
      %v2937 = vadd.f32 %v2877, %v2936
      %v2938 = vpop.f32.mrf.mxu0
      %v2939 = vadd.f32 %v2877, %v2938
      %2940 = vmatmul.bf16.gmra.mxu0 %v2844
      %v2941 = vpop.f32.mrf.mxu0
      %v2942 = vadd.f32 %v2877, %v2941
      %v2943 = vpop.f32.mrf.mxu0
      %v2944 = vadd.f32 %v2877, %v2943
      %2945 = vmatmul.bf16.gmra.mxu0 %v2845
      %v2946 = vpop.f32.mrf.mxu0
      %v2947 = vadd.f32 %v2877, %v2946
      %v2948 = vpop.f32.mrf.mxu0
      %v2949 = vadd.f32 %v2877, %v2948
      %2950 = vmatmul.bf16.gmra.mxu0 %v2846
      %v2951 = vpop.f32.mrf.mxu0
      %v2952 = vadd.f32 %v2877, %v2951
      %v2953 = vpop.f32.mrf.mxu0
      %v2954 = vadd.f32 %v2877, %v2953
      %2955 = vmatmul.bf16.gmra.mxu0 %v2847
      %v2956 = vpop.f32.mrf.mxu0
      %v2957 = vadd.f32 %v2877, %v2956
      %v2958 = vpop.f32.mrf.mxu0
      %v2959 = vadd.f32 %v2877, %v2958
      %2960 = vmatmul.bf16.gmra.mxu0 %v2848
      %v2961 = vpop.f32.mrf.mxu0
      %v2962 = vadd.f32 %v2877, %v2961
      %v2963 = vpop.f32.mrf.mxu0
      %v2964 = vadd.f32 %v2877, %v2963
      %2965 = vmatmul.bf16.gmra.mxu0 %v2849
      %v2966 = vpop.f32.mrf.mxu0
      %v2967 = vadd.f32 %v2877, %v2966
      %v2968 = vpop.f32.mrf.mxu0
      %v2969 = vadd.f32 %v2877, %v2968
      %2970 = vmatmul.bf16.gmra.mxu0 %v2850
      %v2971 = vpop.f32.mrf.mxu0
      %v2972 = vadd.f32 %v2877, %v2971
      %v2973 = vpop.f32.mrf.mxu0
      %v2974 = vadd.f32 %v2877, %v2973
      %2975 = vmatmul.bf16.gmra.mxu0 %v2851
      %v2976 = vpop.f32.mrf.mxu0
      %v2977 = vadd.f32 %v2877, %v2976
      %v2978 = vpop.f32.mrf.mxu0
      %v2979 = vadd.f32 %v2877, %v2978
      %2980 = vmatmul.bf16.gmra.mxu0 %v2852
      %v2981 = vpop.f32.mrf.mxu0
      %v2982 = vadd.f32 %v2877, %v2981
      %v2983 = vpop.f32.mrf.mxu0
      %v2984 = vadd.f32 %v2877, %v2983
      %2985 = vmatmul.bf16.gmra.mxu0 %v2853
      %v2986 = vpop.f32.mrf.mxu0
      %v2987 = vadd.f32 %v2877, %v2986
      %v2988 = vpop.f32.mrf.mxu0
      %v2989 = vadd.f32 %v2877, %v2988
      %2990 = vmatmul.bf16.gmra.mxu0 %v2854
      %v2991 = vpop.f32.mrf.mxu0
      %v2992 = vadd.f32 %v2877, %v2991
      %v2993 = vpop.f32.mrf.mxu0
      %v2994 = vadd.f32 %v2877, %v2993
      %2995 = vmatmul.bf16.gmra.mxu0 %v2855
      %v2996 = vpop.f32.mrf.mxu0
      %v2997 = vadd.f32 %v2877, %v2996
      %v2998 = vpop.f32.mrf.mxu0
      %v2999 = vadd.f32 %v2877, %v2998
      %3000 = vmatmul.bf16.gmra.mxu0 %v2856
      %v3001 = vpop.f32.mrf.mxu0
      %v3002 = vadd.f32 %v2877, %v3001
      %v3003 = vpop.f32.mrf.mxu0
      %v3004 = vadd.f32 %v2877, %v3003
      %3005 = vmatmul.bf16.gmra.mxu0 %v2857
      %v3006 = vpop.f32.mrf.mxu0
      %v3007 = vadd.f32 %v2877, %v3006
      %v3008 = vpop.f32.mrf.mxu0
      %v3009 = vadd.f32 %v2877, %v3008
      %3010 = vmatmul.bf16.gmra.mxu0 %v2858
      %v3011 = vpop.f32.mrf.mxu0
      %v3012 = vadd.f32 %v2877, %v3011
      %v3013 = vpop.f32.mrf.mxu0
      %v3014 = vadd.f32 %v2877, %v3013
      %3015 = vdwg.mxu0
      %3016 = vxpose.xlu0.b32.start [1/16] %v2937, 128
      %3017 = vxpose.xlu0.b32.cont [2/16] %v2939, 128
      %3018 = vxpose.xlu0.b32.cont [3/16] %v2942, 128
      %3019 = vxpose.xlu0.b32.cont [4/16] %v2944, 128
      %3020 = vxpose.xlu0.b32.cont [5/16] %v2947, 128
      %3021 = vxpose.xlu0.b32.cont [6/16] %v2949, 128
      %3022 = vxpose.xlu0.b32.cont [7/16] %v2952, 128
      %3023 = vxpose.xlu0.b32.cont [8/16] %v2954, 128
      %3024 = vxpose.xlu0.b32.cont [9/16] %v2957, 128
      %3025 = vxpose.xlu0.b32.cont [10/16] %v2959, 128
      %3026 = vxpose.xlu0.b32.cont [11/16] %v2962, 128
      %3027 = vxpose.xlu0.b32.cont [12/16] %v2964, 128
      %3028 = vxpose.xlu0.b32.cont [13/16] %v2967, 128
      %3029 = vxpose.xlu0.b32.cont [14/16] %v2969, 128
      %3030 = vxpose.xlu0.b32.cont [15/16] %v2972, 128
      %3031 = vxpose.xlu0.b32.end [16/16] %v2974, 128
      %v3032 = vpop.trf.xlu0
      %v3033 = vpop.trf.xlu0
      %v3034 = vpop.trf.xlu0
      %v3035 = vpop.trf.xlu0
      %v3036 = vpop.trf.xlu0
      %v3037 = vpop.trf.xlu0
      %v3038 = vpop.trf.xlu0
      %v3039 = vpop.trf.xlu0
      %v3040 = vpop.trf.xlu0
      %v3041 = vpop.trf.xlu0
      %v3042 = vpop.trf.xlu0
      %v3043 = vpop.trf.xlu0
      %v3044 = vpop.trf.xlu0
      %v3045 = vpop.trf.xlu0
      %v3046 = vpop.trf.xlu0
      %v3047 = vpop.trf.xlu0
      %3048 = vxpose.xlu0.b32.start [1/16] %v2977, 128
      %3049 = vxpose.xlu0.b32.cont [2/16] %v2979, 128
      %3050 = vxpose.xlu0.b32.cont [3/16] %v2982, 128
      %3051 = vxpose.xlu0.b32.cont [4/16] %v2984, 128
      %3052 = vxpose.xlu0.b32.cont [5/16] %v2987, 128
      %3053 = vxpose.xlu0.b32.cont [6/16] %v2989, 128
      %3054 = vxpose.xlu0.b32.cont [7/16] %v2992, 128
      %3055 = vxpose.xlu0.b32.cont [8/16] %v2994, 128
      %3056 = vxpose.xlu0.b32.cont [9/16] %v2997, 128
      %3057 = vxpose.xlu0.b32.cont [10/16] %v2999, 128
      %3058 = vxpose.xlu0.b32.cont [11/16] %v3002, 128
      %3059 = vxpose.xlu0.b32.cont [12/16] %v3004, 128
      %3060 = vxpose.xlu0.b32.cont [13/16] %v3007, 128
      %3061 = vxpose.xlu0.b32.cont [14/16] %v3009, 128
      %3062 = vxpose.xlu0.b32.cont [15/16] %v3012, 128
      %3063 = vxpose.xlu0.b32.end [16/16] %v3014, 128
      %v3064 = vpop.trf.xlu0
      %v3065 = vpop.trf.xlu0
      %v3066 = vpop.trf.xlu0
      %v3067 = vpop.trf.xlu0
      %v3068 = vpop.trf.xlu0
      %v3069 = vpop.trf.xlu0
      %v3070 = vpop.trf.xlu0
      %v3071 = vpop.trf.xlu0
      %v3072 = vpop.trf.xlu0
      %v3073 = vpop.trf.xlu0
      %v3074 = vpop.trf.xlu0
      %v3075 = vpop.trf.xlu0
      %v3076 = vpop.trf.xlu0
      %v3077 = vpop.trf.xlu0
      %v3078 = vpop.trf.xlu0
      %v3079 = vpop.trf.xlu0
      %v3080 = vadd.f32 %v3032, %v414
      %v3081 = vadd.f32 %v3064, %v415
      %v3082 = vadd.f32 %v3033, %v416
      %v3083 = vadd.f32 %v3065, %v417
      %v3084 = vadd.f32 %v3034, %v418
      %v3085 = vadd.f32 %v3066, %v419
      %v3086 = vadd.f32 %v3035, %v420
      %v3087 = vadd.f32 %v3067, %v421
      %v3088 = vadd.f32 %v3036, %v422
      %v3089 = vadd.f32 %v3068, %v423
      %v3090 = vadd.f32 %v3037, %v424
      %v3091 = vadd.f32 %v3069, %v425
      %v3092 = vadd.f32 %v3038, %v426
      %v3093 = vadd.f32 %v3070, %v427
      %v3094 = vadd.f32 %v3039, %v428
      %v3095 = vadd.f32 %v3071, %v429
      %v3096 = vadd.f32 %v3040, %v430
      %v3097 = vadd.f32 %v3072, %v431
      %v3098 = vadd.f32 %v3041, %v432
      %v3099 = vadd.f32 %v3073, %v433
      %v3100 = vadd.f32 %v3042, %v434
      %v3101 = vadd.f32 %v3074, %v435
      %v3102 = vadd.f32 %v3043, %v436
      %v3103 = vadd.f32 %v3075, %v437
      %v3104 = vadd.f32 %v3044, %v438
      %v3105 = vadd.f32 %v3076, %v439
      %v3106 = vadd.f32 %v3045, %v440
      %v3107 = vadd.f32 %v3077, %v441
      %v3108 = vadd.f32 %v3046, %v442
      %v3109 = vadd.f32 %v3078, %v443
      %v3110 = vadd.f32 %v3047, %v444
      %v3111 = vadd.f32 %v3079, %v445
      %3112 = vst [vmem:[%s413] sm:$0xff] %v3080
      %3113 = vst [vmem:[%s413 + $0x8] sm:$0xff] %v3081
      %3114 = vst [vmem:[%s413 + $0x10] sm:$0xff] %v3082
      %3115 = vst [vmem:[%s413 + $0x18] sm:$0xff] %v3083
      %3116 = vst [vmem:[%s413 + $0x20] sm:$0xff] %v3084
      %3117 = vst [vmem:[%s413 + $0x28] sm:$0xff] %v3085
      %3118 = vst [vmem:[%s413 + $0x30] sm:$0xff] %v3086
      %3119 = vst [vmem:[%s413 + $0x38] sm:$0xff] %v3087
      %3120 = vst [vmem:[%s413 + $0x40] sm:$0xff] %v3088
      %3121 = vst [vmem:[%s413 + $0x48] sm:$0xff] %v3089
      %3122 = vst [vmem:[%s413 + $0x50] sm:$0xff] %v3090
      %3123 = vst [vmem:[%s413 + $0x58] sm:$0xff] %v3091
      %3124 = vst [vmem:[%s413 + $0x60] sm:$0xff] %v3092
      %3125 = vst [vmem:[%s413 + $0x68] sm:$0xff] %v3093
      %3126 = vst [vmem:[%s413 + $0x70] sm:$0xff] %v3094
      %3127 = vst [vmem:[%s413 + $0x78] sm:$0xff] %v3095
      %3128 = vst [vmem:[%s413 + $0x80] sm:$0xff] %v3096
      %3129 = vst [vmem:[%s413 + $0x88] sm:$0xff] %v3097
      %3130 = vst [vmem:[%s413 + $0x90] sm:$0xff] %v3098
      %3131 = vst [vmem:[%s413 + $0x98] sm:$0xff] %v3099
      %3132 = vst [vmem:[%s413 + $0xa0] sm:$0xff] %v3100
      %3133 = vst [vmem:[%s413 + $0xa8] sm:$0xff] %v3101
      %3134 = vst [vmem:[%s413 + $0xb0] sm:$0xff] %v3102
      %3135 = vst [vmem:[%s413 + $0xb8] sm:$0xff] %v3103
      %3136 = vst [vmem:[%s413 + $0xc0] sm:$0xff] %v3104
      %3137 = vst [vmem:[%s413 + $0xc8] sm:$0xff] %v3105
      %3138 = vst [vmem:[%s413 + $0xd0] sm:$0xff] %v3106
      %3139 = vst [vmem:[%s413 + $0xd8] sm:$0xff] %v3107
      %3140 = vst [vmem:[%s413 + $0xe0] sm:$0xff] %v3108
      %3141 = vst [vmem:[%s413 + $0xe8] sm:$0xff] %v3109
      %3142 = vst [vmem:[%s413 + $0xf0] sm:$0xff] %v3110
      %3143 = vst [vmem:[%s413 + $0xf8] sm:$0xff] %v3111
      %p3144 = scmp.lt.s32.totalorder %s23, 1
      %s3145 = scalar_select %p3144, %s23, 1
      %s3146 = smul.addr %s3145, 32
      %s3147 = smul.addr %s3146, 8
      %s3148 = scalar_lea.vmem %s12, %s3147
      // Predicated region
      $region69: #{attention_block.1} parent=67 // pred_check
        %p3149 = pneg %p298
      $region70: #{attention_block.1} parent=67 // pred_check_branch
        %3151 = sbr.rel (%p3149) target = $region72
      $region71: #{attention_block.1} parent=67 // pred_region
        _
      $region72: #{attention_block.1} parent=67 // pred_fallthru
        _
    $region68: #{attention_block.1} parent=5 // pred_fallthru
      _
    %p3152 = scmp.le.s32.totalorder 2, %s18
    // Predicated region
    $region73: #{attention_block.1} parent=5 // pred_check
      %p3153 = pneg %p3152
    $region74: #{attention_block.1} parent=5 // pred_check_branch
      %3155 = sbr.rel (%p3153) target = $region76
    $region75: #{attention_block.1} parent=5 // pred_region
      %s3156 = ssub.s32 %s18, 2
      // Predicated region
      $region77: #{attention_block.1} parent=75 // pred_check
        %p3157 = pneg %p304
      $region78: #{attention_block.1} parent=75 // pred_check_branch
        %3159 = sbr.rel (%p3157) target = $region80
      $region79: #{attention_block.1} parent=75 // pred_region
        %p3160 = scmp.lt.s32.totalorder %s24, 1
        %s3161 = scalar_select %p3160, %s24, 1
        %s3162 = smul.addr %s3161, 32
        %s3163 = smul.addr %s3162, 8
        %s3164 = scalar_lea.vmem %s12, %s3163
      $region80: #{attention_block.1} parent=75 // pred_fallthru
        _
    $region76: #{attention_block.1} parent=5 // pred_fallthru
      _
  $region6: #{attention_block.1} parent=0 // loop_footer
    %s22 = sadd.s32 1, %s18
  $region7: #{attention_block.1} parent=0 // loop_footer_branch
    %17 = sbr.rel target = $region3
  $region8: #{attention_block.1} parent=0 // loop_exit
    _

</llo_original>
